<compile_context>
chip_gen: v7x
topology: tpu7x:2x2x1
jax: 0.10.0
libtpu: 0.0.40
codegen_flags: <defaults>
</compile_context>

<pallas_src>
import functools

import jax
import jax.numpy as jnp
from jax.experimental import pallas as pl
from jax.experimental.pallas import tpu as pltpu

_LANES = 128
_MAX_BLOCK_ROWS = 2048                      # (2048, 128) f32 = 1 MiB per block
_MAX_BLOCK_ELEMS = _MAX_BLOCK_ROWS * _LANES
_MIN_PALLAS_ELEMS = 1024                    # below this, a launch is pure overhead


def _sq_sum_kernel(p_ref, t_ref, o_ref, acc_ref):
    """Accumulate (p - t)^2 elementwise into a block-shaped f32 accumulator.

    Grid is (n_splits, n_blocks_per_split).  Axis 1 is the reduction axis
    ("arbitrary"); axis 0 is "parallel" so megacore chips (v7x) can place each
    split on its own TensorCore.  The hot loop is pure VPU work (sub, mul,
    add) with no per-step cross-lane reduce and no scalar read-modify-write.
    """
    j = pl.program_id(1)

    @pl.when(j == 0)
    def _init():
        acc_ref[...] = jnp.zeros_like(acc_ref)

    d = p_ref[...].astype(jnp.float32) - t_ref[...].astype(jnp.float32)
    acc_ref[...] += d * d

    @pl.when(j == pl.num_programs(1) - 1)
    def _finalize():
        # One sublane-direction reduce per split; the tiny cross-lane sum of
        # the (n_splits, 1, 128) partials is done in plain JAX outside.
        o_ref[...] = jnp.sum(acc_ref[...], axis=0, keepdims=True).reshape(
            1, 1, _LANES)


def _pallas_sq_sum(pred2d, true2d, block_rows):
    """sum((pred2d - true2d)^2); inputs are (rows, 128), rows % block_rows == 0."""
    n_rows = pred2d.shape[0]
    n_blocks = n_rows // block_rows
    # Split the reduction two ways when possible so v7x megacore can use both
    # TensorCores; on single-TC chips (v5e/v6e) the extra split is ~free.
    n_splits = 2 if (n_blocks >= 2 and n_blocks % 2 == 0) else 1
    blocks_per_split = n_blocks // n_splits

    partials = pl.pallas_call(
        _sq_sum_kernel,
        out_shape=jax.ShapeDtypeStruct((n_splits, 1, _LANES), jnp.float32),
        grid_spec=pltpu.PrefetchScalarGridSpec(
            num_scalar_prefetch=0,
            grid=(n_splits, blocks_per_split),
            in_specs=[
                pl.BlockSpec((block_rows, _LANES),
                             lambda i, j: (i * blocks_per_split + j, 0)),
                pl.BlockSpec((block_rows, _LANES),
                             lambda i, j: (i * blocks_per_split + j, 0)),
            ],
            out_specs=pl.BlockSpec((1, 1, _LANES), lambda i, j: (i, 0, 0)),
            scratch_shapes=[pltpu.VMEM((block_rows, _LANES), jnp.float32)],
        ),
        compiler_params=pltpu.CompilerParams(
            dimension_semantics=("parallel", "arbitrary")),
    )(pred2d, true2d)
    return jnp.sum(partials)


def _jnp_sq_sum(pred_flat, true_flat):
    d = pred_flat.astype(jnp.float32) - true_flat.astype(jnp.float32)
    return jnp.sum(d * d)


def _sum_squared_diff(pred, true):
    """sum((pred - true)^2) over all elements, f32 accumulation."""
    pred_f = jnp.ravel(pred)   # native dtype; the cast happens inside the kernel
    true_f = jnp.ravel(true)
    n = pred_f.shape[0]

    if n < _MIN_PALLAS_ELEMS:
        # Tiny tensor (e.g. pred_y): a kernel launch is pure overhead.
        return _jnp_sq_sum(pred_f, true_f)

    n_main = (n // _MAX_BLOCK_ELEMS) * _MAX_BLOCK_ELEMS
    if n_main > 0:
        # Big tensor: block-aligned prefix through Pallas with no padding (the
        # exact-multiple case is a free bitcast reshape); the < 1-block tail is
        # summed in plain XLA at roofline.
        pred_main = pred_f if n_main == n else pred_f[:n_main]
        true_main = true_f if n_main == n else true_f[:n_main]
        total = _pallas_sq_sum(pred_main.reshape(-1, _LANES),
                               true_main.reshape(-1, _LANES),
                               _MAX_BLOCK_ROWS)
        if n_main < n:
            total = total + _jnp_sq_sum(pred_f[n_main:], true_f[n_main:])
        return total

    # Medium tensor (< one max block): cheap zero-pad to a vreg-aligned
    # (rows, 128) slab and run a single-block Pallas reduction.  Zero padding
    # on both operands leaves the sum of squared diffs unchanged.
    tile = 8 * _LANES
    padded = ((n + tile - 1) // tile) * tile
    pad = padded - n
    pred_p = jnp.pad(pred_f, (0, pad)).reshape(-1, _LANES)
    true_p = jnp.pad(true_f, (0, pad)).reshape(-1, _LANES)
    return _pallas_sq_sum(pred_p, true_p, pred_p.shape[0])


def _mse(pred, true):
    numel = pred.size
    if numel == 0:
        return jnp.float32(0.0)
    return _sum_squared_diff(pred, true) / jnp.float32(numel)


@functools.partial(jax.jit, static_argnames=("log",))
def train_loss_forward(masked_pred_epsX, masked_pred_epsE, pred_y,
                       true_epsX, true_epsE, true_y, log: bool = False):
    """Equivalent of TrainLoss.forward (returns (mse, to_log))."""
    mse_X = _mse(masked_pred_epsX, true_epsX)
    mse_E = _mse(masked_pred_epsE, true_epsE)
    mse_y = _mse(pred_y, true_y)
    mse = mse_X + mse_E + mse_y

    to_log = None
    if log:
        # TODO(synk): wandb logging / torchmetrics running-state compute() have
        # no Pallas equivalent; return the per-batch values only.
        to_log = {
            "train_loss/batch_mse": mse,
            "train_loss/node_MSE": mse_X,
            "train_loss/edge_MSE": mse_E,
            "train_loss/y_mse": mse_y,
        }
    return mse, to_log


if __name__ == "__main__":
    key = jax.random.PRNGKey(0)
    k = jax.random.split(key, 6)

    # Graph-diffusion-style shapes: batch=4, 65 nodes, 32 node feats,
    # 32 edge feats, 11 globals.  epsE (540800 elems) exercises the no-pad
    # multi-block main path (2 x 2048-row blocks, 2-way split + jnp tail);
    # epsX (8320 elems) exercises the single-block padded path; y (44 elems)
    # takes the tiny plain-jnp path.
    bs, n, dx, de, dy = 4, 65, 32, 32, 11
    masked_pred_epsX = jax.random.normal(k[0], (bs, n, dx), jnp.float32)
    true_epsX = jax.random.normal(k[1], (bs, n, dx), jnp.float32)
    masked_pred_epsE = jax.random.normal(k[2], (bs, n, n, de), jnp.float32)
    true_epsE = jax.random.normal(k[3], (bs, n, n, de), jnp.float32)
    pred_y = jax.random.normal(k[4], (bs, dy), jnp.float32)
    true_y = jax.random.normal(k[5], (bs, dy), jnp.float32)

    mse, to_log = train_loss_forward(masked_pred_epsX, masked_pred_epsE,
                                     pred_y, true_epsX, true_epsE, true_y,
                                     log=True)
    jax.block_until_ready(mse)

    # reference check in plain JAX
    ref = (jnp.mean((masked_pred_epsX - true_epsX) ** 2)
           + jnp.mean((masked_pred_epsE - true_epsE) ** 2)
           + jnp.mean((pred_y - true_y) ** 2))
    assert jnp.allclose(mse, ref, rtol=1e-4, atol=1e-5), (mse, ref)
    print("KERNEL_OK")
</pallas_src>

<mosaic_0001>
module attributes {stable_mosaic.version = 11 : i64} {
  func.func @_sq_sum_kernel(%arg0: i32, %arg1: i32, %arg2: memref<72x128xf32, #tpu.memory_space<vmem>>, %arg3: memref<72x128xf32, #tpu.memory_space<vmem>>, %arg4: memref<1x1x128xf32, #tpu.memory_space<vmem>>, %arg5: memref<72x128xf32, #tpu.memory_space<vmem>>) attributes {dimension_semantics = [#tpu.dimension_semantics<parallel>, #tpu.dimension_semantics<arbitrary>], iteration_bounds = array<i64: 1, 1>, scalar_prefetch = 0 : i64, scratch_operands = 1 : i64, tpu.core_type = #tpu.core_type<tc>, window_params = [{transform_indices = @transform_0, window_bounds = array<i64: 72, 128>}, {transform_indices = @transform_1, window_bounds = array<i64: 72, 128>}, {transform_indices = @transform_2, window_bounds = array<i64: 1, 1, 128>}]} {
    %c0_i32 = arith.constant 0 : i32
    %0 = arith.cmpi eq, %arg1, %c0_i32 : i32
    %1 = arith.extui %0 : i1 to i32
    %c0_i32_0 = arith.constant 0 : i32
    %2 = arith.cmpi ne, %1, %c0_i32_0 : i32
    scf.if %2 {
      %cst = arith.constant 0.000000e+00 : f32
      %13 = vector.broadcast %cst : f32 to vector<72x128xf32>
      %c0_10 = arith.constant 0 : index
      %c0_11 = arith.constant 0 : index
      %14 = vector.load %arg5[%c0_10, %c0_11] : memref<72x128xf32, #tpu.memory_space<vmem>>, vector<72x128xf32>
      tpu.vector_store %arg5[%c0_10, %c0_11], %13 {strides = array<i32>} : memref<72x128xf32, #tpu.memory_space<vmem>>, vector<72x128xf32>,
    } else {
    }
    %c0 = arith.constant 0 : index
    %c0_1 = arith.constant 0 : index
    %3 = vector.load %arg2[%c0, %c0_1] : memref<72x128xf32, #tpu.memory_space<vmem>>, vector<72x128xf32>
    %c0_2 = arith.constant 0 : index
    %c0_3 = arith.constant 0 : index
    %4 = vector.load %arg3[%c0_2, %c0_3] : memref<72x128xf32, #tpu.memory_space<vmem>>, vector<72x128xf32>
    %5 = arith.subf %3, %4 : vector<72x128xf32>
    %c0_4 = arith.constant 0 : index
    %c0_5 = arith.constant 0 : index
    %6 = vector.load %arg5[%c0_4, %c0_5] : memref<72x128xf32, #tpu.memory_space<vmem>>, vector<72x128xf32>
    %7 = arith.mulf %5, %5 : vector<72x128xf32>
    %8 = arith.addf %6, %7 : vector<72x128xf32>
    %c0_6 = arith.constant 0 : index
    %c0_7 = arith.constant 0 : index
    %9 = vector.load %arg5[%c0_6, %c0_7] : memref<72x128xf32, #tpu.memory_space<vmem>>, vector<72x128xf32>
    tpu.vector_store %arg5[%c0_6, %c0_7], %8 {strides = array<i32>} : memref<72x128xf32, #tpu.memory_space<vmem>>, vector<72x128xf32>,
    %c0_i32_8 = arith.constant 0 : i32
    %10 = arith.cmpi eq, %arg1, %c0_i32_8 : i32
    %11 = arith.extui %10 : i1 to i32
    %c0_i32_9 = arith.constant 0 : i32
    %12 = arith.cmpi ne, %11, %c0_i32_9 : i32
    scf.if %12 {
      %c0_10 = arith.constant 0 : index
      %c0_11 = arith.constant 0 : index
      %13 = vector.load %arg5[%c0_10, %c0_11] : memref<72x128xf32, #tpu.memory_space<vmem>>, vector<72x128xf32>
      %cst = arith.constant dense<0.000000e+00> : vector<128xf32>
      %14 = vector.multi_reduction <add>, %13, %cst [0] : vector<72x128xf32> to vector<128xf32>
      %15 = vector.shape_cast %14 : vector<128xf32> to vector<1x128xf32>
      %16 = vector.shape_cast %15 : vector<1x128xf32> to vector<1x1x128xf32>
      %c0_12 = arith.constant 0 : index
      %c0_13 = arith.constant 0 : index
      %c0_14 = arith.constant 0 : index
      %17 = vector.load %arg4[%c0_12, %c0_13, %c0_14] : memref<1x1x128xf32, #tpu.memory_space<vmem>>, vector<1x1x128xf32>
      tpu.vector_store %arg4[%c0_12, %c0_13, %c0_14], %16 {strides = array<i32>} : memref<1x1x128xf32, #tpu.memory_space<vmem>>, vector<1x1x128xf32>,
    } else {
    }
    return
  }
  func.func @transform_0(%arg0: i32, %arg1: i32) -> (i32, i32) {
    %c1_i32 = arith.constant 1 : i32
    %0 = arith.muli %arg0, %c1_i32 : i32
    %1 = arith.addi %0, %arg1 : i32
    %c0_i32 = arith.constant 0 : i32
    %c0_i32_0 = arith.constant 0 : i32
    return %1, %c0_i32 : i32, i32
  }
  func.func @transform_1(%arg0: i32, %arg1: i32) -> (i32, i32) {
    %c1_i32 = arith.constant 1 : i32
    %0 = arith.muli %arg0, %c1_i32 : i32
    %1 = arith.addi %0, %arg1 : i32
    %c0_i32 = arith.constant 0 : i32
    %c0_i32_0 = arith.constant 0 : i32
    return %1, %c0_i32 : i32, i32
  }
  func.func @transform_2(%arg0: i32, %arg1: i32) -> (i32, i32, i32) {
    %c0_i32 = arith.constant 0 : i32
    %c0_i32_0 = arith.constant 0 : i32
    %c0_i32_1 = arith.constant 0 : i32
    return %arg0, %c0_i32, %c0_i32_0 : i32, i32, i32
  }
}

module attributes {stable_mosaic.version = 11 : i64} {
  func.func @_sq_sum_kernel(%arg0: i32, %arg1: i32, %arg2: memref<2048x128xf32, #tpu.memory_space<vmem>>, %arg3: memref<2048x128xf32, #tpu.memory_space<vmem>>, %arg4: memref<1x1x128xf32, #tpu.memory_space<vmem>>, %arg5: memref<2048x128xf32, #tpu.memory_space<vmem>>) attributes {dimension_semantics = [#tpu.dimension_semantics<parallel>, #tpu.dimension_semantics<arbitrary>], iteration_bounds = array<i64: 2, 1>, scalar_prefetch = 0 : i64, scratch_operands = 1 : i64, tpu.core_type = #tpu.core_type<tc>, window_params = [{transform_indices = @transform_0, window_bounds = array<i64: 2048, 128>}, {transform_indices = @transform_1, window_bounds = array<i64: 2048, 128>}, {transform_indices = @transform_2, window_bounds = array<i64: 1, 1, 128>}]} {
    %c0_i32 = arith.constant 0 : i32
    %0 = arith.cmpi eq, %arg1, %c0_i32 : i32
    %1 = arith.extui %0 : i1 to i32
    %c0_i32_0 = arith.constant 0 : i32
    %2 = arith.cmpi ne, %1, %c0_i32_0 : i32
    scf.if %2 {
      %cst = arith.constant 0.000000e+00 : f32
      %13 = vector.broadcast %cst : f32 to vector<2048x128xf32>
      %c0_10 = arith.constant 0 : index
      %c0_11 = arith.constant 0 : index
      %14 = vector.load %arg5[%c0_10, %c0_11] : memref<2048x128xf32, #tpu.memory_space<vmem>>, vector<2048x128xf32>
      tpu.vector_store %arg5[%c0_10, %c0_11], %13 {strides = array<i32>} : memref<2048x128xf32, #tpu.memory_space<vmem>>, vector<2048x128xf32>,
    } else {
    }
    %c0 = arith.constant 0 : index
    %c0_1 = arith.constant 0 : index
    %3 = vector.load %arg2[%c0, %c0_1] : memref<2048x128xf32, #tpu.memory_space<vmem>>, vector<2048x128xf32>
    %c0_2 = arith.constant 0 : index
    %c0_3 = arith.constant 0 : index
    %4 = vector.load %arg3[%c0_2, %c0_3] : memref<2048x128xf32, #tpu.memory_space<vmem>>, vector<2048x128xf32>
    %5 = arith.subf %3, %4 : vector<2048x128xf32>
    %c0_4 = arith.constant 0 : index
    %c0_5 = arith.constant 0 : index
    %6 = vector.load %arg5[%c0_4, %c0_5] : memref<2048x128xf32, #tpu.memory_space<vmem>>, vector<2048x128xf32>
    %7 = arith.mulf %5, %5 : vector<2048x128xf32>
    %8 = arith.addf %6, %7 : vector<2048x128xf32>
    %c0_6 = arith.constant 0 : index
    %c0_7 = arith.constant 0 : index
    %9 = vector.load %arg5[%c0_6, %c0_7] : memref<2048x128xf32, #tpu.memory_space<vmem>>, vector<2048x128xf32>
    tpu.vector_store %arg5[%c0_6, %c0_7], %8 {strides = array<i32>} : memref<2048x128xf32, #tpu.memory_space<vmem>>, vector<2048x128xf32>,
    %c0_i32_8 = arith.constant 0 : i32
    %10 = arith.cmpi eq, %arg1, %c0_i32_8 : i32
    %11 = arith.extui %10 : i1 to i32
    %c0_i32_9 = arith.constant 0 : i32
    %12 = arith.cmpi ne, %11, %c0_i32_9 : i32
    scf.if %12 {
      %c0_10 = arith.constant 0 : index
      %c0_11 = arith.constant 0 : index
      %13 = vector.load %arg5[%c0_10, %c0_11] : memref<2048x128xf32, #tpu.memory_space<vmem>>, vector<2048x128xf32>
      %cst = arith.constant dense<0.000000e+00> : vector<128xf32>
      %14 = vector.multi_reduction <add>, %13, %cst [0] : vector<2048x128xf32> to vector<128xf32>
      %15 = vector.shape_cast %14 : vector<128xf32> to vector<1x128xf32>
      %16 = vector.shape_cast %15 : vector<1x128xf32> to vector<1x1x128xf32>
      %c0_12 = arith.constant 0 : index
      %c0_13 = arith.constant 0 : index
      %c0_14 = arith.constant 0 : index
      %17 = vector.load %arg4[%c0_12, %c0_13, %c0_14] : memref<1x1x128xf32, #tpu.memory_space<vmem>>, vector<1x1x128xf32>
      tpu.vector_store %arg4[%c0_12, %c0_13, %c0_14], %16 {strides = array<i32>} : memref<1x1x128xf32, #tpu.memory_space<vmem>>, vector<1x1x128xf32>,
    } else {
    }
    return
  }
  func.func @transform_0(%arg0: i32, %arg1: i32) -> (i32, i32) {
    %c1_i32 = arith.constant 1 : i32
    %0 = arith.muli %arg0, %c1_i32 : i32
    %1 = arith.addi %0, %arg1 : i32
    %c0_i32 = arith.constant 0 : i32
    %c0_i32_0 = arith.constant 0 : i32
    return %1, %c0_i32 : i32, i32
  }
  func.func @transform_1(%arg0: i32, %arg1: i32) -> (i32, i32) {
    %c1_i32 = arith.constant 1 : i32
    %0 = arith.muli %arg0, %c1_i32 : i32
    %1 = arith.addi %0, %arg1 : i32
    %c0_i32 = arith.constant 0 : i32
    %c0_i32_0 = arith.constant 0 : i32
    return %1, %c0_i32 : i32, i32
  }
  func.func @transform_2(%arg0: i32, %arg1: i32) -> (i32, i32, i32) {
    %c0_i32 = arith.constant 0 : i32
    %c0_i32_0 = arith.constant 0 : i32
    %c0_i32_1 = arith.constant 0 : i32
    return %arg0, %c0_i32, %c0_i32_0 : i32, i32, i32
  }
}

</mosaic_0001>

<llo_original>
// kernel: train_loss_forward.2
$region0: #{train_loss_forward.2}
  #allocation0 [shape = 'u32[]', space=smem, size = 0x4, offset = 0x4, fixed_abs, tag = 'smem constant byte address 0x4 - core index']
  #allocation1 [shape = 'u32[144,128]{1,0:T(1,128)}', space=vmem, size = 0x12000, scoped, tag = 'internal scratch']
  #allocation2 [shape = 'f32[72,128]{1,0:T(8,128)}', space=vmem, size = 0x9000, scoped, tag = 'scratch operand']
  %s0 = inlined_call_operand.vmem [shape: f32[72,128], index: 0, kind: input, shape index: {}]
  %s1 = inlined_call_operand.vmem [shape: f32[72,128], index: 1, kind: input, shape index: {}]
  %s2 = inlined_call_operand.vmem [shape: f32[1,1,128], index: 2, kind: output, shape index: {}]
  %s3 = sld [smem:[#allocation0]]
  $region26: #{train_loss_forward.2} parent=0
    _
  %s5 = ssub.s32 1, %s3
  %s6 = scalar_select 0, %s5, %s3
  // Predicated region
  $region2: #{train_loss_forward.2} parent=0 // pred_check
    _
  $region3: #{train_loss_forward.2} parent=0 // pred_check_branch
    %8 = sbr.rel (0) target = $region5
  $region4: #{train_loss_forward.2} parent=0 // pred_region
    %s9 = sadd.s32 0, 0
    %s10 = smul.u32 9, %s9
    %p11 = scmp.lt.s32.totalorder %s10, 8
    %s12 = scalar_select %p11, %s10, 8
    %s13 = smul.addr %s12, 8
    %s14 = scalar_lea.vmem %s0, %s13
    %s15 = sadd.s32 0, 0
    %s16 = smul.u32 9, %s15
  $region5: #{train_loss_forward.2} parent=0 // pred_fallthru
    _
  // Predicated region
  $region6: #{train_loss_forward.2} parent=0 // pred_check
    _
  $region7: #{train_loss_forward.2} parent=0 // pred_check_branch
    %18 = sbr.rel (0) target = $region9
  $region8: #{train_loss_forward.2} parent=0 // pred_region
    %s19 = sadd.s32 0, 0
    %s20 = smul.u32 9, %s19
    %p21 = scmp.lt.s32.totalorder %s20, 8
    %s22 = scalar_select %p21, %s20, 8
    %s23 = smul.addr %s22, 8
    %s24 = scalar_lea.vmem %s1, %s23
    %s25 = sadd.s32 0, 0
    %s26 = smul.u32 9, %s25
  $region9: #{train_loss_forward.2} parent=0 // pred_fallthru
    _
  %s27 = sadd.s32 0, 0
  %s28 = smul.u32 9, %s27
  %p29 = scmp.lt.s32.totalorder %s28, 8
  %s30 = scalar_select %p29, %s28, 8
  %s31 = smul.addr %s30, 8
  %s32 = scalar_lea.vmem %s0, %s31
  %s33 = sadd.s32 0, 0
  %s34 = smul.u32 9, %s33
  %p35 = scmp.lt.s32.totalorder %s34, 8
  %s36 = scalar_select %p35, %s34, 8
  %s37 = smul.addr %s36, 8
  %s38 = scalar_lea.vmem %s1, %s37
  %s39 = sadd.s32 0, 0
  %s40 = smul.u32 9, %s39
  %p41 = scmp.lt.s32.totalorder %s40, 8
  %s42 = scalar_select %p41, %s40, 8
  %s43 = smul.addr %s42, 8
  %s44 = scalar_lea.vmem %s0, %s43
  %s45 = sadd.s32 0, 0
  %s46 = smul.u32 9, %s45
  %s47 = sadd.s32 0, 0
  %s48 = smul.u32 9, %s47
  %p49 = scmp.lt.s32.totalorder %s48, 8
  %s50 = scalar_select %p49, %s48, 8
  %s51 = smul.addr %s50, 8
  %s52 = scalar_lea.vmem %s1, %s51
  %s53 = sadd.s32 0, 0
  %s54 = smul.u32 9, %s53
  %p55 = scmp.eq.s32.totalorder 0, 0
  // Predicated region
  $region10: #{train_loss_forward.2} parent=0 // pred_check
    %p56 = pneg %p55
  $region11: #{train_loss_forward.2} parent=0 // pred_check_branch
    %58 = sbr.rel (%p56) target = $region13
  $region12: #{train_loss_forward.2} parent=0 // pred_region
    %59 = vst [vmem:[#allocation2] sm:$0xff] 0.0
    %60 = vst [vmem:[#allocation2 + $0x8] sm:$0xff] 0.0
    %61 = vst [vmem:[#allocation2 + $0x10] sm:$0xff] 0.0
    %62 = vst [vmem:[#allocation2 + $0x18] sm:$0xff] 0.0
    %63 = vst [vmem:[#allocation2 + $0x20] sm:$0xff] 0.0
    %64 = vst [vmem:[#allocation2 + $0x28] sm:$0xff] 0.0
    %65 = vst [vmem:[#allocation2 + $0x30] sm:$0xff] 0.0
    %66 = vst [vmem:[#allocation2 + $0x38] sm:$0xff] 0.0
    %67 = vst [vmem:[#allocation2 + $0x40] sm:$0xff] 0.0
  $region13: #{train_loss_forward.2} parent=0 // pred_fallthru
    _
  %v68 = vld [vmem:[%s44] sm:$0xff]
  %v69 = vld [vmem:[%s44 + $0x8] sm:$0xff]
  %v70 = vld [vmem:[%s44 + $0x10] sm:$0xff]
  %v71 = vld [vmem:[%s44 + $0x18] sm:$0xff]
  %v72 = vld [vmem:[%s44 + $0x20] sm:$0xff]
  %v73 = vld [vmem:[%s44 + $0x28] sm:$0xff]
  %v74 = vld [vmem:[%s44 + $0x30] sm:$0xff]
  %v75 = vld [vmem:[%s44 + $0x38] sm:$0xff]
  %v76 = vld [vmem:[%s44 + $0x40] sm:$0xff]
  %v77 = vld [vmem:[%s52] sm:$0xff]
  %v78 = vld [vmem:[%s52 + $0x8] sm:$0xff]
  %v79 = vld [vmem:[%s52 + $0x10] sm:$0xff]
  %v80 = vld [vmem:[%s52 + $0x18] sm:$0xff]
  %v81 = vld [vmem:[%s52 + $0x20] sm:$0xff]
  %v82 = vld [vmem:[%s52 + $0x28] sm:$0xff]
  %v83 = vld [vmem:[%s52 + $0x30] sm:$0xff]
  %v84 = vld [vmem:[%s52 + $0x38] sm:$0xff]
  %v85 = vld [vmem:[%s52 + $0x40] sm:$0xff]
  %v86 = vsub.f32 %v68, %v77
  %v87 = vsub.f32 %v69, %v78
  %v88 = vsub.f32 %v70, %v79
  %v89 = vsub.f32 %v71, %v80
  %v90 = vsub.f32 %v72, %v81
  %v91 = vsub.f32 %v73, %v82
  %v92 = vsub.f32 %v74, %v83
  %v93 = vsub.f32 %v75, %v84
  %v94 = vsub.f32 %v76, %v85
  %v95 = vld [vmem:[#allocation2] sm:$0xff]
  %v96 = vld [vmem:[#allocation2 + $0x8] sm:$0xff]
  %v97 = vld [vmem:[#allocation2 + $0x10] sm:$0xff]
  %v98 = vld [vmem:[#allocation2 + $0x18] sm:$0xff]
  %v99 = vld [vmem:[#allocation2 + $0x20] sm:$0xff]
  %v100 = vld [vmem:[#allocation2 + $0x28] sm:$0xff]
  %v101 = vld [vmem:[#allocation2 + $0x30] sm:$0xff]
  %v102 = vld [vmem:[#allocation2 + $0x38] sm:$0xff]
  %v103 = vld [vmem:[#allocation2 + $0x40] sm:$0xff]
  %v104 = vmul.f32 %v86, %v86
  %v105 = vmul.f32 %v87, %v87
  %v106 = vmul.f32 %v88, %v88
  %v107 = vmul.f32 %v89, %v89
  %v108 = vmul.f32 %v90, %v90
  %v109 = vmul.f32 %v91, %v91
  %v110 = vmul.f32 %v92, %v92
  %v111 = vmul.f32 %v93, %v93
  %v112 = vmul.f32 %v94, %v94
  %v113 = vadd.f32 %v95, %v104
  %v114 = vadd.f32 %v96, %v105
  %v115 = vadd.f32 %v97, %v106
  %v116 = vadd.f32 %v98, %v107
  %v117 = vadd.f32 %v99, %v108
  %v118 = vadd.f32 %v100, %v109
  %v119 = vadd.f32 %v101, %v110
  %v120 = vadd.f32 %v102, %v111
  %v121 = vadd.f32 %v103, %v112
  %122 = vst [vmem:[#allocation2] sm:$0xff] %v113
  %123 = vst [vmem:[#allocation2 + $0x8] sm:$0xff] %v114
  %124 = vst [vmem:[#allocation2 + $0x10] sm:$0xff] %v115
  %125 = vst [vmem:[#allocation2 + $0x18] sm:$0xff] %v116
  %126 = vst [vmem:[#allocation2 + $0x20] sm:$0xff] %v117
  %127 = vst [vmem:[#allocation2 + $0x28] sm:$0xff] %v118
  %128 = vst [vmem:[#allocation2 + $0x30] sm:$0xff] %v119
  %129 = vst [vmem:[#allocation2 + $0x38] sm:$0xff] %v120
  %130 = vst [vmem:[#allocation2 + $0x40] sm:$0xff] %v121
  // Predicated region
  $region14: #{train_loss_forward.2} parent=0 // pred_check
    %p131 = pneg %p55
  $region15: #{train_loss_forward.2} parent=0 // pred_check_branch
    %133 = sbr.rel (%p131) target = $region17
  $region16: #{train_loss_forward.2} parent=0 // pred_region
    %v134 = vld [vmem:[#allocation2] sm:$0xff]
    %v135 = vld [vmem:[#allocation2 + $0x8] sm:$0xff]
    %v136 = vld [vmem:[#allocation2 + $0x10] sm:$0xff]
    %v137 = vld [vmem:[#allocation2 + $0x18] sm:$0xff]
    %v138 = vld [vmem:[#allocation2 + $0x20] sm:$0xff]
    %v139 = vld [vmem:[#allocation2 + $0x28] sm:$0xff]
    %v140 = vld [vmem:[#allocation2 + $0x30] sm:$0xff]
    %v141 = vld [vmem:[#allocation2 + $0x38] sm:$0xff]
    %v142 = vld [vmem:[#allocation2 + $0x40] sm:$0xff]
    %v143 = vadd.f32 %v134, %v135
    %v144 = vadd.f32 %v143, %v136
    %v145 = vadd.f32 %v144, %v137
    %v146 = vadd.f32 %v145, %v138
    %v147 = vadd.f32 %v146, %v139
    %v148 = vadd.f32 %v147, %v140
    %v149 = vadd.f32 %v148, %v141
    %v150 = vadd.f32 %v149, %v142
    %v151 = vrot.slane %v150, 4
    %v152 = vadd.f32 %v150, %v151
    %v153 = vrot.slane %v152, 2
    %v154 = vadd.f32 %v152, %v153
    %v155 = vrot.slane %v154, 1
    %v156 = vadd.f32 %v154, %v155
    %157 = vst [vmem:[%s2] sm:$0x1] %v156
  $region17: #{train_loss_forward.2} parent=0 // pred_fallthru
    _
  // Predicated region
  $region18: #{train_loss_forward.2} parent=0 // pred_check
    _
  $region19: #{train_loss_forward.2} parent=0 // pred_check_branch
    %159 = sbr.rel (0) target = $region21
  $region20: #{train_loss_forward.2} parent=0 // pred_region
    _
  $region21: #{train_loss_forward.2} parent=0 // pred_fallthru
    _
  // Predicated region
  $region22: #{train_loss_forward.2} parent=0 // pred_check
    _
  $region23: #{train_loss_forward.2} parent=0 // pred_check_branch
    %161 = sbr.rel (0) target = $region25
  $region24: #{train_loss_forward.2} parent=0 // pred_region
    _
  $region25: #{train_loss_forward.2} parent=0 // pred_fallthru
    _

// kernel: train_loss_forward.3
$region0: #{train_loss_forward.3}
  #allocation0 [shape = 'u32[]', space=smem, size = 0x4, offset = 0x4, fixed_abs, tag = 'smem constant byte address 0x4 - core index']
  #allocation1 [shape = 'u32[144,128]{1,0:T(1,128)}', space=vmem, size = 0x12000, scoped, tag = 'internal scratch']
  #allocation2 [shape = 'f32[2048,128]{1,0:T(8,128)}', space=vmem, size = 0x100000, scoped, tag = 'scratch operand']
  %s0 = inlined_call_operand.vmem [shape: f32[4096,128], index: 0, kind: input, shape index: {}]
  %s1 = inlined_call_operand.vmem [shape: f32[4096,128], index: 1, kind: input, shape index: {}]
  %s2 = inlined_call_operand.vmem [shape: f32[2,1,128], index: 2, kind: output, shape index: {}]
  %s3 = sld [smem:[#allocation0]]
  $region49: #{train_loss_forward.3} parent=0
    _
  %s5 = ssub.s32 1, %s3
  %s6 = scalar_select 0, %s5, %s3
  loop: start=0, step=1, limit=4
  $region2: #{train_loss_forward.3} parent=0 // loop_pre_header
    _
  $region3: #{train_loss_forward.3} parent=0 // loop_header
    %s8 = sphi 0, %s12
    %p9 = scmp.ge.s32.totalorder %s8, 4
    %s15 = sphi 0, %s27
    %s16 = sphi 0, %s23
    %s17 = sphi 0, %s15
    %s18 = sphi 0, %s16
    %s19 = sphi 0, %s17
    %s20 = sphi 0, %s18
    %s32 = sphi 0, %s34
    %s35 = sphi 0, %s32
    %s36 = sphi 0, %s35
    %s52 = sphi 0, %s36
    %s60 = sphi 0, %s62
    %s63 = sphi 0, %s60
    %s64 = sphi 0, %s63
    %s80 = sphi 0, %s64
    %s86 = sphi 0, %s88
    %s89 = sphi 0, %s86
    %s90 = sphi 0, %s89
    %s106 = sphi 0, %s90
  $region4: #{train_loss_forward.3} parent=0 // loop_header_branch
    %11 = sbr.rel (%p9) target = $region8
  $region5: #{train_loss_forward.3} parent=0 // loop_body
    %s13 = ssub.s32 %s8, 1
    %s14 = ssub.s32 %s8, 2
    %s21 = sadd.s32 1, %s16
    %p22 = scmp.ge.s32.totalorder %s21, 1
    %s23 = scalar_select %p22, 0, %s21
    %s24 = sadd.s32 1, %s15
    %s25 = scalar_select %p22, %s24, %s15
    %p26 = scmp.ge.s32.totalorder %s25, 2
    %s27 = scalar_select %p26, 0, %s25
    %s28 = sadd.s32 %s15, %s16
    %s29 = sadd.s32 %s27, %s23
    %s30 = ssub.s32 %s28, %s29
    %p31 = scmp.eq.s32.totalorder %s30, 0
    %s33 = sadd.s32 %s32, 1
    %s34 = scalar_select %p31, %s32, %s33
    %p37 = pneg %p31
    %p38 = scmp.eq.s32.totalorder %s8, 1
    %p39 = por %p37, %p38
    %p40 = scmp.ne.s32.totalorder %s32, %s35
    %p41 = scmp.eq.s32.totalorder %s8, 0
    %p42 = por %p40, %p41
    %p43 = scmp.ne.s32.totalorder %s32, %s35
    %p44 = scmp.eq.s32.totalorder %s13, 1
    %p45 = por %p43, %p44
    %p46 = scmp.ne.s32.totalorder %s35, %s36
    %p47 = scmp.eq.s32.totalorder %s13, 0
    %p48 = por %p46, %p47
    %p49 = scmp.ne.s32.totalorder %s35, %s36
    %p50 = scmp.eq.s32.totalorder %s14, 1
    %p51 = por %p49, %p50
    %p53 = scmp.ne.s32.totalorder %s36, %s52
    %p54 = scmp.eq.s32.totalorder %s14, 0
    %p55 = por %p53, %p54
    %s56 = sadd.s32 %s15, %s16
    %s57 = sadd.s32 %s27, %s23
    %s58 = ssub.s32 %s56, %s57
    %p59 = scmp.eq.s32.totalorder %s58, 0
    %s61 = sadd.s32 %s60, 1
    %s62 = scalar_select %p59, %s60, %s61
    %p65 = pneg %p59
    %p66 = scmp.eq.s32.totalorder %s8, 1
    %p67 = por %p65, %p66
    %p68 = scmp.ne.s32.totalorder %s60, %s63
    %p69 = scmp.eq.s32.totalorder %s8, 0
    %p70 = por %p68, %p69
    %p71 = scmp.ne.s32.totalorder %s60, %s63
    %p72 = scmp.eq.s32.totalorder %s13, 1
    %p73 = por %p71, %p72
    %p74 = scmp.ne.s32.totalorder %s63, %s64
    %p75 = scmp.eq.s32.totalorder %s13, 0
    %p76 = por %p74, %p75
    %p77 = scmp.ne.s32.totalorder %s63, %s64
    %p78 = scmp.eq.s32.totalorder %s14, 1
    %p79 = por %p77, %p78
    %p81 = scmp.ne.s32.totalorder %s64, %s80
    %p82 = scmp.eq.s32.totalorder %s14, 0
    %p83 = por %p81, %p82
    %s84 = ssub.s32 %s15, %s27
    %p85 = scmp.eq.s32.totalorder %s84, 0
    %s87 = sadd.s32 %s86, 1
    %s88 = scalar_select %p85, %s86, %s87
    %p91 = pneg %p85
    %p92 = scmp.eq.s32.totalorder %s8, 1
    %p93 = por %p91, %p92
    %p94 = scmp.ne.s32.totalorder %s86, %s89
    %p95 = scmp.eq.s32.totalorder %s8, 0
    %p96 = por %p94, %p95
    %p97 = scmp.ne.s32.totalorder %s86, %s89
    %p98 = scmp.eq.s32.totalorder %s13, 1
    %p99 = por %p97, %p98
    %p100 = scmp.ne.s32.totalorder %s89, %s90
    %p101 = scmp.eq.s32.totalorder %s13, 0
    %p102 = por %p100, %p101
    %p103 = scmp.ne.s32.totalorder %s89, %s90
    %p104 = scmp.eq.s32.totalorder %s14, 1
    %p105 = por %p103, %p104
    %p107 = scmp.ne.s32.totalorder %s90, %s106
    %p108 = scmp.eq.s32.totalorder %s14, 0
    %p109 = por %p107, %p108
    %p110 = scmp.le.s32.totalorder 1, %s8
    %p111 = scmp.lt.s32.totalorder %s8, 3
    %p112 = pnand %p110, %p111
    %p113 = pneg %p112
    // Predicated region
    $region9: #{train_loss_forward.3} parent=5 // pred_check
      _
    $region10: #{train_loss_forward.3} parent=5 // pred_check_branch
      %115 = sbr.rel (%p112) target = $region12
    $region11: #{train_loss_forward.3} parent=5 // pred_region
      %s116 = ssub.s32 %s8, 1
    $region12: #{train_loss_forward.3} parent=5 // pred_fallthru
      _
    %p117 = scmp.lt.s32.totalorder %s8, 2
    // Predicated region
    $region13: #{train_loss_forward.3} parent=5 // pred_check
      %p118 = pneg %p117
    $region14: #{train_loss_forward.3} parent=5 // pred_check_branch
      %120 = sbr.rel (%p118) target = $region16
    $region15: #{train_loss_forward.3} parent=5 // pred_region
      // Predicated region
      $region17: #{train_loss_forward.3} parent=15 // pred_check
        %p121 = pneg %p42
      $region18: #{train_loss_forward.3} parent=15 // pred_check_branch
        %123 = sbr.rel (%p121) target = $region20
      $region19: #{train_loss_forward.3} parent=15 // pred_region
        %s124 = sadd.s32 %s15, %s16
        %s125 = smul.u32 256, %s124
        %p126 = scmp.lt.s32.totalorder %s125, 511
        %s127 = scalar_select %p126, %s125, 511
        %s128 = smul.addr %s127, 8
        %s129 = scalar_lea.vmem %s0, %s128
        %s130 = sadd.s32 %s15, %s16
        %s131 = smul.u32 256, %s130
      $region20: #{train_loss_forward.3} parent=15 // pred_fallthru
        _
      // Predicated region
      $region21: #{train_loss_forward.3} parent=15 // pred_check
        %p132 = pneg %p70
      $region22: #{train_loss_forward.3} parent=15 // pred_check_branch
        %134 = sbr.rel (%p132) target = $region24
      $region23: #{train_loss_forward.3} parent=15 // pred_region
        %s135 = sadd.s32 %s15, %s16
        %s136 = smul.u32 256, %s135
        %p137 = scmp.lt.s32.totalorder %s136, 511
        %s138 = scalar_select %p137, %s136, 511
        %s139 = smul.addr %s138, 8
        %s140 = scalar_lea.vmem %s1, %s139
        %s141 = sadd.s32 %s15, %s16
        %s142 = smul.u32 256, %s141
      $region24: #{train_loss_forward.3} parent=15 // pred_fallthru
        _
    $region16: #{train_loss_forward.3} parent=5 // pred_fallthru
      _
    %p143 = scmp.le.s32.totalorder 1, %s8
    %p144 = scmp.lt.s32.totalorder %s8, 3
    %p145 = pnand %p143, %p144
    %p146 = pneg %p145
    // Predicated region
    $region25: #{train_loss_forward.3} parent=5 // pred_check
      _
    $region26: #{train_loss_forward.3} parent=5 // pred_check_branch
      %148 = sbr.rel (%p145) target = $region28
    $region27: #{train_loss_forward.3} parent=5 // pred_region
      %s149 = ssub.s32 %s8, 1
      %s150 = sadd.s32 %s17, %s18
      %s151 = smul.u32 256, %s150
      %p152 = scmp.lt.s32.totalorder %s151, 511
      %s153 = scalar_select %p152, %s151, 511
      %s154 = smul.addr %s153, 8
      %s155 = scalar_lea.vmem %s0, %s154
      %p156 = pneg %p48
      %p157 = pneg %p45
      %s158 = sadd.s32 %s17, %s18
      %s159 = smul.u32 256, %s158
      %p160 = scmp.lt.s32.totalorder %s159, 511
      %s161 = scalar_select %p160, %s159, 511
      %s162 = smul.addr %s161, 8
      %s163 = scalar_lea.vmem %s1, %s162
      %p164 = pneg %p76
      %p165 = pneg %p73
      %p166 = pneg %p102
      %p167 = pneg %p99
      %p168 = scmp.lt.s32.totalorder %s17, 1
      %s169 = scalar_select %p168, %s17, 1
      %s170 = scalar_lea.vmem %s2, %s169
      %s171 = sadd.s32 %s17, %s18
      %s172 = smul.u32 256, %s171
      %p173 = scmp.lt.s32.totalorder %s172, 511
      %s174 = scalar_select %p173, %s172, 511
      %s175 = smul.addr %s174, 8
      %s176 = scalar_lea.vmem %s0, %s175
      %s177 = sadd.s32 %s17, %s18
      %s178 = smul.u32 256, %s177
      %s179 = sadd.s32 %s17, %s18
      %s180 = smul.u32 256, %s179
      %p181 = scmp.lt.s32.totalorder %s180, 511
      %s182 = scalar_select %p181, %s180, 511
      %s183 = smul.addr %s182, 8
      %s184 = scalar_lea.vmem %s1, %s183
      %s185 = sadd.s32 %s17, %s18
      %s186 = smul.u32 256, %s185
      %p187 = scmp.lt.s32.totalorder %s17, 1
      %s188 = scalar_select %p187, %s17, 1
      %s189 = scalar_lea.vmem %s2, %s188
      %p190 = scmp.eq.s32.totalorder %s18, 0
      // Predicated region
      $region29: #{train_loss_forward.3} parent=27 // pred_check
        %p191 = pneg %p190
      $region30: #{train_loss_forward.3} parent=27 // pred_check_branch
        %193 = sbr.rel (%p191) target = $region32
      $region31: #{train_loss_forward.3} parent=27 // pred_region
        %194 = vst [vmem:[#allocation2] sm:$0xff] 0.0
        %195 = vst [vmem:[#allocation2 + $0x8] sm:$0xff] 0.0
        %196 = vst [vmem:[#allocation2 + $0x10] sm:$0xff] 0.0
        %197 = vst [vmem:[#allocation2 + $0x18] sm:$0xff] 0.0
        %198 = vst [vmem:[#allocation2 + $0x20] sm:$0xff] 0.0
        %199 = vst [vmem:[#allocation2 + $0x28] sm:$0xff] 0.0
        %200 = vst [vmem:[#allocation2 + $0x30] sm:$0xff] 0.0
        %201 = vst [vmem:[#allocation2 + $0x38] sm:$0xff] 0.0
        %202 = vst [vmem:[#allocation2 + $0x40] sm:$0xff] 0.0
        %203 = vst [vmem:[#allocation2 + $0x48] sm:$0xff] 0.0
        %204 = vst [vmem:[#allocation2 + $0x50] sm:$0xff] 0.0
        %205 = vst [vmem:[#allocation2 + $0x58] sm:$0xff] 0.0
        %206 = vst [vmem:[#allocation2 + $0x60] sm:$0xff] 0.0
        %207 = vst [vmem:[#allocation2 + $0x68] sm:$0xff] 0.0
        %208 = vst [vmem:[#allocation2 + $0x70] sm:$0xff] 0.0
        %209 = vst [vmem:[#allocation2 + $0x78] sm:$0xff] 0.0
        %210 = vst [vmem:[#allocation2 + $0x80] sm:$0xff] 0.0
        %211 = vst [vmem:[#allocation2 + $0x88] sm:$0xff] 0.0
        %212 = vst [vmem:[#allocation2 + $0x90] sm:$0xff] 0.0
        %213 = vst [vmem:[#allocation2 + $0x98] sm:$0xff] 0.0
        %214 = vst [vmem:[#allocation2 + $0xa0] sm:$0xff] 0.0
        %215 = vst [vmem:[#allocation2 + $0xa8] sm:$0xff] 0.0
        %216 = vst [vmem:[#allocation2 + $0xb0] sm:$0xff] 0.0
        %217 = vst [vmem:[#allocation2 + $0xb8] sm:$0xff] 0.0
        %218 = vst [vmem:[#allocation2 + $0xc0] sm:$0xff] 0.0
        %219 = vst [vmem:[#allocation2 + $0xc8] sm:$0xff] 0.0
        %220 = vst [vmem:[#allocation2 + $0xd0] sm:$0xff] 0.0
        %221 = vst [vmem:[#allocation2 + $0xd8] sm:$0xff] 0.0
        %222 = vst [vmem:[#allocation2 + $0xe0] sm:$0xff] 0.0
        %223 = vst [vmem:[#allocation2 + $0xe8] sm:$0xff] 0.0
        %224 = vst [vmem:[#allocation2 + $0xf0] sm:$0xff] 0.0
        %225 = vst [vmem:[#allocation2 + $0xf8] sm:$0xff] 0.0
        %226 = vst [vmem:[#allocation2 + $0x100] sm:$0xff] 0.0
        %227 = vst [vmem:[#allocation2 + $0x108] sm:$0xff] 0.0
        %228 = vst [vmem:[#allocation2 + $0x110] sm:$0xff] 0.0
        %229 = vst [vmem:[#allocation2 + $0x118] sm:$0xff] 0.0
        %230 = vst [vmem:[#allocation2 + $0x120] sm:$0xff] 0.0
        %231 = vst [vmem:[#allocation2 + $0x128] sm:$0xff] 0.0
        %232 = vst [vmem:[#allocation2 + $0x130] sm:$0xff] 0.0
        %233 = vst [vmem:[#allocation2 + $0x138] sm:$0xff] 0.0
        %234 = vst [vmem:[#allocation2 + $0x140] sm:$0xff] 0.0
        %235 = vst [vmem:[#allocation2 + $0x148] sm:$0xff] 0.0
        %236 = vst [vmem:[#allocation2 + $0x150] sm:$0xff] 0.0
        %237 = vst [vmem:[#allocation2 + $0x158] sm:$0xff] 0.0
        %238 = vst [vmem:[#allocation2 + $0x160] sm:$0xff] 0.0
        %239 = vst [vmem:[#allocation2 + $0x168] sm:$0xff] 0.0
        %240 = vst [vmem:[#allocation2 + $0x170] sm:$0xff] 0.0
        %241 = vst [vmem:[#allocation2 + $0x178] sm:$0xff] 0.0
        %242 = vst [vmem:[#allocation2 + $0x180] sm:$0xff] 0.0
        %243 = vst [vmem:[#allocation2 + $0x188] sm:$0xff] 0.0
        %244 = vst [vmem:[#allocation2 + $0x190] sm:$0xff] 0.0
        %245 = vst [vmem:[#allocation2 + $0x198] sm:$0xff] 0.0
        %246 = vst [vmem:[#allocation2 + $0x1a0] sm:$0xff] 0.0
        %247 = vst [vmem:[#allocation2 + $0x1a8] sm:$0xff] 0.0
        %248 = vst [vmem:[#allocation2 + $0x1b0] sm:$0xff] 0.0
        %249 = vst [vmem:[#allocation2 + $0x1b8] sm:$0xff] 0.0
        %250 = vst [vmem:[#allocation2 + $0x1c0] sm:$0xff] 0.0
        %251 = vst [vmem:[#allocation2 + $0x1c8] sm:$0xff] 0.0
        %252 = vst [vmem:[#allocation2 + $0x1d0] sm:$0xff] 0.0
        %253 = vst [vmem:[#allocation2 + $0x1d8] sm:$0xff] 0.0
        %254 = vst [vmem:[#allocation2 + $0x1e0] sm:$0xff] 0.0
        %255 = vst [vmem:[#allocation2 + $0x1e8] sm:$0xff] 0.0
        %256 = vst [vmem:[#allocation2 + $0x1f0] sm:$0xff] 0.0
        %257 = vst [vmem:[#allocation2 + $0x1f8] sm:$0xff] 0.0
        %258 = vst [vmem:[#allocation2 + $0x200] sm:$0xff] 0.0
        %259 = vst [vmem:[#allocation2 + $0x208] sm:$0xff] 0.0
        %260 = vst [vmem:[#allocation2 + $0x210] sm:$0xff] 0.0
        %261 = vst [vmem:[#allocation2 + $0x218] sm:$0xff] 0.0
        %262 = vst [vmem:[#allocation2 + $0x220] sm:$0xff] 0.0
        %263 = vst [vmem:[#allocation2 + $0x228] sm:$0xff] 0.0
        %264 = vst [vmem:[#allocation2 + $0x230] sm:$0xff] 0.0
        %265 = vst [vmem:[#allocation2 + $0x238] sm:$0xff] 0.0
        %266 = vst [vmem:[#allocation2 + $0x240] sm:$0xff] 0.0
        %267 = vst [vmem:[#allocation2 + $0x248] sm:$0xff] 0.0
        %268 = vst [vmem:[#allocation2 + $0x250] sm:$0xff] 0.0
        %269 = vst [vmem:[#allocation2 + $0x258] sm:$0xff] 0.0
        %270 = vst [vmem:[#allocation2 + $0x260] sm:$0xff] 0.0
        %271 = vst [vmem:[#allocation2 + $0x268] sm:$0xff] 0.0
        %272 = vst [vmem:[#allocation2 + $0x270] sm:$0xff] 0.0
        %273 = vst [vmem:[#allocation2 + $0x278] sm:$0xff] 0.0
        %274 = vst [vmem:[#allocation2 + $0x280] sm:$0xff] 0.0
        %275 = vst [vmem:[#allocation2 + $0x288] sm:$0xff] 0.0
        %276 = vst [vmem:[#allocation2 + $0x290] sm:$0xff] 0.0
        %277 = vst [vmem:[#allocation2 + $0x298] sm:$0xff] 0.0
        %278 = vst [vmem:[#allocation2 + $0x2a0] sm:$0xff] 0.0
        %279 = vst [vmem:[#allocation2 + $0x2a8] sm:$0xff] 0.0
        %280 = vst [vmem:[#allocation2 + $0x2b0] sm:$0xff] 0.0
        %281 = vst [vmem:[#allocation2 + $0x2b8] sm:$0xff] 0.0
        %282 = vst [vmem:[#allocation2 + $0x2c0] sm:$0xff] 0.0
        %283 = vst [vmem:[#allocation2 + $0x2c8] sm:$0xff] 0.0
        %284 = vst [vmem:[#allocation2 + $0x2d0] sm:$0xff] 0.0
        %285 = vst [vmem:[#allocation2 + $0x2d8] sm:$0xff] 0.0
        %286 = vst [vmem:[#allocation2 + $0x2e0] sm:$0xff] 0.0
        %287 = vst [vmem:[#allocation2 + $0x2e8] sm:$0xff] 0.0
        %288 = vst [vmem:[#allocation2 + $0x2f0] sm:$0xff] 0.0
        %289 = vst [vmem:[#allocation2 + $0x2f8] sm:$0xff] 0.0
        %290 = vst [vmem:[#allocation2 + $0x300] sm:$0xff] 0.0
        %291 = vst [vmem:[#allocation2 + $0x308] sm:$0xff] 0.0
        %292 = vst [vmem:[#allocation2 + $0x310] sm:$0xff] 0.0
        %293 = vst [vmem:[#allocation2 + $0x318] sm:$0xff] 0.0
        %294 = vst [vmem:[#allocation2 + $0x320] sm:$0xff] 0.0
        %295 = vst [vmem:[#allocation2 + $0x328] sm:$0xff] 0.0
        %296 = vst [vmem:[#allocation2 + $0x330] sm:$0xff] 0.0
        %297 = vst [vmem:[#allocation2 + $0x338] sm:$0xff] 0.0
        %298 = vst [vmem:[#allocation2 + $0x340] sm:$0xff] 0.0
        %299 = vst [vmem:[#allocation2 + $0x348] sm:$0xff] 0.0
        %300 = vst [vmem:[#allocation2 + $0x350] sm:$0xff] 0.0
        %301 = vst [vmem:[#allocation2 + $0x358] sm:$0xff] 0.0
        %302 = vst [vmem:[#allocation2 + $0x360] sm:$0xff] 0.0
        %303 = vst [vmem:[#allocation2 + $0x368] sm:$0xff] 0.0
        %304 = vst [vmem:[#allocation2 + $0x370] sm:$0xff] 0.0
        %305 = vst [vmem:[#allocation2 + $0x378] sm:$0xff] 0.0
        %306 = vst [vmem:[#allocation2 + $0x380] sm:$0xff] 0.0
        %307 = vst [vmem:[#allocation2 + $0x388] sm:$0xff] 0.0
        %308 = vst [vmem:[#allocation2 + $0x390] sm:$0xff] 0.0
        %309 = vst [vmem:[#allocation2 + $0x398] sm:$0xff] 0.0
        %310 = vst [vmem:[#allocation2 + $0x3a0] sm:$0xff] 0.0
        %311 = vst [vmem:[#allocation2 + $0x3a8] sm:$0xff] 0.0
        %312 = vst [vmem:[#allocation2 + $0x3b0] sm:$0xff] 0.0
        %313 = vst [vmem:[#allocation2 + $0x3b8] sm:$0xff] 0.0
        %314 = vst [vmem:[#allocation2 + $0x3c0] sm:$0xff] 0.0
        %315 = vst [vmem:[#allocation2 + $0x3c8] sm:$0xff] 0.0
        %316 = vst [vmem:[#allocation2 + $0x3d0] sm:$0xff] 0.0
        %317 = vst [vmem:[#allocation2 + $0x3d8] sm:$0xff] 0.0
        %318 = vst [vmem:[#allocation2 + $0x3e0] sm:$0xff] 0.0
        %319 = vst [vmem:[#allocation2 + $0x3e8] sm:$0xff] 0.0
        %320 = vst [vmem:[#allocation2 + $0x3f0] sm:$0xff] 0.0
        %321 = vst [vmem:[#allocation2 + $0x3f8] sm:$0xff] 0.0
        %322 = vst [vmem:[#allocation2 + $0x400] sm:$0xff] 0.0
        %323 = vst [vmem:[#allocation2 + $0x408] sm:$0xff] 0.0
        %324 = vst [vmem:[#allocation2 + $0x410] sm:$0xff] 0.0
        %325 = vst [vmem:[#allocation2 + $0x418] sm:$0xff] 0.0
        %326 = vst [vmem:[#allocation2 + $0x420] sm:$0xff] 0.0
        %327 = vst [vmem:[#allocation2 + $0x428] sm:$0xff] 0.0
        %328 = vst [vmem:[#allocation2 + $0x430] sm:$0xff] 0.0
        %329 = vst [vmem:[#allocation2 + $0x438] sm:$0xff] 0.0
        %330 = vst [vmem:[#allocation2 + $0x440] sm:$0xff] 0.0
        %331 = vst [vmem:[#allocation2 + $0x448] sm:$0xff] 0.0
        %332 = vst [vmem:[#allocation2 + $0x450] sm:$0xff] 0.0
        %333 = vst [vmem:[#allocation2 + $0x458] sm:$0xff] 0.0
        %334 = vst [vmem:[#allocation2 + $0x460] sm:$0xff] 0.0
        %335 = vst [vmem:[#allocation2 + $0x468] sm:$0xff] 0.0
        %336 = vst [vmem:[#allocation2 + $0x470] sm:$0xff] 0.0
        %337 = vst [vmem:[#allocation2 + $0x478] sm:$0xff] 0.0
        %338 = vst [vmem:[#allocation2 + $0x480] sm:$0xff] 0.0
        %339 = vst [vmem:[#allocation2 + $0x488] sm:$0xff] 0.0
        %340 = vst [vmem:[#allocation2 + $0x490] sm:$0xff] 0.0
        %341 = vst [vmem:[#allocation2 + $0x498] sm:$0xff] 0.0
        %342 = vst [vmem:[#allocation2 + $0x4a0] sm:$0xff] 0.0
        %343 = vst [vmem:[#allocation2 + $0x4a8] sm:$0xff] 0.0
        %344 = vst [vmem:[#allocation2 + $0x4b0] sm:$0xff] 0.0
        %345 = vst [vmem:[#allocation2 + $0x4b8] sm:$0xff] 0.0
        %346 = vst [vmem:[#allocation2 + $0x4c0] sm:$0xff] 0.0
        %347 = vst [vmem:[#allocation2 + $0x4c8] sm:$0xff] 0.0
        %348 = vst [vmem:[#allocation2 + $0x4d0] sm:$0xff] 0.0
        %349 = vst [vmem:[#allocation2 + $0x4d8] sm:$0xff] 0.0
        %350 = vst [vmem:[#allocation2 + $0x4e0] sm:$0xff] 0.0
        %351 = vst [vmem:[#allocation2 + $0x4e8] sm:$0xff] 0.0
        %352 = vst [vmem:[#allocation2 + $0x4f0] sm:$0xff] 0.0
        %353 = vst [vmem:[#allocation2 + $0x4f8] sm:$0xff] 0.0
        %354 = vst [vmem:[#allocation2 + $0x500] sm:$0xff] 0.0
        %355 = vst [vmem:[#allocation2 + $0x508] sm:$0xff] 0.0
        %356 = vst [vmem:[#allocation2 + $0x510] sm:$0xff] 0.0
        %357 = vst [vmem:[#allocation2 + $0x518] sm:$0xff] 0.0
        %358 = vst [vmem:[#allocation2 + $0x520] sm:$0xff] 0.0
        %359 = vst [vmem:[#allocation2 + $0x528] sm:$0xff] 0.0
        %360 = vst [vmem:[#allocation2 + $0x530] sm:$0xff] 0.0
        %361 = vst [vmem:[#allocation2 + $0x538] sm:$0xff] 0.0
        %362 = vst [vmem:[#allocation2 + $0x540] sm:$0xff] 0.0
        %363 = vst [vmem:[#allocation2 + $0x548] sm:$0xff] 0.0
        %364 = vst [vmem:[#allocation2 + $0x550] sm:$0xff] 0.0
        %365 = vst [vmem:[#allocation2 + $0x558] sm:$0xff] 0.0
        %366 = vst [vmem:[#allocation2 + $0x560] sm:$0xff] 0.0
        %367 = vst [vmem:[#allocation2 + $0x568] sm:$0xff] 0.0
        %368 = vst [vmem:[#allocation2 + $0x570] sm:$0xff] 0.0
        %369 = vst [vmem:[#allocation2 + $0x578] sm:$0xff] 0.0
        %370 = vst [vmem:[#allocation2 + $0x580] sm:$0xff] 0.0
        %371 = vst [vmem:[#allocation2 + $0x588] sm:$0xff] 0.0
        %372 = vst [vmem:[#allocation2 + $0x590] sm:$0xff] 0.0
        %373 = vst [vmem:[#allocation2 + $0x598] sm:$0xff] 0.0
        %374 = vst [vmem:[#allocation2 + $0x5a0] sm:$0xff] 0.0
        %375 = vst [vmem:[#allocation2 + $0x5a8] sm:$0xff] 0.0
        %376 = vst [vmem:[#allocation2 + $0x5b0] sm:$0xff] 0.0
        %377 = vst [vmem:[#allocation2 + $0x5b8] sm:$0xff] 0.0
        %378 = vst [vmem:[#allocation2 + $0x5c0] sm:$0xff] 0.0
        %379 = vst [vmem:[#allocation2 + $0x5c8] sm:$0xff] 0.0
        %380 = vst [vmem:[#allocation2 + $0x5d0] sm:$0xff] 0.0
        %381 = vst [vmem:[#allocation2 + $0x5d8] sm:$0xff] 0.0
        %382 = vst [vmem:[#allocation2 + $0x5e0] sm:$0xff] 0.0
        %383 = vst [vmem:[#allocation2 + $0x5e8] sm:$0xff] 0.0
        %384 = vst [vmem:[#allocation2 + $0x5f0] sm:$0xff] 0.0
        %385 = vst [vmem:[#allocation2 + $0x5f8] sm:$0xff] 0.0
        %386 = vst [vmem:[#allocation2 + $0x600] sm:$0xff] 0.0
        %387 = vst [vmem:[#allocation2 + $0x608] sm:$0xff] 0.0
        %388 = vst [vmem:[#allocation2 + $0x610] sm:$0xff] 0.0
        %389 = vst [vmem:[#allocation2 + $0x618] sm:$0xff] 0.0
        %390 = vst [vmem:[#allocation2 + $0x620] sm:$0xff] 0.0
        %391 = vst [vmem:[#allocation2 + $0x628] sm:$0xff] 0.0
        %392 = vst [vmem:[#allocation2 + $0x630] sm:$0xff] 0.0
        %393 = vst [vmem:[#allocation2 + $0x638] sm:$0xff] 0.0
        %394 = vst [vmem:[#allocation2 + $0x640] sm:$0xff] 0.0
        %395 = vst [vmem:[#allocation2 + $0x648] sm:$0xff] 0.0
        %396 = vst [vmem:[#allocation2 + $0x650] sm:$0xff] 0.0
        %397 = vst [vmem:[#allocation2 + $0x658] sm:$0xff] 0.0
        %398 = vst [vmem:[#allocation2 + $0x660] sm:$0xff] 0.0
        %399 = vst [vmem:[#allocation2 + $0x668] sm:$0xff] 0.0
        %400 = vst [vmem:[#allocation2 + $0x670] sm:$0xff] 0.0
        %401 = vst [vmem:[#allocation2 + $0x678] sm:$0xff] 0.0
        %402 = vst [vmem:[#allocation2 + $0x680] sm:$0xff] 0.0
        %403 = vst [vmem:[#allocation2 + $0x688] sm:$0xff] 0.0
        %404 = vst [vmem:[#allocation2 + $0x690] sm:$0xff] 0.0
        %405 = vst [vmem:[#allocation2 + $0x698] sm:$0xff] 0.0
        %406 = vst [vmem:[#allocation2 + $0x6a0] sm:$0xff] 0.0
        %407 = vst [vmem:[#allocation2 + $0x6a8] sm:$0xff] 0.0
        %408 = vst [vmem:[#allocation2 + $0x6b0] sm:$0xff] 0.0
        %409 = vst [vmem:[#allocation2 + $0x6b8] sm:$0xff] 0.0
        %410 = vst [vmem:[#allocation2 + $0x6c0] sm:$0xff] 0.0
        %411 = vst [vmem:[#allocation2 + $0x6c8] sm:$0xff] 0.0
        %412 = vst [vmem:[#allocation2 + $0x6d0] sm:$0xff] 0.0
        %413 = vst [vmem:[#allocation2 + $0x6d8] sm:$0xff] 0.0
        %414 = vst [vmem:[#allocation2 + $0x6e0] sm:$0xff] 0.0
        %415 = vst [vmem:[#allocation2 + $0x6e8] sm:$0xff] 0.0
        %416 = vst [vmem:[#allocation2 + $0x6f0] sm:$0xff] 0.0
        %417 = vst [vmem:[#allocation2 + $0x6f8] sm:$0xff] 0.0
        %418 = vst [vmem:[#allocation2 + $0x700] sm:$0xff] 0.0
        %419 = vst [vmem:[#allocation2 + $0x708] sm:$0xff] 0.0
        %420 = vst [vmem:[#allocation2 + $0x710] sm:$0xff] 0.0
        %421 = vst [vmem:[#allocation2 + $0x718] sm:$0xff] 0.0
        %422 = vst [vmem:[#allocation2 + $0x720] sm:$0xff] 0.0
        %423 = vst [vmem:[#allocation2 + $0x728] sm:$0xff] 0.0
        %424 = vst [vmem:[#allocation2 + $0x730] sm:$0xff] 0.0
        %425 = vst [vmem:[#allocation2 + $0x738] sm:$0xff] 0.0
        %426 = vst [vmem:[#allocation2 + $0x740] sm:$0xff] 0.0
        %427 = vst [vmem:[#allocation2 + $0x748] sm:$0xff] 0.0
        %428 = vst [vmem:[#allocation2 + $0x750] sm:$0xff] 0.0
        %429 = vst [vmem:[#allocation2 + $0x758] sm:$0xff] 0.0
        %430 = vst [vmem:[#allocation2 + $0x760] sm:$0xff] 0.0
        %431 = vst [vmem:[#allocation2 + $0x768] sm:$0xff] 0.0
        %432 = vst [vmem:[#allocation2 + $0x770] sm:$0xff] 0.0
        %433 = vst [vmem:[#allocation2 + $0x778] sm:$0xff] 0.0
        %434 = vst [vmem:[#allocation2 + $0x780] sm:$0xff] 0.0
        %435 = vst [vmem:[#allocation2 + $0x788] sm:$0xff] 0.0
        %436 = vst [vmem:[#allocation2 + $0x790] sm:$0xff] 0.0
        %437 = vst [vmem:[#allocation2 + $0x798] sm:$0xff] 0.0
        %438 = vst [vmem:[#allocation2 + $0x7a0] sm:$0xff] 0.0
        %439 = vst [vmem:[#allocation2 + $0x7a8] sm:$0xff] 0.0
        %440 = vst [vmem:[#allocation2 + $0x7b0] sm:$0xff] 0.0
        %441 = vst [vmem:[#allocation2 + $0x7b8] sm:$0xff] 0.0
        %442 = vst [vmem:[#allocation2 + $0x7c0] sm:$0xff] 0.0
        %443 = vst [vmem:[#allocation2 + $0x7c8] sm:$0xff] 0.0
        %444 = vst [vmem:[#allocation2 + $0x7d0] sm:$0xff] 0.0
        %445 = vst [vmem:[#allocation2 + $0x7d8] sm:$0xff] 0.0
        %446 = vst [vmem:[#allocation2 + $0x7e0] sm:$0xff] 0.0
        %447 = vst [vmem:[#allocation2 + $0x7e8] sm:$0xff] 0.0
        %448 = vst [vmem:[#allocation2 + $0x7f0] sm:$0xff] 0.0
        %449 = vst [vmem:[#allocation2 + $0x7f8] sm:$0xff] 0.0
      $region32: #{train_loss_forward.3} parent=27 // pred_fallthru
        _
      %v450 = vld [vmem:[%s176] sm:$0xff]
      %v451 = vld [vmem:[%s176 + $0x8] sm:$0xff]
      %v452 = vld [vmem:[%s176 + $0x10] sm:$0xff]
      %v453 = vld [vmem:[%s176 + $0x18] sm:$0xff]
      %v454 = vld [vmem:[%s176 + $0x20] sm:$0xff]
      %v455 = vld [vmem:[%s176 + $0x28] sm:$0xff]
      %v456 = vld [vmem:[%s176 + $0x30] sm:$0xff]
      %v457 = vld [vmem:[%s176 + $0x38] sm:$0xff]
      %v458 = vld [vmem:[%s176 + $0x40] sm:$0xff]
      %v459 = vld [vmem:[%s176 + $0x48] sm:$0xff]
      %v460 = vld [vmem:[%s176 + $0x50] sm:$0xff]
      %v461 = vld [vmem:[%s176 + $0x58] sm:$0xff]
      %v462 = vld [vmem:[%s176 + $0x60] sm:$0xff]
      %v463 = vld [vmem:[%s176 + $0x68] sm:$0xff]
      %v464 = vld [vmem:[%s176 + $0x70] sm:$0xff]
      %v465 = vld [vmem:[%s176 + $0x78] sm:$0xff]
      %v466 = vld [vmem:[%s176 + $0x80] sm:$0xff]
      %v467 = vld [vmem:[%s176 + $0x88] sm:$0xff]
      %v468 = vld [vmem:[%s176 + $0x90] sm:$0xff]
      %v469 = vld [vmem:[%s176 + $0x98] sm:$0xff]
      %v470 = vld [vmem:[%s176 + $0xa0] sm:$0xff]
      %v471 = vld [vmem:[%s176 + $0xa8] sm:$0xff]
      %v472 = vld [vmem:[%s176 + $0xb0] sm:$0xff]
      %v473 = vld [vmem:[%s176 + $0xb8] sm:$0xff]
      %v474 = vld [vmem:[%s176 + $0xc0] sm:$0xff]
      %v475 = vld [vmem:[%s176 + $0xc8] sm:$0xff]
      %v476 = vld [vmem:[%s176 + $0xd0] sm:$0xff]
      %v477 = vld [vmem:[%s176 + $0xd8] sm:$0xff]
      %v478 = vld [vmem:[%s176 + $0xe0] sm:$0xff]
      %v479 = vld [vmem:[%s176 + $0xe8] sm:$0xff]
      %v480 = vld [vmem:[%s176 + $0xf0] sm:$0xff]
      %v481 = vld [vmem:[%s176 + $0xf8] sm:$0xff]
      %v482 = vld [vmem:[%s176 + $0x100] sm:$0xff]
      %v483 = vld [vmem:[%s176 + $0x108] sm:$0xff]
      %v484 = vld [vmem:[%s176 + $0x110] sm:$0xff]
      %v485 = vld [vmem:[%s176 + $0x118] sm:$0xff]
      %v486 = vld [vmem:[%s176 + $0x120] sm:$0xff]
      %v487 = vld [vmem:[%s176 + $0x128] sm:$0xff]
      %v488 = vld [vmem:[%s176 + $0x130] sm:$0xff]
      %v489 = vld [vmem:[%s176 + $0x138] sm:$0xff]
      %v490 = vld [vmem:[%s176 + $0x140] sm:$0xff]
      %v491 = vld [vmem:[%s176 + $0x148] sm:$0xff]
      %v492 = vld [vmem:[%s176 + $0x150] sm:$0xff]
      %v493 = vld [vmem:[%s176 + $0x158] sm:$0xff]
      %v494 = vld [vmem:[%s176 + $0x160] sm:$0xff]
      %v495 = vld [vmem:[%s176 + $0x168] sm:$0xff]
      %v496 = vld [vmem:[%s176 + $0x170] sm:$0xff]
      %v497 = vld [vmem:[%s176 + $0x178] sm:$0xff]
      %v498 = vld [vmem:[%s176 + $0x180] sm:$0xff]
      %v499 = vld [vmem:[%s176 + $0x188] sm:$0xff]
      %v500 = vld [vmem:[%s176 + $0x190] sm:$0xff]
      %v501 = vld [vmem:[%s176 + $0x198] sm:$0xff]
      %v502 = vld [vmem:[%s176 + $0x1a0] sm:$0xff]
      %v503 = vld [vmem:[%s176 + $0x1a8] sm:$0xff]
      %v504 = vld [vmem:[%s176 + $0x1b0] sm:$0xff]
      %v505 = vld [vmem:[%s176 + $0x1b8] sm:$0xff]
      %v506 = vld [vmem:[%s176 + $0x1c0] sm:$0xff]
      %v507 = vld [vmem:[%s176 + $0x1c8] sm:$0xff]
      %v508 = vld [vmem:[%s176 + $0x1d0] sm:$0xff]
      %v509 = vld [vmem:[%s176 + $0x1d8] sm:$0xff]
      %v510 = vld [vmem:[%s176 + $0x1e0] sm:$0xff]
      %v511 = vld [vmem:[%s176 + $0x1e8] sm:$0xff]
      %v512 = vld [vmem:[%s176 + $0x1f0] sm:$0xff]
      %v513 = vld [vmem:[%s176 + $0x1f8] sm:$0xff]
      %v514 = vld [vmem:[%s176 + $0x200] sm:$0xff]
      %v515 = vld [vmem:[%s176 + $0x208] sm:$0xff]
      %v516 = vld [vmem:[%s176 + $0x210] sm:$0xff]
      %v517 = vld [vmem:[%s176 + $0x218] sm:$0xff]
      %v518 = vld [vmem:[%s176 + $0x220] sm:$0xff]
      %v519 = vld [vmem:[%s176 + $0x228] sm:$0xff]
      %v520 = vld [vmem:[%s176 + $0x230] sm:$0xff]
      %v521 = vld [vmem:[%s176 + $0x238] sm:$0xff]
      %v522 = vld [vmem:[%s176 + $0x240] sm:$0xff]
      %v523 = vld [vmem:[%s176 + $0x248] sm:$0xff]
      %v524 = vld [vmem:[%s176 + $0x250] sm:$0xff]
      %v525 = vld [vmem:[%s176 + $0x258] sm:$0xff]
      %v526 = vld [vmem:[%s176 + $0x260] sm:$0xff]
      %v527 = vld [vmem:[%s176 + $0x268] sm:$0xff]
      %v528 = vld [vmem:[%s176 + $0x270] sm:$0xff]
      %v529 = vld [vmem:[%s176 + $0x278] sm:$0xff]
      %v530 = vld [vmem:[%s176 + $0x280] sm:$0xff]
      %v531 = vld [vmem:[%s176 + $0x288] sm:$0xff]
      %v532 = vld [vmem:[%s176 + $0x290] sm:$0xff]
      %v533 = vld [vmem:[%s176 + $0x298] sm:$0xff]
      %v534 = vld [vmem:[%s176 + $0x2a0] sm:$0xff]
      %v535 = vld [vmem:[%s176 + $0x2a8] sm:$0xff]
      %v536 = vld [vmem:[%s176 + $0x2b0] sm:$0xff]
      %v537 = vld [vmem:[%s176 + $0x2b8] sm:$0xff]
      %v538 = vld [vmem:[%s176 + $0x2c0] sm:$0xff]
      %v539 = vld [vmem:[%s176 + $0x2c8] sm:$0xff]
      %v540 = vld [vmem:[%s176 + $0x2d0] sm:$0xff]
      %v541 = vld [vmem:[%s176 + $0x2d8] sm:$0xff]
      %v542 = vld [vmem:[%s176 + $0x2e0] sm:$0xff]
      %v543 = vld [vmem:[%s176 + $0x2e8] sm:$0xff]
      %v544 = vld [vmem:[%s176 + $0x2f0] sm:$0xff]
      %v545 = vld [vmem:[%s176 + $0x2f8] sm:$0xff]
      %v546 = vld [vmem:[%s176 + $0x300] sm:$0xff]
      %v547 = vld [vmem:[%s176 + $0x308] sm:$0xff]
      %v548 = vld [vmem:[%s176 + $0x310] sm:$0xff]
      %v549 = vld [vmem:[%s176 + $0x318] sm:$0xff]
      %v550 = vld [vmem:[%s176 + $0x320] sm:$0xff]
      %v551 = vld [vmem:[%s176 + $0x328] sm:$0xff]
      %v552 = vld [vmem:[%s176 + $0x330] sm:$0xff]
      %v553 = vld [vmem:[%s176 + $0x338] sm:$0xff]
      %v554 = vld [vmem:[%s176 + $0x340] sm:$0xff]
      %v555 = vld [vmem:[%s176 + $0x348] sm:$0xff]
      %v556 = vld [vmem:[%s176 + $0x350] sm:$0xff]
      %v557 = vld [vmem:[%s176 + $0x358] sm:$0xff]
      %v558 = vld [vmem:[%s176 + $0x360] sm:$0xff]
      %v559 = vld [vmem:[%s176 + $0x368] sm:$0xff]
      %v560 = vld [vmem:[%s176 + $0x370] sm:$0xff]
      %v561 = vld [vmem:[%s176 + $0x378] sm:$0xff]
      %v562 = vld [vmem:[%s176 + $0x380] sm:$0xff]
      %v563 = vld [vmem:[%s176 + $0x388] sm:$0xff]
      %v564 = vld [vmem:[%s176 + $0x390] sm:$0xff]
      %v565 = vld [vmem:[%s176 + $0x398] sm:$0xff]
      %v566 = vld [vmem:[%s176 + $0x3a0] sm:$0xff]
      %v567 = vld [vmem:[%s176 + $0x3a8] sm:$0xff]
      %v568 = vld [vmem:[%s176 + $0x3b0] sm:$0xff]
      %v569 = vld [vmem:[%s176 + $0x3b8] sm:$0xff]
      %v570 = vld [vmem:[%s176 + $0x3c0] sm:$0xff]
      %v571 = vld [vmem:[%s176 + $0x3c8] sm:$0xff]
      %v572 = vld [vmem:[%s176 + $0x3d0] sm:$0xff]
      %v573 = vld [vmem:[%s176 + $0x3d8] sm:$0xff]
      %v574 = vld [vmem:[%s176 + $0x3e0] sm:$0xff]
      %v575 = vld [vmem:[%s176 + $0x3e8] sm:$0xff]
      %v576 = vld [vmem:[%s176 + $0x3f0] sm:$0xff]
      %v577 = vld [vmem:[%s176 + $0x3f8] sm:$0xff]
      %v578 = vld [vmem:[%s176 + $0x400] sm:$0xff]
      %v579 = vld [vmem:[%s176 + $0x408] sm:$0xff]
      %v580 = vld [vmem:[%s176 + $0x410] sm:$0xff]
      %v581 = vld [vmem:[%s176 + $0x418] sm:$0xff]
      %v582 = vld [vmem:[%s176 + $0x420] sm:$0xff]
      %v583 = vld [vmem:[%s176 + $0x428] sm:$0xff]
      %v584 = vld [vmem:[%s176 + $0x430] sm:$0xff]
      %v585 = vld [vmem:[%s176 + $0x438] sm:$0xff]
      %v586 = vld [vmem:[%s176 + $0x440] sm:$0xff]
      %v587 = vld [vmem:[%s176 + $0x448] sm:$0xff]
      %v588 = vld [vmem:[%s176 + $0x450] sm:$0xff]
      %v589 = vld [vmem:[%s176 + $0x458] sm:$0xff]
      %v590 = vld [vmem:[%s176 + $0x460] sm:$0xff]
      %v591 = vld [vmem:[%s176 + $0x468] sm:$0xff]
      %v592 = vld [vmem:[%s176 + $0x470] sm:$0xff]
      %v593 = vld [vmem:[%s176 + $0x478] sm:$0xff]
      %v594 = vld [vmem:[%s176 + $0x480] sm:$0xff]
      %v595 = vld [vmem:[%s176 + $0x488] sm:$0xff]
      %v596 = vld [vmem:[%s176 + $0x490] sm:$0xff]
      %v597 = vld [vmem:[%s176 + $0x498] sm:$0xff]
      %v598 = vld [vmem:[%s176 + $0x4a0] sm:$0xff]
      %v599 = vld [vmem:[%s176 + $0x4a8] sm:$0xff]
      %v600 = vld [vmem:[%s176 + $0x4b0] sm:$0xff]
      %v601 = vld [vmem:[%s176 + $0x4b8] sm:$0xff]
      %v602 = vld [vmem:[%s176 + $0x4c0] sm:$0xff]
      %v603 = vld [vmem:[%s176 + $0x4c8] sm:$0xff]
      %v604 = vld [vmem:[%s176 + $0x4d0] sm:$0xff]
      %v605 = vld [vmem:[%s176 + $0x4d8] sm:$0xff]
      %v606 = vld [vmem:[%s176 + $0x4e0] sm:$0xff]
      %v607 = vld [vmem:[%s176 + $0x4e8] sm:$0xff]
      %v608 = vld [vmem:[%s176 + $0x4f0] sm:$0xff]
      %v609 = vld [vmem:[%s176 + $0x4f8] sm:$0xff]
      %v610 = vld [vmem:[%s176 + $0x500] sm:$0xff]
      %v611 = vld [vmem:[%s176 + $0x508] sm:$0xff]
      %v612 = vld [vmem:[%s176 + $0x510] sm:$0xff]
      %v613 = vld [vmem:[%s176 + $0x518] sm:$0xff]
      %v614 = vld [vmem:[%s176 + $0x520] sm:$0xff]
      %v615 = vld [vmem:[%s176 + $0x528] sm:$0xff]
      %v616 = vld [vmem:[%s176 + $0x530] sm:$0xff]
      %v617 = vld [vmem:[%s176 + $0x538] sm:$0xff]
      %v618 = vld [vmem:[%s176 + $0x540] sm:$0xff]
      %v619 = vld [vmem:[%s176 + $0x548] sm:$0xff]
      %v620 = vld [vmem:[%s176 + $0x550] sm:$0xff]
      %v621 = vld [vmem:[%s176 + $0x558] sm:$0xff]
      %v622 = vld [vmem:[%s176 + $0x560] sm:$0xff]
      %v623 = vld [vmem:[%s176 + $0x568] sm:$0xff]
      %v624 = vld [vmem:[%s176 + $0x570] sm:$0xff]
      %v625 = vld [vmem:[%s176 + $0x578] sm:$0xff]
      %v626 = vld [vmem:[%s176 + $0x580] sm:$0xff]
      %v627 = vld [vmem:[%s176 + $0x588] sm:$0xff]
      %v628 = vld [vmem:[%s176 + $0x590] sm:$0xff]
      %v629 = vld [vmem:[%s176 + $0x598] sm:$0xff]
      %v630 = vld [vmem:[%s176 + $0x5a0] sm:$0xff]
      %v631 = vld [vmem:[%s176 + $0x5a8] sm:$0xff]
      %v632 = vld [vmem:[%s176 + $0x5b0] sm:$0xff]
      %v633 = vld [vmem:[%s176 + $0x5b8] sm:$0xff]
      %v634 = vld [vmem:[%s176 + $0x5c0] sm:$0xff]
      %v635 = vld [vmem:[%s176 + $0x5c8] sm:$0xff]
      %v636 = vld [vmem:[%s176 + $0x5d0] sm:$0xff]
      %v637 = vld [vmem:[%s176 + $0x5d8] sm:$0xff]
      %v638 = vld [vmem:[%s176 + $0x5e0] sm:$0xff]
      %v639 = vld [vmem:[%s176 + $0x5e8] sm:$0xff]
      %v640 = vld [vmem:[%s176 + $0x5f0] sm:$0xff]
      %v641 = vld [vmem:[%s176 + $0x5f8] sm:$0xff]
      %v642 = vld [vmem:[%s176 + $0x600] sm:$0xff]
      %v643 = vld [vmem:[%s176 + $0x608] sm:$0xff]
      %v644 = vld [vmem:[%s176 + $0x610] sm:$0xff]
      %v645 = vld [vmem:[%s176 + $0x618] sm:$0xff]
      %v646 = vld [vmem:[%s176 + $0x620] sm:$0xff]
      %v647 = vld [vmem:[%s176 + $0x628] sm:$0xff]
      %v648 = vld [vmem:[%s176 + $0x630] sm:$0xff]
      %v649 = vld [vmem:[%s176 + $0x638] sm:$0xff]
      %v650 = vld [vmem:[%s176 + $0x640] sm:$0xff]
      %v651 = vld [vmem:[%s176 + $0x648] sm:$0xff]
      %v652 = vld [vmem:[%s176 + $0x650] sm:$0xff]
      %v653 = vld [vmem:[%s176 + $0x658] sm:$0xff]
      %v654 = vld [vmem:[%s176 + $0x660] sm:$0xff]
      %v655 = vld [vmem:[%s176 + $0x668] sm:$0xff]
      %v656 = vld [vmem:[%s176 + $0x670] sm:$0xff]
      %v657 = vld [vmem:[%s176 + $0x678] sm:$0xff]
      %v658 = vld [vmem:[%s176 + $0x680] sm:$0xff]
      %v659 = vld [vmem:[%s176 + $0x688] sm:$0xff]
      %v660 = vld [vmem:[%s176 + $0x690] sm:$0xff]
      %v661 = vld [vmem:[%s176 + $0x698] sm:$0xff]
      %v662 = vld [vmem:[%s176 + $0x6a0] sm:$0xff]
      %v663 = vld [vmem:[%s176 + $0x6a8] sm:$0xff]
      %v664 = vld [vmem:[%s176 + $0x6b0] sm:$0xff]
      %v665 = vld [vmem:[%s176 + $0x6b8] sm:$0xff]
      %v666 = vld [vmem:[%s176 + $0x6c0] sm:$0xff]
      %v667 = vld [vmem:[%s176 + $0x6c8] sm:$0xff]
      %v668 = vld [vmem:[%s176 + $0x6d0] sm:$0xff]
      %v669 = vld [vmem:[%s176 + $0x6d8] sm:$0xff]
      %v670 = vld [vmem:[%s176 + $0x6e0] sm:$0xff]
      %v671 = vld [vmem:[%s176 + $0x6e8] sm:$0xff]
      %v672 = vld [vmem:[%s176 + $0x6f0] sm:$0xff]
      %v673 = vld [vmem:[%s176 + $0x6f8] sm:$0xff]
      %v674 = vld [vmem:[%s176 + $0x700] sm:$0xff]
      %v675 = vld [vmem:[%s176 + $0x708] sm:$0xff]
      %v676 = vld [vmem:[%s176 + $0x710] sm:$0xff]
      %v677 = vld [vmem:[%s176 + $0x718] sm:$0xff]
      %v678 = vld [vmem:[%s176 + $0x720] sm:$0xff]
      %v679 = vld [vmem:[%s176 + $0x728] sm:$0xff]
      %v680 = vld [vmem:[%s176 + $0x730] sm:$0xff]
      %v681 = vld [vmem:[%s176 + $0x738] sm:$0xff]
      %v682 = vld [vmem:[%s176 + $0x740] sm:$0xff]
      %v683 = vld [vmem:[%s176 + $0x748] sm:$0xff]
      %v684 = vld [vmem:[%s176 + $0x750] sm:$0xff]
      %v685 = vld [vmem:[%s176 + $0x758] sm:$0xff]
      %v686 = vld [vmem:[%s176 + $0x760] sm:$0xff]
      %v687 = vld [vmem:[%s176 + $0x768] sm:$0xff]
      %v688 = vld [vmem:[%s176 + $0x770] sm:$0xff]
      %v689 = vld [vmem:[%s176 + $0x778] sm:$0xff]
      %v690 = vld [vmem:[%s176 + $0x780] sm:$0xff]
      %v691 = vld [vmem:[%s176 + $0x788] sm:$0xff]
      %v692 = vld [vmem:[%s176 + $0x790] sm:$0xff]
      %v693 = vld [vmem:[%s176 + $0x798] sm:$0xff]
      %v694 = vld [vmem:[%s176 + $0x7a0] sm:$0xff]
      %v695 = vld [vmem:[%s176 + $0x7a8] sm:$0xff]
      %v696 = vld [vmem:[%s176 + $0x7b0] sm:$0xff]
      %v697 = vld [vmem:[%s176 + $0x7b8] sm:$0xff]
      %v698 = vld [vmem:[%s176 + $0x7c0] sm:$0xff]
      %v699 = vld [vmem:[%s176 + $0x7c8] sm:$0xff]
      %v700 = vld [vmem:[%s176 + $0x7d0] sm:$0xff]
      %v701 = vld [vmem:[%s176 + $0x7d8] sm:$0xff]
      %v702 = vld [vmem:[%s176 + $0x7e0] sm:$0xff]
      %v703 = vld [vmem:[%s176 + $0x7e8] sm:$0xff]
      %v704 = vld [vmem:[%s176 + $0x7f0] sm:$0xff]
      %v705 = vld [vmem:[%s176 + $0x7f8] sm:$0xff]
      %v706 = vld [vmem:[%s184] sm:$0xff]
      %v707 = vld [vmem:[%s184 + $0x8] sm:$0xff]
      %v708 = vld [vmem:[%s184 + $0x10] sm:$0xff]
      %v709 = vld [vmem:[%s184 + $0x18] sm:$0xff]
      %v710 = vld [vmem:[%s184 + $0x20] sm:$0xff]
      %v711 = vld [vmem:[%s184 + $0x28] sm:$0xff]
      %v712 = vld [vmem:[%s184 + $0x30] sm:$0xff]
      %v713 = vld [vmem:[%s184 + $0x38] sm:$0xff]
      %v714 = vld [vmem:[%s184 + $0x40] sm:$0xff]
      %v715 = vld [vmem:[%s184 + $0x48] sm:$0xff]
      %v716 = vld [vmem:[%s184 + $0x50] sm:$0xff]
      %v717 = vld [vmem:[%s184 + $0x58] sm:$0xff]
      %v718 = vld [vmem:[%s184 + $0x60] sm:$0xff]
      %v719 = vld [vmem:[%s184 + $0x68] sm:$0xff]
      %v720 = vld [vmem:[%s184 + $0x70] sm:$0xff]
      %v721 = vld [vmem:[%s184 + $0x78] sm:$0xff]
      %v722 = vld [vmem:[%s184 + $0x80] sm:$0xff]
      %v723 = vld [vmem:[%s184 + $0x88] sm:$0xff]
      %v724 = vld [vmem:[%s184 + $0x90] sm:$0xff]
      %v725 = vld [vmem:[%s184 + $0x98] sm:$0xff]
      %v726 = vld [vmem:[%s184 + $0xa0] sm:$0xff]
      %v727 = vld [vmem:[%s184 + $0xa8] sm:$0xff]
      %v728 = vld [vmem:[%s184 + $0xb0] sm:$0xff]
      %v729 = vld [vmem:[%s184 + $0xb8] sm:$0xff]
      %v730 = vld [vmem:[%s184 + $0xc0] sm:$0xff]
      %v731 = vld [vmem:[%s184 + $0xc8] sm:$0xff]
      %v732 = vld [vmem:[%s184 + $0xd0] sm:$0xff]
      %v733 = vld [vmem:[%s184 + $0xd8] sm:$0xff]
      %v734 = vld [vmem:[%s184 + $0xe0] sm:$0xff]
      %v735 = vld [vmem:[%s184 + $0xe8] sm:$0xff]
      %v736 = vld [vmem:[%s184 + $0xf0] sm:$0xff]
      %v737 = vld [vmem:[%s184 + $0xf8] sm:$0xff]
      %v738 = vld [vmem:[%s184 + $0x100] sm:$0xff]
      %v739 = vld [vmem:[%s184 + $0x108] sm:$0xff]
      %v740 = vld [vmem:[%s184 + $0x110] sm:$0xff]
      %v741 = vld [vmem:[%s184 + $0x118] sm:$0xff]
      %v742 = vld [vmem:[%s184 + $0x120] sm:$0xff]
      %v743 = vld [vmem:[%s184 + $0x128] sm:$0xff]
      %v744 = vld [vmem:[%s184 + $0x130] sm:$0xff]
      %v745 = vld [vmem:[%s184 + $0x138] sm:$0xff]
      %v746 = vld [vmem:[%s184 + $0x140] sm:$0xff]
      %v747 = vld [vmem:[%s184 + $0x148] sm:$0xff]
      %v748 = vld [vmem:[%s184 + $0x150] sm:$0xff]
      %v749 = vld [vmem:[%s184 + $0x158] sm:$0xff]
      %v750 = vld [vmem:[%s184 + $0x160] sm:$0xff]
      %v751 = vld [vmem:[%s184 + $0x168] sm:$0xff]
      %v752 = vld [vmem:[%s184 + $0x170] sm:$0xff]
      %v753 = vld [vmem:[%s184 + $0x178] sm:$0xff]
      %v754 = vld [vmem:[%s184 + $0x180] sm:$0xff]
      %v755 = vld [vmem:[%s184 + $0x188] sm:$0xff]
      %v756 = vld [vmem:[%s184 + $0x190] sm:$0xff]
      %v757 = vld [vmem:[%s184 + $0x198] sm:$0xff]
      %v758 = vld [vmem:[%s184 + $0x1a0] sm:$0xff]
      %v759 = vld [vmem:[%s184 + $0x1a8] sm:$0xff]
      %v760 = vld [vmem:[%s184 + $0x1b0] sm:$0xff]
      %v761 = vld [vmem:[%s184 + $0x1b8] sm:$0xff]
      %v762 = vld [vmem:[%s184 + $0x1c0] sm:$0xff]
      %v763 = vld [vmem:[%s184 + $0x1c8] sm:$0xff]
      %v764 = vld [vmem:[%s184 + $0x1d0] sm:$0xff]
      %v765 = vld [vmem:[%s184 + $0x1d8] sm:$0xff]
      %v766 = vld [vmem:[%s184 + $0x1e0] sm:$0xff]
      %v767 = vld [vmem:[%s184 + $0x1e8] sm:$0xff]
      %v768 = vld [vmem:[%s184 + $0x1f0] sm:$0xff]
      %v769 = vld [vmem:[%s184 + $0x1f8] sm:$0xff]
      %v770 = vld [vmem:[%s184 + $0x200] sm:$0xff]
      %v771 = vld [vmem:[%s184 + $0x208] sm:$0xff]
      %v772 = vld [vmem:[%s184 + $0x210] sm:$0xff]
      %v773 = vld [vmem:[%s184 + $0x218] sm:$0xff]
      %v774 = vld [vmem:[%s184 + $0x220] sm:$0xff]
      %v775 = vld [vmem:[%s184 + $0x228] sm:$0xff]
      %v776 = vld [vmem:[%s184 + $0x230] sm:$0xff]
      %v777 = vld [vmem:[%s184 + $0x238] sm:$0xff]
      %v778 = vld [vmem:[%s184 + $0x240] sm:$0xff]
      %v779 = vld [vmem:[%s184 + $0x248] sm:$0xff]
      %v780 = vld [vmem:[%s184 + $0x250] sm:$0xff]
      %v781 = vld [vmem:[%s184 + $0x258] sm:$0xff]
      %v782 = vld [vmem:[%s184 + $0x260] sm:$0xff]
      %v783 = vld [vmem:[%s184 + $0x268] sm:$0xff]
      %v784 = vld [vmem:[%s184 + $0x270] sm:$0xff]
      %v785 = vld [vmem:[%s184 + $0x278] sm:$0xff]
      %v786 = vld [vmem:[%s184 + $0x280] sm:$0xff]
      %v787 = vld [vmem:[%s184 + $0x288] sm:$0xff]
      %v788 = vld [vmem:[%s184 + $0x290] sm:$0xff]
      %v789 = vld [vmem:[%s184 + $0x298] sm:$0xff]
      %v790 = vld [vmem:[%s184 + $0x2a0] sm:$0xff]
      %v791 = vld [vmem:[%s184 + $0x2a8] sm:$0xff]
      %v792 = vld [vmem:[%s184 + $0x2b0] sm:$0xff]
      %v793 = vld [vmem:[%s184 + $0x2b8] sm:$0xff]
      %v794 = vld [vmem:[%s184 + $0x2c0] sm:$0xff]
      %v795 = vld [vmem:[%s184 + $0x2c8] sm:$0xff]
      %v796 = vld [vmem:[%s184 + $0x2d0] sm:$0xff]
      %v797 = vld [vmem:[%s184 + $0x2d8] sm:$0xff]
      %v798 = vld [vmem:[%s184 + $0x2e0] sm:$0xff]
      %v799 = vld [vmem:[%s184 + $0x2e8] sm:$0xff]
      %v800 = vld [vmem:[%s184 + $0x2f0] sm:$0xff]
      %v801 = vld [vmem:[%s184 + $0x2f8] sm:$0xff]
      %v802 = vld [vmem:[%s184 + $0x300] sm:$0xff]
      %v803 = vld [vmem:[%s184 + $0x308] sm:$0xff]
      %v804 = vld [vmem:[%s184 + $0x310] sm:$0xff]
      %v805 = vld [vmem:[%s184 + $0x318] sm:$0xff]
      %v806 = vld [vmem:[%s184 + $0x320] sm:$0xff]
      %v807 = vld [vmem:[%s184 + $0x328] sm:$0xff]
      %v808 = vld [vmem:[%s184 + $0x330] sm:$0xff]
      %v809 = vld [vmem:[%s184 + $0x338] sm:$0xff]
      %v810 = vld [vmem:[%s184 + $0x340] sm:$0xff]
      %v811 = vld [vmem:[%s184 + $0x348] sm:$0xff]
      %v812 = vld [vmem:[%s184 + $0x350] sm:$0xff]
      %v813 = vld [vmem:[%s184 + $0x358] sm:$0xff]
      %v814 = vld [vmem:[%s184 + $0x360] sm:$0xff]
      %v815 = vld [vmem:[%s184 + $0x368] sm:$0xff]
      %v816 = vld [vmem:[%s184 + $0x370] sm:$0xff]
      %v817 = vld [vmem:[%s184 + $0x378] sm:$0xff]
      %v818 = vld [vmem:[%s184 + $0x380] sm:$0xff]
      %v819 = vld [vmem:[%s184 + $0x388] sm:$0xff]
      %v820 = vld [vmem:[%s184 + $0x390] sm:$0xff]
      %v821 = vld [vmem:[%s184 + $0x398] sm:$0xff]
      %v822 = vld [vmem:[%s184 + $0x3a0] sm:$0xff]
      %v823 = vld [vmem:[%s184 + $0x3a8] sm:$0xff]
      %v824 = vld [vmem:[%s184 + $0x3b0] sm:$0xff]
      %v825 = vld [vmem:[%s184 + $0x3b8] sm:$0xff]
      %v826 = vld [vmem:[%s184 + $0x3c0] sm:$0xff]
      %v827 = vld [vmem:[%s184 + $0x3c8] sm:$0xff]
      %v828 = vld [vmem:[%s184 + $0x3d0] sm:$0xff]
      %v829 = vld [vmem:[%s184 + $0x3d8] sm:$0xff]
      %v830 = vld [vmem:[%s184 + $0x3e0] sm:$0xff]
      %v831 = vld [vmem:[%s184 + $0x3e8] sm:$0xff]
      %v832 = vld [vmem:[%s184 + $0x3f0] sm:$0xff]
      %v833 = vld [vmem:[%s184 + $0x3f8] sm:$0xff]
      %v834 = vld [vmem:[%s184 + $0x400] sm:$0xff]
      %v835 = vld [vmem:[%s184 + $0x408] sm:$0xff]
      %v836 = vld [vmem:[%s184 + $0x410] sm:$0xff]
      %v837 = vld [vmem:[%s184 + $0x418] sm:$0xff]
      %v838 = vld [vmem:[%s184 + $0x420] sm:$0xff]
      %v839 = vld [vmem:[%s184 + $0x428] sm:$0xff]
      %v840 = vld [vmem:[%s184 + $0x430] sm:$0xff]
      %v841 = vld [vmem:[%s184 + $0x438] sm:$0xff]
      %v842 = vld [vmem:[%s184 + $0x440] sm:$0xff]
      %v843 = vld [vmem:[%s184 + $0x448] sm:$0xff]
      %v844 = vld [vmem:[%s184 + $0x450] sm:$0xff]
      %v845 = vld [vmem:[%s184 + $0x458] sm:$0xff]
      %v846 = vld [vmem:[%s184 + $0x460] sm:$0xff]
      %v847 = vld [vmem:[%s184 + $0x468] sm:$0xff]
      %v848 = vld [vmem:[%s184 + $0x470] sm:$0xff]
      %v849 = vld [vmem:[%s184 + $0x478] sm:$0xff]
      %v850 = vld [vmem:[%s184 + $0x480] sm:$0xff]
      %v851 = vld [vmem:[%s184 + $0x488] sm:$0xff]
      %v852 = vld [vmem:[%s184 + $0x490] sm:$0xff]
      %v853 = vld [vmem:[%s184 + $0x498] sm:$0xff]
      %v854 = vld [vmem:[%s184 + $0x4a0] sm:$0xff]
      %v855 = vld [vmem:[%s184 + $0x4a8] sm:$0xff]
      %v856 = vld [vmem:[%s184 + $0x4b0] sm:$0xff]
      %v857 = vld [vmem:[%s184 + $0x4b8] sm:$0xff]
      %v858 = vld [vmem:[%s184 + $0x4c0] sm:$0xff]
      %v859 = vld [vmem:[%s184 + $0x4c8] sm:$0xff]
      %v860 = vld [vmem:[%s184 + $0x4d0] sm:$0xff]
      %v861 = vld [vmem:[%s184 + $0x4d8] sm:$0xff]
      %v862 = vld [vmem:[%s184 + $0x4e0] sm:$0xff]
      %v863 = vld [vmem:[%s184 + $0x4e8] sm:$0xff]
      %v864 = vld [vmem:[%s184 + $0x4f0] sm:$0xff]
      %v865 = vld [vmem:[%s184 + $0x4f8] sm:$0xff]
      %v866 = vld [vmem:[%s184 + $0x500] sm:$0xff]
      %v867 = vld [vmem:[%s184 + $0x508] sm:$0xff]
      %v868 = vld [vmem:[%s184 + $0x510] sm:$0xff]
      %v869 = vld [vmem:[%s184 + $0x518] sm:$0xff]
      %v870 = vld [vmem:[%s184 + $0x520] sm:$0xff]
      %v871 = vld [vmem:[%s184 + $0x528] sm:$0xff]
      %v872 = vld [vmem:[%s184 + $0x530] sm:$0xff]
      %v873 = vld [vmem:[%s184 + $0x538] sm:$0xff]
      %v874 = vld [vmem:[%s184 + $0x540] sm:$0xff]
      %v875 = vld [vmem:[%s184 + $0x548] sm:$0xff]
      %v876 = vld [vmem:[%s184 + $0x550] sm:$0xff]
      %v877 = vld [vmem:[%s184 + $0x558] sm:$0xff]
      %v878 = vld [vmem:[%s184 + $0x560] sm:$0xff]
      %v879 = vld [vmem:[%s184 + $0x568] sm:$0xff]
      %v880 = vld [vmem:[%s184 + $0x570] sm:$0xff]
      %v881 = vld [vmem:[%s184 + $0x578] sm:$0xff]
      %v882 = vld [vmem:[%s184 + $0x580] sm:$0xff]
      %v883 = vld [vmem:[%s184 + $0x588] sm:$0xff]
      %v884 = vld [vmem:[%s184 + $0x590] sm:$0xff]
      %v885 = vld [vmem:[%s184 + $0x598] sm:$0xff]
      %v886 = vld [vmem:[%s184 + $0x5a0] sm:$0xff]
      %v887 = vld [vmem:[%s184 + $0x5a8] sm:$0xff]
      %v888 = vld [vmem:[%s184 + $0x5b0] sm:$0xff]
      %v889 = vld [vmem:[%s184 + $0x5b8] sm:$0xff]
      %v890 = vld [vmem:[%s184 + $0x5c0] sm:$0xff]
      %v891 = vld [vmem:[%s184 + $0x5c8] sm:$0xff]
      %v892 = vld [vmem:[%s184 + $0x5d0] sm:$0xff]
      %v893 = vld [vmem:[%s184 + $0x5d8] sm:$0xff]
      %v894 = vld [vmem:[%s184 + $0x5e0] sm:$0xff]
      %v895 = vld [vmem:[%s184 + $0x5e8] sm:$0xff]
      %v896 = vld [vmem:[%s184 + $0x5f0] sm:$0xff]
      %v897 = vld [vmem:[%s184 + $0x5f8] sm:$0xff]
      %v898 = vld [vmem:[%s184 + $0x600] sm:$0xff]
      %v899 = vld [vmem:[%s184 + $0x608] sm:$0xff]
      %v900 = vld [vmem:[%s184 + $0x610] sm:$0xff]
      %v901 = vld [vmem:[%s184 + $0x618] sm:$0xff]
      %v902 = vld [vmem:[%s184 + $0x620] sm:$0xff]
      %v903 = vld [vmem:[%s184 + $0x628] sm:$0xff]
      %v904 = vld [vmem:[%s184 + $0x630] sm:$0xff]
      %v905 = vld [vmem:[%s184 + $0x638] sm:$0xff]
      %v906 = vld [vmem:[%s184 + $0x640] sm:$0xff]
      %v907 = vld [vmem:[%s184 + $0x648] sm:$0xff]
      %v908 = vld [vmem:[%s184 + $0x650] sm:$0xff]
      %v909 = vld [vmem:[%s184 + $0x658] sm:$0xff]
      %v910 = vld [vmem:[%s184 + $0x660] sm:$0xff]
      %v911 = vld [vmem:[%s184 + $0x668] sm:$0xff]
      %v912 = vld [vmem:[%s184 + $0x670] sm:$0xff]
      %v913 = vld [vmem:[%s184 + $0x678] sm:$0xff]
      %v914 = vld [vmem:[%s184 + $0x680] sm:$0xff]
      %v915 = vld [vmem:[%s184 + $0x688] sm:$0xff]
      %v916 = vld [vmem:[%s184 + $0x690] sm:$0xff]
      %v917 = vld [vmem:[%s184 + $0x698] sm:$0xff]
      %v918 = vld [vmem:[%s184 + $0x6a0] sm:$0xff]
      %v919 = vld [vmem:[%s184 + $0x6a8] sm:$0xff]
      %v920 = vld [vmem:[%s184 + $0x6b0] sm:$0xff]
      %v921 = vld [vmem:[%s184 + $0x6b8] sm:$0xff]
      %v922 = vld [vmem:[%s184 + $0x6c0] sm:$0xff]
      %v923 = vld [vmem:[%s184 + $0x6c8] sm:$0xff]
      %v924 = vld [vmem:[%s184 + $0x6d0] sm:$0xff]
      %v925 = vld [vmem:[%s184 + $0x6d8] sm:$0xff]
      %v926 = vld [vmem:[%s184 + $0x6e0] sm:$0xff]
      %v927 = vld [vmem:[%s184 + $0x6e8] sm:$0xff]
      %v928 = vld [vmem:[%s184 + $0x6f0] sm:$0xff]
      %v929 = vld [vmem:[%s184 + $0x6f8] sm:$0xff]
      %v930 = vld [vmem:[%s184 + $0x700] sm:$0xff]
      %v931 = vld [vmem:[%s184 + $0x708] sm:$0xff]
      %v932 = vld [vmem:[%s184 + $0x710] sm:$0xff]
      %v933 = vld [vmem:[%s184 + $0x718] sm:$0xff]
      %v934 = vld [vmem:[%s184 + $0x720] sm:$0xff]
      %v935 = vld [vmem:[%s184 + $0x728] sm:$0xff]
      %v936 = vld [vmem:[%s184 + $0x730] sm:$0xff]
      %v937 = vld [vmem:[%s184 + $0x738] sm:$0xff]
      %v938 = vld [vmem:[%s184 + $0x740] sm:$0xff]
      %v939 = vld [vmem:[%s184 + $0x748] sm:$0xff]
      %v940 = vld [vmem:[%s184 + $0x750] sm:$0xff]
      %v941 = vld [vmem:[%s184 + $0x758] sm:$0xff]
      %v942 = vld [vmem:[%s184 + $0x760] sm:$0xff]
      %v943 = vld [vmem:[%s184 + $0x768] sm:$0xff]
      %v944 = vld [vmem:[%s184 + $0x770] sm:$0xff]
      %v945 = vld [vmem:[%s184 + $0x778] sm:$0xff]
      %v946 = vld [vmem:[%s184 + $0x780] sm:$0xff]
      %v947 = vld [vmem:[%s184 + $0x788] sm:$0xff]
      %v948 = vld [vmem:[%s184 + $0x790] sm:$0xff]
      %v949 = vld [vmem:[%s184 + $0x798] sm:$0xff]
      %v950 = vld [vmem:[%s184 + $0x7a0] sm:$0xff]
      %v951 = vld [vmem:[%s184 + $0x7a8] sm:$0xff]
      %v952 = vld [vmem:[%s184 + $0x7b0] sm:$0xff]
      %v953 = vld [vmem:[%s184 + $0x7b8] sm:$0xff]
      %v954 = vld [vmem:[%s184 + $0x7c0] sm:$0xff]
      %v955 = vld [vmem:[%s184 + $0x7c8] sm:$0xff]
      %v956 = vld [vmem:[%s184 + $0x7d0] sm:$0xff]
      %v957 = vld [vmem:[%s184 + $0x7d8] sm:$0xff]
      %v958 = vld [vmem:[%s184 + $0x7e0] sm:$0xff]
      %v959 = vld [vmem:[%s184 + $0x7e8] sm:$0xff]
      %v960 = vld [vmem:[%s184 + $0x7f0] sm:$0xff]
      %v961 = vld [vmem:[%s184 + $0x7f8] sm:$0xff]
      %v962 = vsub.f32 %v450, %v706
      %v963 = vsub.f32 %v451, %v707
      %v964 = vsub.f32 %v452, %v708
      %v965 = vsub.f32 %v453, %v709
      %v966 = vsub.f32 %v454, %v710
      %v967 = vsub.f32 %v455, %v711
      %v968 = vsub.f32 %v456, %v712
      %v969 = vsub.f32 %v457, %v713
      %v970 = vsub.f32 %v458, %v714
      %v971 = vsub.f32 %v459, %v715
      %v972 = vsub.f32 %v460, %v716
      %v973 = vsub.f32 %v461, %v717
      %v974 = vsub.f32 %v462, %v718
      %v975 = vsub.f32 %v463, %v719
      %v976 = vsub.f32 %v464, %v720
      %v977 = vsub.f32 %v465, %v721
      %v978 = vsub.f32 %v466, %v722
      %v979 = vsub.f32 %v467, %v723
      %v980 = vsub.f32 %v468, %v724
      %v981 = vsub.f32 %v469, %v725
      %v982 = vsub.f32 %v470, %v726
      %v983 = vsub.f32 %v471, %v727
      %v984 = vsub.f32 %v472, %v728
      %v985 = vsub.f32 %v473, %v729
      %v986 = vsub.f32 %v474, %v730
      %v987 = vsub.f32 %v475, %v731
      %v988 = vsub.f32 %v476, %v732
      %v989 = vsub.f32 %v477, %v733
      %v990 = vsub.f32 %v478, %v734
      %v991 = vsub.f32 %v479, %v735
      %v992 = vsub.f32 %v480, %v736
      %v993 = vsub.f32 %v481, %v737
      %v994 = vsub.f32 %v482, %v738
      %v995 = vsub.f32 %v483, %v739
      %v996 = vsub.f32 %v484, %v740
      %v997 = vsub.f32 %v485, %v741
      %v998 = vsub.f32 %v486, %v742
      %v999 = vsub.f32 %v487, %v743
      %v1000 = vsub.f32 %v488, %v744
      %v1001 = vsub.f32 %v489, %v745
      %v1002 = vsub.f32 %v490, %v746
      %v1003 = vsub.f32 %v491, %v747
      %v1004 = vsub.f32 %v492, %v748
      %v1005 = vsub.f32 %v493, %v749
      %v1006 = vsub.f32 %v494, %v750
      %v1007 = vsub.f32 %v495, %v751
      %v1008 = vsub.f32 %v496, %v752
      %v1009 = vsub.f32 %v497, %v753
      %v1010 = vsub.f32 %v498, %v754
      %v1011 = vsub.f32 %v499, %v755
      %v1012 = vsub.f32 %v500, %v756
      %v1013 = vsub.f32 %v501, %v757
      %v1014 = vsub.f32 %v502, %v758
      %v1015 = vsub.f32 %v503, %v759
      %v1016 = vsub.f32 %v504, %v760
      %v1017 = vsub.f32 %v505, %v761
      %v1018 = vsub.f32 %v506, %v762
      %v1019 = vsub.f32 %v507, %v763
      %v1020 = vsub.f32 %v508, %v764
      %v1021 = vsub.f32 %v509, %v765
      %v1022 = vsub.f32 %v510, %v766
      %v1023 = vsub.f32 %v511, %v767
      %v1024 = vsub.f32 %v512, %v768
      %v1025 = vsub.f32 %v513, %v769
      %v1026 = vsub.f32 %v514, %v770
      %v1027 = vsub.f32 %v515, %v771
      %v1028 = vsub.f32 %v516, %v772
      %v1029 = vsub.f32 %v517, %v773
      %v1030 = vsub.f32 %v518, %v774
      %v1031 = vsub.f32 %v519, %v775
      %v1032 = vsub.f32 %v520, %v776
      %v1033 = vsub.f32 %v521, %v777
      %v1034 = vsub.f32 %v522, %v778
      %v1035 = vsub.f32 %v523, %v779
      %v1036 = vsub.f32 %v524, %v780
      %v1037 = vsub.f32 %v525, %v781
      %v1038 = vsub.f32 %v526, %v782
      %v1039 = vsub.f32 %v527, %v783
      %v1040 = vsub.f32 %v528, %v784
      %v1041 = vsub.f32 %v529, %v785
      %v1042 = vsub.f32 %v530, %v786
      %v1043 = vsub.f32 %v531, %v787
      %v1044 = vsub.f32 %v532, %v788
      %v1045 = vsub.f32 %v533, %v789
      %v1046 = vsub.f32 %v534, %v790
      %v1047 = vsub.f32 %v535, %v791
      %v1048 = vsub.f32 %v536, %v792
      %v1049 = vsub.f32 %v537, %v793
      %v1050 = vsub.f32 %v538, %v794
      %v1051 = vsub.f32 %v539, %v795
      %v1052 = vsub.f32 %v540, %v796
      %v1053 = vsub.f32 %v541, %v797
      %v1054 = vsub.f32 %v542, %v798
      %v1055 = vsub.f32 %v543, %v799
      %v1056 = vsub.f32 %v544, %v800
      %v1057 = vsub.f32 %v545, %v801
      %v1058 = vsub.f32 %v546, %v802
      %v1059 = vsub.f32 %v547, %v803
      %v1060 = vsub.f32 %v548, %v804
      %v1061 = vsub.f32 %v549, %v805
      %v1062 = vsub.f32 %v550, %v806
      %v1063 = vsub.f32 %v551, %v807
      %v1064 = vsub.f32 %v552, %v808
      %v1065 = vsub.f32 %v553, %v809
      %v1066 = vsub.f32 %v554, %v810
      %v1067 = vsub.f32 %v555, %v811
      %v1068 = vsub.f32 %v556, %v812
      %v1069 = vsub.f32 %v557, %v813
      %v1070 = vsub.f32 %v558, %v814
      %v1071 = vsub.f32 %v559, %v815
      %v1072 = vsub.f32 %v560, %v816
      %v1073 = vsub.f32 %v561, %v817
      %v1074 = vsub.f32 %v562, %v818
      %v1075 = vsub.f32 %v563, %v819
      %v1076 = vsub.f32 %v564, %v820
      %v1077 = vsub.f32 %v565, %v821
      %v1078 = vsub.f32 %v566, %v822
      %v1079 = vsub.f32 %v567, %v823
      %v1080 = vsub.f32 %v568, %v824
      %v1081 = vsub.f32 %v569, %v825
      %v1082 = vsub.f32 %v570, %v826
      %v1083 = vsub.f32 %v571, %v827
      %v1084 = vsub.f32 %v572, %v828
      %v1085 = vsub.f32 %v573, %v829
      %v1086 = vsub.f32 %v574, %v830
      %v1087 = vsub.f32 %v575, %v831
      %v1088 = vsub.f32 %v576, %v832
      %v1089 = vsub.f32 %v577, %v833
      %v1090 = vsub.f32 %v578, %v834
      %v1091 = vsub.f32 %v579, %v835
      %v1092 = vsub.f32 %v580, %v836
      %v1093 = vsub.f32 %v581, %v837
      %v1094 = vsub.f32 %v582, %v838
      %v1095 = vsub.f32 %v583, %v839
      %v1096 = vsub.f32 %v584, %v840
      %v1097 = vsub.f32 %v585, %v841
      %v1098 = vsub.f32 %v586, %v842
      %v1099 = vsub.f32 %v587, %v843
      %v1100 = vsub.f32 %v588, %v844
      %v1101 = vsub.f32 %v589, %v845
      %v1102 = vsub.f32 %v590, %v846
      %v1103 = vsub.f32 %v591, %v847
      %v1104 = vsub.f32 %v592, %v848
      %v1105 = vsub.f32 %v593, %v849
      %v1106 = vsub.f32 %v594, %v850
      %v1107 = vsub.f32 %v595, %v851
      %v1108 = vsub.f32 %v596, %v852
      %v1109 = vsub.f32 %v597, %v853
      %v1110 = vsub.f32 %v598, %v854
      %v1111 = vsub.f32 %v599, %v855
      %v1112 = vsub.f32 %v600, %v856
      %v1113 = vsub.f32 %v601, %v857
      %v1114 = vsub.f32 %v602, %v858
      %v1115 = vsub.f32 %v603, %v859
      %v1116 = vsub.f32 %v604, %v860
      %v1117 = vsub.f32 %v605, %v861
      %v1118 = vsub.f32 %v606, %v862
      %v1119 = vsub.f32 %v607, %v863
      %v1120 = vsub.f32 %v608, %v864
      %v1121 = vsub.f32 %v609, %v865
      %v1122 = vsub.f32 %v610, %v866
      %v1123 = vsub.f32 %v611, %v867
      %v1124 = vsub.f32 %v612, %v868
      %v1125 = vsub.f32 %v613, %v869
      %v1126 = vsub.f32 %v614, %v870
      %v1127 = vsub.f32 %v615, %v871
      %v1128 = vsub.f32 %v616, %v872
      %v1129 = vsub.f32 %v617, %v873
      %v1130 = vsub.f32 %v618, %v874
      %v1131 = vsub.f32 %v619, %v875
      %v1132 = vsub.f32 %v620, %v876
      %v1133 = vsub.f32 %v621, %v877
      %v1134 = vsub.f32 %v622, %v878
      %v1135 = vsub.f32 %v623, %v879
      %v1136 = vsub.f32 %v624, %v880
      %v1137 = vsub.f32 %v625, %v881
      %v1138 = vsub.f32 %v626, %v882
      %v1139 = vsub.f32 %v627, %v883
      %v1140 = vsub.f32 %v628, %v884
      %v1141 = vsub.f32 %v629, %v885
      %v1142 = vsub.f32 %v630, %v886
      %v1143 = vsub.f32 %v631, %v887
      %v1144 = vsub.f32 %v632, %v888
      %v1145 = vsub.f32 %v633, %v889
      %v1146 = vsub.f32 %v634, %v890
      %v1147 = vsub.f32 %v635, %v891
      %v1148 = vsub.f32 %v636, %v892
      %v1149 = vsub.f32 %v637, %v893
      %v1150 = vsub.f32 %v638, %v894
      %v1151 = vsub.f32 %v639, %v895
      %v1152 = vsub.f32 %v640, %v896
      %v1153 = vsub.f32 %v641, %v897
      %v1154 = vsub.f32 %v642, %v898
      %v1155 = vsub.f32 %v643, %v899
      %v1156 = vsub.f32 %v644, %v900
      %v1157 = vsub.f32 %v645, %v901
      %v1158 = vsub.f32 %v646, %v902
      %v1159 = vsub.f32 %v647, %v903
      %v1160 = vsub.f32 %v648, %v904
      %v1161 = vsub.f32 %v649, %v905
      %v1162 = vsub.f32 %v650, %v906
      %v1163 = vsub.f32 %v651, %v907
      %v1164 = vsub.f32 %v652, %v908
      %v1165 = vsub.f32 %v653, %v909
      %v1166 = vsub.f32 %v654, %v910
      %v1167 = vsub.f32 %v655, %v911
      %v1168 = vsub.f32 %v656, %v912
      %v1169 = vsub.f32 %v657, %v913
      %v1170 = vsub.f32 %v658, %v914
      %v1171 = vsub.f32 %v659, %v915
      %v1172 = vsub.f32 %v660, %v916
      %v1173 = vsub.f32 %v661, %v917
      %v1174 = vsub.f32 %v662, %v918
      %v1175 = vsub.f32 %v663, %v919
      %v1176 = vsub.f32 %v664, %v920
      %v1177 = vsub.f32 %v665, %v921
      %v1178 = vsub.f32 %v666, %v922
      %v1179 = vsub.f32 %v667, %v923
      %v1180 = vsub.f32 %v668, %v924
      %v1181 = vsub.f32 %v669, %v925
      %v1182 = vsub.f32 %v670, %v926
      %v1183 = vsub.f32 %v671, %v927
      %v1184 = vsub.f32 %v672, %v928
      %v1185 = vsub.f32 %v673, %v929
      %v1186 = vsub.f32 %v674, %v930
      %v1187 = vsub.f32 %v675, %v931
      %v1188 = vsub.f32 %v676, %v932
      %v1189 = vsub.f32 %v677, %v933
      %v1190 = vsub.f32 %v678, %v934
      %v1191 = vsub.f32 %v679, %v935
      %v1192 = vsub.f32 %v680, %v936
      %v1193 = vsub.f32 %v681, %v937
      %v1194 = vsub.f32 %v682, %v938
      %v1195 = vsub.f32 %v683, %v939
      %v1196 = vsub.f32 %v684, %v940
      %v1197 = vsub.f32 %v685, %v941
      %v1198 = vsub.f32 %v686, %v942
      %v1199 = vsub.f32 %v687, %v943
      %v1200 = vsub.f32 %v688, %v944
      %v1201 = vsub.f32 %v689, %v945
      %v1202 = vsub.f32 %v690, %v946
      %v1203 = vsub.f32 %v691, %v947
      %v1204 = vsub.f32 %v692, %v948
      %v1205 = vsub.f32 %v693, %v949
      %v1206 = vsub.f32 %v694, %v950
      %v1207 = vsub.f32 %v695, %v951
      %v1208 = vsub.f32 %v696, %v952
      %v1209 = vsub.f32 %v697, %v953
      %v1210 = vsub.f32 %v698, %v954
      %v1211 = vsub.f32 %v699, %v955
      %v1212 = vsub.f32 %v700, %v956
      %v1213 = vsub.f32 %v701, %v957
      %v1214 = vsub.f32 %v702, %v958
      %v1215 = vsub.f32 %v703, %v959
      %v1216 = vsub.f32 %v704, %v960
      %v1217 = vsub.f32 %v705, %v961
      %v1218 = vld [vmem:[#allocation2] sm:$0xff]
      %v1219 = vld [vmem:[#allocation2 + $0x8] sm:$0xff]
      %v1220 = vld [vmem:[#allocation2 + $0x10] sm:$0xff]
      %v1221 = vld [vmem:[#allocation2 + $0x18] sm:$0xff]
      %v1222 = vld [vmem:[#allocation2 + $0x20] sm:$0xff]
      %v1223 = vld [vmem:[#allocation2 + $0x28] sm:$0xff]
      %v1224 = vld [vmem:[#allocation2 + $0x30] sm:$0xff]
      %v1225 = vld [vmem:[#allocation2 + $0x38] sm:$0xff]
      %v1226 = vld [vmem:[#allocation2 + $0x40] sm:$0xff]
      %v1227 = vld [vmem:[#allocation2 + $0x48] sm:$0xff]
      %v1228 = vld [vmem:[#allocation2 + $0x50] sm:$0xff]
      %v1229 = vld [vmem:[#allocation2 + $0x58] sm:$0xff]
      %v1230 = vld [vmem:[#allocation2 + $0x60] sm:$0xff]
      %v1231 = vld [vmem:[#allocation2 + $0x68] sm:$0xff]
      %v1232 = vld [vmem:[#allocation2 + $0x70] sm:$0xff]
      %v1233 = vld [vmem:[#allocation2 + $0x78] sm:$0xff]
      %v1234 = vld [vmem:[#allocation2 + $0x80] sm:$0xff]
      %v1235 = vld [vmem:[#allocation2 + $0x88] sm:$0xff]
      %v1236 = vld [vmem:[#allocation2 + $0x90] sm:$0xff]
      %v1237 = vld [vmem:[#allocation2 + $0x98] sm:$0xff]
      %v1238 = vld [vmem:[#allocation2 + $0xa0] sm:$0xff]
      %v1239 = vld [vmem:[#allocation2 + $0xa8] sm:$0xff]
      %v1240 = vld [vmem:[#allocation2 + $0xb0] sm:$0xff]
      %v1241 = vld [vmem:[#allocation2 + $0xb8] sm:$0xff]
      %v1242 = vld [vmem:[#allocation2 + $0xc0] sm:$0xff]
      %v1243 = vld [vmem:[#allocation2 + $0xc8] sm:$0xff]
      %v1244 = vld [vmem:[#allocation2 + $0xd0] sm:$0xff]
      %v1245 = vld [vmem:[#allocation2 + $0xd8] sm:$0xff]
      %v1246 = vld [vmem:[#allocation2 + $0xe0] sm:$0xff]
      %v1247 = vld [vmem:[#allocation2 + $0xe8] sm:$0xff]
      %v1248 = vld [vmem:[#allocation2 + $0xf0] sm:$0xff]
      %v1249 = vld [vmem:[#allocation2 + $0xf8] sm:$0xff]
      %v1250 = vld [vmem:[#allocation2 + $0x100] sm:$0xff]
      %v1251 = vld [vmem:[#allocation2 + $0x108] sm:$0xff]
      %v1252 = vld [vmem:[#allocation2 + $0x110] sm:$0xff]
      %v1253 = vld [vmem:[#allocation2 + $0x118] sm:$0xff]
      %v1254 = vld [vmem:[#allocation2 + $0x120] sm:$0xff]
      %v1255 = vld [vmem:[#allocation2 + $0x128] sm:$0xff]
      %v1256 = vld [vmem:[#allocation2 + $0x130] sm:$0xff]
      %v1257 = vld [vmem:[#allocation2 + $0x138] sm:$0xff]
      %v1258 = vld [vmem:[#allocation2 + $0x140] sm:$0xff]
      %v1259 = vld [vmem:[#allocation2 + $0x148] sm:$0xff]
      %v1260 = vld [vmem:[#allocation2 + $0x150] sm:$0xff]
      %v1261 = vld [vmem:[#allocation2 + $0x158] sm:$0xff]
      %v1262 = vld [vmem:[#allocation2 + $0x160] sm:$0xff]
      %v1263 = vld [vmem:[#allocation2 + $0x168] sm:$0xff]
      %v1264 = vld [vmem:[#allocation2 + $0x170] sm:$0xff]
      %v1265 = vld [vmem:[#allocation2 + $0x178] sm:$0xff]
      %v1266 = vld [vmem:[#allocation2 + $0x180] sm:$0xff]
      %v1267 = vld [vmem:[#allocation2 + $0x188] sm:$0xff]
      %v1268 = vld [vmem:[#allocation2 + $0x190] sm:$0xff]
      %v1269 = vld [vmem:[#allocation2 + $0x198] sm:$0xff]
      %v1270 = vld [vmem:[#allocation2 + $0x1a0] sm:$0xff]
      %v1271 = vld [vmem:[#allocation2 + $0x1a8] sm:$0xff]
      %v1272 = vld [vmem:[#allocation2 + $0x1b0] sm:$0xff]
      %v1273 = vld [vmem:[#allocation2 + $0x1b8] sm:$0xff]
      %v1274 = vld [vmem:[#allocation2 + $0x1c0] sm:$0xff]
      %v1275 = vld [vmem:[#allocation2 + $0x1c8] sm:$0xff]
      %v1276 = vld [vmem:[#allocation2 + $0x1d0] sm:$0xff]
      %v1277 = vld [vmem:[#allocation2 + $0x1d8] sm:$0xff]
      %v1278 = vld [vmem:[#allocation2 + $0x1e0] sm:$0xff]
      %v1279 = vld [vmem:[#allocation2 + $0x1e8] sm:$0xff]
      %v1280 = vld [vmem:[#allocation2 + $0x1f0] sm:$0xff]
      %v1281 = vld [vmem:[#allocation2 + $0x1f8] sm:$0xff]
      %v1282 = vld [vmem:[#allocation2 + $0x200] sm:$0xff]
      %v1283 = vld [vmem:[#allocation2 + $0x208] sm:$0xff]
      %v1284 = vld [vmem:[#allocation2 + $0x210] sm:$0xff]
      %v1285 = vld [vmem:[#allocation2 + $0x218] sm:$0xff]
      %v1286 = vld [vmem:[#allocation2 + $0x220] sm:$0xff]
      %v1287 = vld [vmem:[#allocation2 + $0x228] sm:$0xff]
      %v1288 = vld [vmem:[#allocation2 + $0x230] sm:$0xff]
      %v1289 = vld [vmem:[#allocation2 + $0x238] sm:$0xff]
      %v1290 = vld [vmem:[#allocation2 + $0x240] sm:$0xff]
      %v1291 = vld [vmem:[#allocation2 + $0x248] sm:$0xff]
      %v1292 = vld [vmem:[#allocation2 + $0x250] sm:$0xff]
      %v1293 = vld [vmem:[#allocation2 + $0x258] sm:$0xff]
      %v1294 = vld [vmem:[#allocation2 + $0x260] sm:$0xff]
      %v1295 = vld [vmem:[#allocation2 + $0x268] sm:$0xff]
      %v1296 = vld [vmem:[#allocation2 + $0x270] sm:$0xff]
      %v1297 = vld [vmem:[#allocation2 + $0x278] sm:$0xff]
      %v1298 = vld [vmem:[#allocation2 + $0x280] sm:$0xff]
      %v1299 = vld [vmem:[#allocation2 + $0x288] sm:$0xff]
      %v1300 = vld [vmem:[#allocation2 + $0x290] sm:$0xff]
      %v1301 = vld [vmem:[#allocation2 + $0x298] sm:$0xff]
      %v1302 = vld [vmem:[#allocation2 + $0x2a0] sm:$0xff]
      %v1303 = vld [vmem:[#allocation2 + $0x2a8] sm:$0xff]
      %v1304 = vld [vmem:[#allocation2 + $0x2b0] sm:$0xff]
      %v1305 = vld [vmem:[#allocation2 + $0x2b8] sm:$0xff]
      %v1306 = vld [vmem:[#allocation2 + $0x2c0] sm:$0xff]
      %v1307 = vld [vmem:[#allocation2 + $0x2c8] sm:$0xff]
      %v1308 = vld [vmem:[#allocation2 + $0x2d0] sm:$0xff]
      %v1309 = vld [vmem:[#allocation2 + $0x2d8] sm:$0xff]
      %v1310 = vld [vmem:[#allocation2 + $0x2e0] sm:$0xff]
      %v1311 = vld [vmem:[#allocation2 + $0x2e8] sm:$0xff]
      %v1312 = vld [vmem:[#allocation2 + $0x2f0] sm:$0xff]
      %v1313 = vld [vmem:[#allocation2 + $0x2f8] sm:$0xff]
      %v1314 = vld [vmem:[#allocation2 + $0x300] sm:$0xff]
      %v1315 = vld [vmem:[#allocation2 + $0x308] sm:$0xff]
      %v1316 = vld [vmem:[#allocation2 + $0x310] sm:$0xff]
      %v1317 = vld [vmem:[#allocation2 + $0x318] sm:$0xff]
      %v1318 = vld [vmem:[#allocation2 + $0x320] sm:$0xff]
      %v1319 = vld [vmem:[#allocation2 + $0x328] sm:$0xff]
      %v1320 = vld [vmem:[#allocation2 + $0x330] sm:$0xff]
      %v1321 = vld [vmem:[#allocation2 + $0x338] sm:$0xff]
      %v1322 = vld [vmem:[#allocation2 + $0x340] sm:$0xff]
      %v1323 = vld [vmem:[#allocation2 + $0x348] sm:$0xff]
      %v1324 = vld [vmem:[#allocation2 + $0x350] sm:$0xff]
      %v1325 = vld [vmem:[#allocation2 + $0x358] sm:$0xff]
      %v1326 = vld [vmem:[#allocation2 + $0x360] sm:$0xff]
      %v1327 = vld [vmem:[#allocation2 + $0x368] sm:$0xff]
      %v1328 = vld [vmem:[#allocation2 + $0x370] sm:$0xff]
      %v1329 = vld [vmem:[#allocation2 + $0x378] sm:$0xff]
      %v1330 = vld [vmem:[#allocation2 + $0x380] sm:$0xff]
      %v1331 = vld [vmem:[#allocation2 + $0x388] sm:$0xff]
      %v1332 = vld [vmem:[#allocation2 + $0x390] sm:$0xff]
      %v1333 = vld [vmem:[#allocation2 + $0x398] sm:$0xff]
      %v1334 = vld [vmem:[#allocation2 + $0x3a0] sm:$0xff]
      %v1335 = vld [vmem:[#allocation2 + $0x3a8] sm:$0xff]
      %v1336 = vld [vmem:[#allocation2 + $0x3b0] sm:$0xff]
      %v1337 = vld [vmem:[#allocation2 + $0x3b8] sm:$0xff]
      %v1338 = vld [vmem:[#allocation2 + $0x3c0] sm:$0xff]
      %v1339 = vld [vmem:[#allocation2 + $0x3c8] sm:$0xff]
      %v1340 = vld [vmem:[#allocation2 + $0x3d0] sm:$0xff]
      %v1341 = vld [vmem:[#allocation2 + $0x3d8] sm:$0xff]
      %v1342 = vld [vmem:[#allocation2 + $0x3e0] sm:$0xff]
      %v1343 = vld [vmem:[#allocation2 + $0x3e8] sm:$0xff]
      %v1344 = vld [vmem:[#allocation2 + $0x3f0] sm:$0xff]
      %v1345 = vld [vmem:[#allocation2 + $0x3f8] sm:$0xff]
      %v1346 = vld [vmem:[#allocation2 + $0x400] sm:$0xff]
      %v1347 = vld [vmem:[#allocation2 + $0x408] sm:$0xff]
      %v1348 = vld [vmem:[#allocation2 + $0x410] sm:$0xff]
      %v1349 = vld [vmem:[#allocation2 + $0x418] sm:$0xff]
      %v1350 = vld [vmem:[#allocation2 + $0x420] sm:$0xff]
      %v1351 = vld [vmem:[#allocation2 + $0x428] sm:$0xff]
      %v1352 = vld [vmem:[#allocation2 + $0x430] sm:$0xff]
      %v1353 = vld [vmem:[#allocation2 + $0x438] sm:$0xff]
      %v1354 = vld [vmem:[#allocation2 + $0x440] sm:$0xff]
      %v1355 = vld [vmem:[#allocation2 + $0x448] sm:$0xff]
      %v1356 = vld [vmem:[#allocation2 + $0x450] sm:$0xff]
      %v1357 = vld [vmem:[#allocation2 + $0x458] sm:$0xff]
      %v1358 = vld [vmem:[#allocation2 + $0x460] sm:$0xff]
      %v1359 = vld [vmem:[#allocation2 + $0x468] sm:$0xff]
      %v1360 = vld [vmem:[#allocation2 + $0x470] sm:$0xff]
      %v1361 = vld [vmem:[#allocation2 + $0x478] sm:$0xff]
      %v1362 = vld [vmem:[#allocation2 + $0x480] sm:$0xff]
      %v1363 = vld [vmem:[#allocation2 + $0x488] sm:$0xff]
      %v1364 = vld [vmem:[#allocation2 + $0x490] sm:$0xff]
      %v1365 = vld [vmem:[#allocation2 + $0x498] sm:$0xff]
      %v1366 = vld [vmem:[#allocation2 + $0x4a0] sm:$0xff]
      %v1367 = vld [vmem:[#allocation2 + $0x4a8] sm:$0xff]
      %v1368 = vld [vmem:[#allocation2 + $0x4b0] sm:$0xff]
      %v1369 = vld [vmem:[#allocation2 + $0x4b8] sm:$0xff]
      %v1370 = vld [vmem:[#allocation2 + $0x4c0] sm:$0xff]
      %v1371 = vld [vmem:[#allocation2 + $0x4c8] sm:$0xff]
      %v1372 = vld [vmem:[#allocation2 + $0x4d0] sm:$0xff]
      %v1373 = vld [vmem:[#allocation2 + $0x4d8] sm:$0xff]
      %v1374 = vld [vmem:[#allocation2 + $0x4e0] sm:$0xff]
      %v1375 = vld [vmem:[#allocation2 + $0x4e8] sm:$0xff]
      %v1376 = vld [vmem:[#allocation2 + $0x4f0] sm:$0xff]
      %v1377 = vld [vmem:[#allocation2 + $0x4f8] sm:$0xff]
      %v1378 = vld [vmem:[#allocation2 + $0x500] sm:$0xff]
      %v1379 = vld [vmem:[#allocation2 + $0x508] sm:$0xff]
      %v1380 = vld [vmem:[#allocation2 + $0x510] sm:$0xff]
      %v1381 = vld [vmem:[#allocation2 + $0x518] sm:$0xff]
      %v1382 = vld [vmem:[#allocation2 + $0x520] sm:$0xff]
      %v1383 = vld [vmem:[#allocation2 + $0x528] sm:$0xff]
      %v1384 = vld [vmem:[#allocation2 + $0x530] sm:$0xff]
      %v1385 = vld [vmem:[#allocation2 + $0x538] sm:$0xff]
      %v1386 = vld [vmem:[#allocation2 + $0x540] sm:$0xff]
      %v1387 = vld [vmem:[#allocation2 + $0x548] sm:$0xff]
      %v1388 = vld [vmem:[#allocation2 + $0x550] sm:$0xff]
      %v1389 = vld [vmem:[#allocation2 + $0x558] sm:$0xff]
      %v1390 = vld [vmem:[#allocation2 + $0x560] sm:$0xff]
      %v1391 = vld [vmem:[#allocation2 + $0x568] sm:$0xff]
      %v1392 = vld [vmem:[#allocation2 + $0x570] sm:$0xff]
      %v1393 = vld [vmem:[#allocation2 + $0x578] sm:$0xff]
      %v1394 = vld [vmem:[#allocation2 + $0x580] sm:$0xff]
      %v1395 = vld [vmem:[#allocation2 + $0x588] sm:$0xff]
      %v1396 = vld [vmem:[#allocation2 + $0x590] sm:$0xff]
      %v1397 = vld [vmem:[#allocation2 + $0x598] sm:$0xff]
      %v1398 = vld [vmem:[#allocation2 + $0x5a0] sm:$0xff]
      %v1399 = vld [vmem:[#allocation2 + $0x5a8] sm:$0xff]
      %v1400 = vld [vmem:[#allocation2 + $0x5b0] sm:$0xff]
      %v1401 = vld [vmem:[#allocation2 + $0x5b8] sm:$0xff]
      %v1402 = vld [vmem:[#allocation2 + $0x5c0] sm:$0xff]
      %v1403 = vld [vmem:[#allocation2 + $0x5c8] sm:$0xff]
      %v1404 = vld [vmem:[#allocation2 + $0x5d0] sm:$0xff]
      %v1405 = vld [vmem:[#allocation2 + $0x5d8] sm:$0xff]
      %v1406 = vld [vmem:[#allocation2 + $0x5e0] sm:$0xff]
      %v1407 = vld [vmem:[#allocation2 + $0x5e8] sm:$0xff]
      %v1408 = vld [vmem:[#allocation2 + $0x5f0] sm:$0xff]
      %v1409 = vld [vmem:[#allocation2 + $0x5f8] sm:$0xff]
      %v1410 = vld [vmem:[#allocation2 + $0x600] sm:$0xff]
      %v1411 = vld [vmem:[#allocation2 + $0x608] sm:$0xff]
      %v1412 = vld [vmem:[#allocation2 + $0x610] sm:$0xff]
      %v1413 = vld [vmem:[#allocation2 + $0x618] sm:$0xff]
      %v1414 = vld [vmem:[#allocation2 + $0x620] sm:$0xff]
      %v1415 = vld [vmem:[#allocation2 + $0x628] sm:$0xff]
      %v1416 = vld [vmem:[#allocation2 + $0x630] sm:$0xff]
      %v1417 = vld [vmem:[#allocation2 + $0x638] sm:$0xff]
      %v1418 = vld [vmem:[#allocation2 + $0x640] sm:$0xff]
      %v1419 = vld [vmem:[#allocation2 + $0x648] sm:$0xff]
      %v1420 = vld [vmem:[#allocation2 + $0x650] sm:$0xff]
      %v1421 = vld [vmem:[#allocation2 + $0x658] sm:$0xff]
      %v1422 = vld [vmem:[#allocation2 + $0x660] sm:$0xff]
      %v1423 = vld [vmem:[#allocation2 + $0x668] sm:$0xff]
      %v1424 = vld [vmem:[#allocation2 + $0x670] sm:$0xff]
      %v1425 = vld [vmem:[#allocation2 + $0x678] sm:$0xff]
      %v1426 = vld [vmem:[#allocation2 + $0x680] sm:$0xff]
      %v1427 = vld [vmem:[#allocation2 + $0x688] sm:$0xff]
      %v1428 = vld [vmem:[#allocation2 + $0x690] sm:$0xff]
      %v1429 = vld [vmem:[#allocation2 + $0x698] sm:$0xff]
      %v1430 = vld [vmem:[#allocation2 + $0x6a0] sm:$0xff]
      %v1431 = vld [vmem:[#allocation2 + $0x6a8] sm:$0xff]
      %v1432 = vld [vmem:[#allocation2 + $0x6b0] sm:$0xff]
      %v1433 = vld [vmem:[#allocation2 + $0x6b8] sm:$0xff]
      %v1434 = vld [vmem:[#allocation2 + $0x6c0] sm:$0xff]
      %v1435 = vld [vmem:[#allocation2 + $0x6c8] sm:$0xff]
      %v1436 = vld [vmem:[#allocation2 + $0x6d0] sm:$0xff]
      %v1437 = vld [vmem:[#allocation2 + $0x6d8] sm:$0xff]
      %v1438 = vld [vmem:[#allocation2 + $0x6e0] sm:$0xff]
      %v1439 = vld [vmem:[#allocation2 + $0x6e8] sm:$0xff]
      %v1440 = vld [vmem:[#allocation2 + $0x6f0] sm:$0xff]
      %v1441 = vld [vmem:[#allocation2 + $0x6f8] sm:$0xff]
      %v1442 = vld [vmem:[#allocation2 + $0x700] sm:$0xff]
      %v1443 = vld [vmem:[#allocation2 + $0x708] sm:$0xff]
      %v1444 = vld [vmem:[#allocation2 + $0x710] sm:$0xff]
      %v1445 = vld [vmem:[#allocation2 + $0x718] sm:$0xff]
      %v1446 = vld [vmem:[#allocation2 + $0x720] sm:$0xff]
      %v1447 = vld [vmem:[#allocation2 + $0x728] sm:$0xff]
      %v1448 = vld [vmem:[#allocation2 + $0x730] sm:$0xff]
      %v1449 = vld [vmem:[#allocation2 + $0x738] sm:$0xff]
      %v1450 = vld [vmem:[#allocation2 + $0x740] sm:$0xff]
      %v1451 = vld [vmem:[#allocation2 + $0x748] sm:$0xff]
      %v1452 = vld [vmem:[#allocation2 + $0x750] sm:$0xff]
      %v1453 = vld [vmem:[#allocation2 + $0x758] sm:$0xff]
      %v1454 = vld [vmem:[#allocation2 + $0x760] sm:$0xff]
      %v1455 = vld [vmem:[#allocation2 + $0x768] sm:$0xff]
      %v1456 = vld [vmem:[#allocation2 + $0x770] sm:$0xff]
      %v1457 = vld [vmem:[#allocation2 + $0x778] sm:$0xff]
      %v1458 = vld [vmem:[#allocation2 + $0x780] sm:$0xff]
      %v1459 = vld [vmem:[#allocation2 + $0x788] sm:$0xff]
      %v1460 = vld [vmem:[#allocation2 + $0x790] sm:$0xff]
      %v1461 = vld [vmem:[#allocation2 + $0x798] sm:$0xff]
      %v1462 = vld [vmem:[#allocation2 + $0x7a0] sm:$0xff]
      %v1463 = vld [vmem:[#allocation2 + $0x7a8] sm:$0xff]
      %v1464 = vld [vmem:[#allocation2 + $0x7b0] sm:$0xff]
      %v1465 = vld [vmem:[#allocation2 + $0x7b8] sm:$0xff]
      %v1466 = vld [vmem:[#allocation2 + $0x7c0] sm:$0xff]
      %v1467 = vld [vmem:[#allocation2 + $0x7c8] sm:$0xff]
      %v1468 = vld [vmem:[#allocation2 + $0x7d0] sm:$0xff]
      %v1469 = vld [vmem:[#allocation2 + $0x7d8] sm:$0xff]
      %v1470 = vld [vmem:[#allocation2 + $0x7e0] sm:$0xff]
      %v1471 = vld [vmem:[#allocation2 + $0x7e8] sm:$0xff]
      %v1472 = vld [vmem:[#allocation2 + $0x7f0] sm:$0xff]
      %v1473 = vld [vmem:[#allocation2 + $0x7f8] sm:$0xff]
      %v1474 = vmul.f32 %v962, %v962
      %v1475 = vmul.f32 %v963, %v963
      %v1476 = vmul.f32 %v964, %v964
      %v1477 = vmul.f32 %v965, %v965
      %v1478 = vmul.f32 %v966, %v966
      %v1479 = vmul.f32 %v967, %v967
      %v1480 = vmul.f32 %v968, %v968
      %v1481 = vmul.f32 %v969, %v969
      %v1482 = vmul.f32 %v970, %v970
      %v1483 = vmul.f32 %v971, %v971
      %v1484 = vmul.f32 %v972, %v972
      %v1485 = vmul.f32 %v973, %v973
      %v1486 = vmul.f32 %v974, %v974
      %v1487 = vmul.f32 %v975, %v975
      %v1488 = vmul.f32 %v976, %v976
      %v1489 = vmul.f32 %v977, %v977
      %v1490 = vmul.f32 %v978, %v978
      %v1491 = vmul.f32 %v979, %v979
      %v1492 = vmul.f32 %v980, %v980
      %v1493 = vmul.f32 %v981, %v981
      %v1494 = vmul.f32 %v982, %v982
      %v1495 = vmul.f32 %v983, %v983
      %v1496 = vmul.f32 %v984, %v984
      %v1497 = vmul.f32 %v985, %v985
      %v1498 = vmul.f32 %v986, %v986
      %v1499 = vmul.f32 %v987, %v987
      %v1500 = vmul.f32 %v988, %v988
      %v1501 = vmul.f32 %v989, %v989
      %v1502 = vmul.f32 %v990, %v990
      %v1503 = vmul.f32 %v991, %v991
      %v1504 = vmul.f32 %v992, %v992
      %v1505 = vmul.f32 %v993, %v993
      %v1506 = vmul.f32 %v994, %v994
      %v1507 = vmul.f32 %v995, %v995
      %v1508 = vmul.f32 %v996, %v996
      %v1509 = vmul.f32 %v997, %v997
      %v1510 = vmul.f32 %v998, %v998
      %v1511 = vmul.f32 %v999, %v999
      %v1512 = vmul.f32 %v1000, %v1000
      %v1513 = vmul.f32 %v1001, %v1001
      %v1514 = vmul.f32 %v1002, %v1002
      %v1515 = vmul.f32 %v1003, %v1003
      %v1516 = vmul.f32 %v1004, %v1004
      %v1517 = vmul.f32 %v1005, %v1005
      %v1518 = vmul.f32 %v1006, %v1006
      %v1519 = vmul.f32 %v1007, %v1007
      %v1520 = vmul.f32 %v1008, %v1008
      %v1521 = vmul.f32 %v1009, %v1009
      %v1522 = vmul.f32 %v1010, %v1010
      %v1523 = vmul.f32 %v1011, %v1011
      %v1524 = vmul.f32 %v1012, %v1012
      %v1525 = vmul.f32 %v1013, %v1013
      %v1526 = vmul.f32 %v1014, %v1014
      %v1527 = vmul.f32 %v1015, %v1015
      %v1528 = vmul.f32 %v1016, %v1016
      %v1529 = vmul.f32 %v1017, %v1017
      %v1530 = vmul.f32 %v1018, %v1018
      %v1531 = vmul.f32 %v1019, %v1019
      %v1532 = vmul.f32 %v1020, %v1020
      %v1533 = vmul.f32 %v1021, %v1021
      %v1534 = vmul.f32 %v1022, %v1022
      %v1535 = vmul.f32 %v1023, %v1023
      %v1536 = vmul.f32 %v1024, %v1024
      %v1537 = vmul.f32 %v1025, %v1025
      %v1538 = vmul.f32 %v1026, %v1026
      %v1539 = vmul.f32 %v1027, %v1027
      %v1540 = vmul.f32 %v1028, %v1028
      %v1541 = vmul.f32 %v1029, %v1029
      %v1542 = vmul.f32 %v1030, %v1030
      %v1543 = vmul.f32 %v1031, %v1031
      %v1544 = vmul.f32 %v1032, %v1032
      %v1545 = vmul.f32 %v1033, %v1033
      %v1546 = vmul.f32 %v1034, %v1034
      %v1547 = vmul.f32 %v1035, %v1035
      %v1548 = vmul.f32 %v1036, %v1036
      %v1549 = vmul.f32 %v1037, %v1037
      %v1550 = vmul.f32 %v1038, %v1038
      %v1551 = vmul.f32 %v1039, %v1039
      %v1552 = vmul.f32 %v1040, %v1040
      %v1553 = vmul.f32 %v1041, %v1041
      %v1554 = vmul.f32 %v1042, %v1042
      %v1555 = vmul.f32 %v1043, %v1043
      %v1556 = vmul.f32 %v1044, %v1044
      %v1557 = vmul.f32 %v1045, %v1045
      %v1558 = vmul.f32 %v1046, %v1046
      %v1559 = vmul.f32 %v1047, %v1047
      %v1560 = vmul.f32 %v1048, %v1048
      %v1561 = vmul.f32 %v1049, %v1049
      %v1562 = vmul.f32 %v1050, %v1050
      %v1563 = vmul.f32 %v1051, %v1051
      %v1564 = vmul.f32 %v1052, %v1052
      %v1565 = vmul.f32 %v1053, %v1053
      %v1566 = vmul.f32 %v1054, %v1054
      %v1567 = vmul.f32 %v1055, %v1055
      %v1568 = vmul.f32 %v1056, %v1056
      %v1569 = vmul.f32 %v1057, %v1057
      %v1570 = vmul.f32 %v1058, %v1058
      %v1571 = vmul.f32 %v1059, %v1059
      %v1572 = vmul.f32 %v1060, %v1060
      %v1573 = vmul.f32 %v1061, %v1061
      %v1574 = vmul.f32 %v1062, %v1062
      %v1575 = vmul.f32 %v1063, %v1063
      %v1576 = vmul.f32 %v1064, %v1064
      %v1577 = vmul.f32 %v1065, %v1065
      %v1578 = vmul.f32 %v1066, %v1066
      %v1579 = vmul.f32 %v1067, %v1067
      %v1580 = vmul.f32 %v1068, %v1068
      %v1581 = vmul.f32 %v1069, %v1069
      %v1582 = vmul.f32 %v1070, %v1070
      %v1583 = vmul.f32 %v1071, %v1071
      %v1584 = vmul.f32 %v1072, %v1072
      %v1585 = vmul.f32 %v1073, %v1073
      %v1586 = vmul.f32 %v1074, %v1074
      %v1587 = vmul.f32 %v1075, %v1075
      %v1588 = vmul.f32 %v1076, %v1076
      %v1589 = vmul.f32 %v1077, %v1077
      %v1590 = vmul.f32 %v1078, %v1078
      %v1591 = vmul.f32 %v1079, %v1079
      %v1592 = vmul.f32 %v1080, %v1080
      %v1593 = vmul.f32 %v1081, %v1081
      %v1594 = vmul.f32 %v1082, %v1082
      %v1595 = vmul.f32 %v1083, %v1083
      %v1596 = vmul.f32 %v1084, %v1084
      %v1597 = vmul.f32 %v1085, %v1085
      %v1598 = vmul.f32 %v1086, %v1086
      %v1599 = vmul.f32 %v1087, %v1087
      %v1600 = vmul.f32 %v1088, %v1088
      %v1601 = vmul.f32 %v1089, %v1089
      %v1602 = vmul.f32 %v1090, %v1090
      %v1603 = vmul.f32 %v1091, %v1091
      %v1604 = vmul.f32 %v1092, %v1092
      %v1605 = vmul.f32 %v1093, %v1093
      %v1606 = vmul.f32 %v1094, %v1094
      %v1607 = vmul.f32 %v1095, %v1095
      %v1608 = vmul.f32 %v1096, %v1096
      %v1609 = vmul.f32 %v1097, %v1097
      %v1610 = vmul.f32 %v1098, %v1098
      %v1611 = vmul.f32 %v1099, %v1099
      %v1612 = vmul.f32 %v1100, %v1100
      %v1613 = vmul.f32 %v1101, %v1101
      %v1614 = vmul.f32 %v1102, %v1102
      %v1615 = vmul.f32 %v1103, %v1103
      %v1616 = vmul.f32 %v1104, %v1104
      %v1617 = vmul.f32 %v1105, %v1105
      %v1618 = vmul.f32 %v1106, %v1106
      %v1619 = vmul.f32 %v1107, %v1107
      %v1620 = vmul.f32 %v1108, %v1108
      %v1621 = vmul.f32 %v1109, %v1109
      %v1622 = vmul.f32 %v1110, %v1110
      %v1623 = vmul.f32 %v1111, %v1111
      %v1624 = vmul.f32 %v1112, %v1112
      %v1625 = vmul.f32 %v1113, %v1113
      %v1626 = vmul.f32 %v1114, %v1114
      %v1627 = vmul.f32 %v1115, %v1115
      %v1628 = vmul.f32 %v1116, %v1116
      %v1629 = vmul.f32 %v1117, %v1117
      %v1630 = vmul.f32 %v1118, %v1118
      %v1631 = vmul.f32 %v1119, %v1119
      %v1632 = vmul.f32 %v1120, %v1120
      %v1633 = vmul.f32 %v1121, %v1121
      %v1634 = vmul.f32 %v1122, %v1122
      %v1635 = vmul.f32 %v1123, %v1123
      %v1636 = vmul.f32 %v1124, %v1124
      %v1637 = vmul.f32 %v1125, %v1125
      %v1638 = vmul.f32 %v1126, %v1126
      %v1639 = vmul.f32 %v1127, %v1127
      %v1640 = vmul.f32 %v1128, %v1128
      %v1641 = vmul.f32 %v1129, %v1129
      %v1642 = vmul.f32 %v1130, %v1130
      %v1643 = vmul.f32 %v1131, %v1131
      %v1644 = vmul.f32 %v1132, %v1132
      %v1645 = vmul.f32 %v1133, %v1133
      %v1646 = vmul.f32 %v1134, %v1134
      %v1647 = vmul.f32 %v1135, %v1135
      %v1648 = vmul.f32 %v1136, %v1136
      %v1649 = vmul.f32 %v1137, %v1137
      %v1650 = vmul.f32 %v1138, %v1138
      %v1651 = vmul.f32 %v1139, %v1139
      %v1652 = vmul.f32 %v1140, %v1140
      %v1653 = vmul.f32 %v1141, %v1141
      %v1654 = vmul.f32 %v1142, %v1142
      %v1655 = vmul.f32 %v1143, %v1143
      %v1656 = vmul.f32 %v1144, %v1144
      %v1657 = vmul.f32 %v1145, %v1145
      %v1658 = vmul.f32 %v1146, %v1146
      %v1659 = vmul.f32 %v1147, %v1147
      %v1660 = vmul.f32 %v1148, %v1148
      %v1661 = vmul.f32 %v1149, %v1149
      %v1662 = vmul.f32 %v1150, %v1150
      %v1663 = vmul.f32 %v1151, %v1151
      %v1664 = vmul.f32 %v1152, %v1152
      %v1665 = vmul.f32 %v1153, %v1153
      %v1666 = vmul.f32 %v1154, %v1154
      %v1667 = vmul.f32 %v1155, %v1155
      %v1668 = vmul.f32 %v1156, %v1156
      %v1669 = vmul.f32 %v1157, %v1157
      %v1670 = vmul.f32 %v1158, %v1158
      %v1671 = vmul.f32 %v1159, %v1159
      %v1672 = vmul.f32 %v1160, %v1160
      %v1673 = vmul.f32 %v1161, %v1161
      %v1674 = vmul.f32 %v1162, %v1162
      %v1675 = vmul.f32 %v1163, %v1163
      %v1676 = vmul.f32 %v1164, %v1164
      %v1677 = vmul.f32 %v1165, %v1165
      %v1678 = vmul.f32 %v1166, %v1166
      %v1679 = vmul.f32 %v1167, %v1167
      %v1680 = vmul.f32 %v1168, %v1168
      %v1681 = vmul.f32 %v1169, %v1169
      %v1682 = vmul.f32 %v1170, %v1170
      %v1683 = vmul.f32 %v1171, %v1171
      %v1684 = vmul.f32 %v1172, %v1172
      %v1685 = vmul.f32 %v1173, %v1173
      %v1686 = vmul.f32 %v1174, %v1174
      %v1687 = vmul.f32 %v1175, %v1175
      %v1688 = vmul.f32 %v1176, %v1176
      %v1689 = vmul.f32 %v1177, %v1177
      %v1690 = vmul.f32 %v1178, %v1178
      %v1691 = vmul.f32 %v1179, %v1179
      %v1692 = vmul.f32 %v1180, %v1180
      %v1693 = vmul.f32 %v1181, %v1181
      %v1694 = vmul.f32 %v1182, %v1182
      %v1695 = vmul.f32 %v1183, %v1183
      %v1696 = vmul.f32 %v1184, %v1184
      %v1697 = vmul.f32 %v1185, %v1185
      %v1698 = vmul.f32 %v1186, %v1186
      %v1699 = vmul.f32 %v1187, %v1187
      %v1700 = vmul.f32 %v1188, %v1188
      %v1701 = vmul.f32 %v1189, %v1189
      %v1702 = vmul.f32 %v1190, %v1190
      %v1703 = vmul.f32 %v1191, %v1191
      %v1704 = vmul.f32 %v1192, %v1192
      %v1705 = vmul.f32 %v1193, %v1193
      %v1706 = vmul.f32 %v1194, %v1194
      %v1707 = vmul.f32 %v1195, %v1195
      %v1708 = vmul.f32 %v1196, %v1196
      %v1709 = vmul.f32 %v1197, %v1197
      %v1710 = vmul.f32 %v1198, %v1198
      %v1711 = vmul.f32 %v1199, %v1199
      %v1712 = vmul.f32 %v1200, %v1200
      %v1713 = vmul.f32 %v1201, %v1201
      %v1714 = vmul.f32 %v1202, %v1202
      %v1715 = vmul.f32 %v1203, %v1203
      %v1716 = vmul.f32 %v1204, %v1204
      %v1717 = vmul.f32 %v1205, %v1205
      %v1718 = vmul.f32 %v1206, %v1206
      %v1719 = vmul.f32 %v1207, %v1207
      %v1720 = vmul.f32 %v1208, %v1208
      %v1721 = vmul.f32 %v1209, %v1209
      %v1722 = vmul.f32 %v1210, %v1210
      %v1723 = vmul.f32 %v1211, %v1211
      %v1724 = vmul.f32 %v1212, %v1212
      %v1725 = vmul.f32 %v1213, %v1213
      %v1726 = vmul.f32 %v1214, %v1214
      %v1727 = vmul.f32 %v1215, %v1215
      %v1728 = vmul.f32 %v1216, %v1216
      %v1729 = vmul.f32 %v1217, %v1217
      %v1730 = vadd.f32 %v1218, %v1474
      %v1731 = vadd.f32 %v1219, %v1475
      %v1732 = vadd.f32 %v1220, %v1476
      %v1733 = vadd.f32 %v1221, %v1477
      %v1734 = vadd.f32 %v1222, %v1478
      %v1735 = vadd.f32 %v1223, %v1479
      %v1736 = vadd.f32 %v1224, %v1480
      %v1737 = vadd.f32 %v1225, %v1481
      %v1738 = vadd.f32 %v1226, %v1482
      %v1739 = vadd.f32 %v1227, %v1483
      %v1740 = vadd.f32 %v1228, %v1484
      %v1741 = vadd.f32 %v1229, %v1485
      %v1742 = vadd.f32 %v1230, %v1486
      %v1743 = vadd.f32 %v1231, %v1487
      %v1744 = vadd.f32 %v1232, %v1488
      %v1745 = vadd.f32 %v1233, %v1489
      %v1746 = vadd.f32 %v1234, %v1490
      %v1747 = vadd.f32 %v1235, %v1491
      %v1748 = vadd.f32 %v1236, %v1492
      %v1749 = vadd.f32 %v1237, %v1493
      %v1750 = vadd.f32 %v1238, %v1494
      %v1751 = vadd.f32 %v1239, %v1495
      %v1752 = vadd.f32 %v1240, %v1496
      %v1753 = vadd.f32 %v1241, %v1497
      %v1754 = vadd.f32 %v1242, %v1498
      %v1755 = vadd.f32 %v1243, %v1499
      %v1756 = vadd.f32 %v1244, %v1500
      %v1757 = vadd.f32 %v1245, %v1501
      %v1758 = vadd.f32 %v1246, %v1502
      %v1759 = vadd.f32 %v1247, %v1503
      %v1760 = vadd.f32 %v1248, %v1504
      %v1761 = vadd.f32 %v1249, %v1505
      %v1762 = vadd.f32 %v1250, %v1506
      %v1763 = vadd.f32 %v1251, %v1507
      %v1764 = vadd.f32 %v1252, %v1508
      %v1765 = vadd.f32 %v1253, %v1509
      %v1766 = vadd.f32 %v1254, %v1510
      %v1767 = vadd.f32 %v1255, %v1511
      %v1768 = vadd.f32 %v1256, %v1512
      %v1769 = vadd.f32 %v1257, %v1513
      %v1770 = vadd.f32 %v1258, %v1514
      %v1771 = vadd.f32 %v1259, %v1515
      %v1772 = vadd.f32 %v1260, %v1516
      %v1773 = vadd.f32 %v1261, %v1517
      %v1774 = vadd.f32 %v1262, %v1518
      %v1775 = vadd.f32 %v1263, %v1519
      %v1776 = vadd.f32 %v1264, %v1520
      %v1777 = vadd.f32 %v1265, %v1521
      %v1778 = vadd.f32 %v1266, %v1522
      %v1779 = vadd.f32 %v1267, %v1523
      %v1780 = vadd.f32 %v1268, %v1524
      %v1781 = vadd.f32 %v1269, %v1525
      %v1782 = vadd.f32 %v1270, %v1526
      %v1783 = vadd.f32 %v1271, %v1527
      %v1784 = vadd.f32 %v1272, %v1528
      %v1785 = vadd.f32 %v1273, %v1529
      %v1786 = vadd.f32 %v1274, %v1530
      %v1787 = vadd.f32 %v1275, %v1531
      %v1788 = vadd.f32 %v1276, %v1532
      %v1789 = vadd.f32 %v1277, %v1533
      %v1790 = vadd.f32 %v1278, %v1534
      %v1791 = vadd.f32 %v1279, %v1535
      %v1792 = vadd.f32 %v1280, %v1536
      %v1793 = vadd.f32 %v1281, %v1537
      %v1794 = vadd.f32 %v1282, %v1538
      %v1795 = vadd.f32 %v1283, %v1539
      %v1796 = vadd.f32 %v1284, %v1540
      %v1797 = vadd.f32 %v1285, %v1541
      %v1798 = vadd.f32 %v1286, %v1542
      %v1799 = vadd.f32 %v1287, %v1543
      %v1800 = vadd.f32 %v1288, %v1544
      %v1801 = vadd.f32 %v1289, %v1545
      %v1802 = vadd.f32 %v1290, %v1546
      %v1803 = vadd.f32 %v1291, %v1547
      %v1804 = vadd.f32 %v1292, %v1548
      %v1805 = vadd.f32 %v1293, %v1549
      %v1806 = vadd.f32 %v1294, %v1550
      %v1807 = vadd.f32 %v1295, %v1551
      %v1808 = vadd.f32 %v1296, %v1552
      %v1809 = vadd.f32 %v1297, %v1553
      %v1810 = vadd.f32 %v1298, %v1554
      %v1811 = vadd.f32 %v1299, %v1555
      %v1812 = vadd.f32 %v1300, %v1556
      %v1813 = vadd.f32 %v1301, %v1557
      %v1814 = vadd.f32 %v1302, %v1558
      %v1815 = vadd.f32 %v1303, %v1559
      %v1816 = vadd.f32 %v1304, %v1560
      %v1817 = vadd.f32 %v1305, %v1561
      %v1818 = vadd.f32 %v1306, %v1562
      %v1819 = vadd.f32 %v1307, %v1563
      %v1820 = vadd.f32 %v1308, %v1564
      %v1821 = vadd.f32 %v1309, %v1565
      %v1822 = vadd.f32 %v1310, %v1566
      %v1823 = vadd.f32 %v1311, %v1567
      %v1824 = vadd.f32 %v1312, %v1568
      %v1825 = vadd.f32 %v1313, %v1569
      %v1826 = vadd.f32 %v1314, %v1570
      %v1827 = vadd.f32 %v1315, %v1571
      %v1828 = vadd.f32 %v1316, %v1572
      %v1829 = vadd.f32 %v1317, %v1573
      %v1830 = vadd.f32 %v1318, %v1574
      %v1831 = vadd.f32 %v1319, %v1575
      %v1832 = vadd.f32 %v1320, %v1576
      %v1833 = vadd.f32 %v1321, %v1577
      %v1834 = vadd.f32 %v1322, %v1578
      %v1835 = vadd.f32 %v1323, %v1579
      %v1836 = vadd.f32 %v1324, %v1580
      %v1837 = vadd.f32 %v1325, %v1581
      %v1838 = vadd.f32 %v1326, %v1582
      %v1839 = vadd.f32 %v1327, %v1583
      %v1840 = vadd.f32 %v1328, %v1584
      %v1841 = vadd.f32 %v1329, %v1585
      %v1842 = vadd.f32 %v1330, %v1586
      %v1843 = vadd.f32 %v1331, %v1587
      %v1844 = vadd.f32 %v1332, %v1588
      %v1845 = vadd.f32 %v1333, %v1589
      %v1846 = vadd.f32 %v1334, %v1590
      %v1847 = vadd.f32 %v1335, %v1591
      %v1848 = vadd.f32 %v1336, %v1592
      %v1849 = vadd.f32 %v1337, %v1593
      %v1850 = vadd.f32 %v1338, %v1594
      %v1851 = vadd.f32 %v1339, %v1595
      %v1852 = vadd.f32 %v1340, %v1596
      %v1853 = vadd.f32 %v1341, %v1597
      %v1854 = vadd.f32 %v1342, %v1598
      %v1855 = vadd.f32 %v1343, %v1599
      %v1856 = vadd.f32 %v1344, %v1600
      %v1857 = vadd.f32 %v1345, %v1601
      %v1858 = vadd.f32 %v1346, %v1602
      %v1859 = vadd.f32 %v1347, %v1603
      %v1860 = vadd.f32 %v1348, %v1604
      %v1861 = vadd.f32 %v1349, %v1605
      %v1862 = vadd.f32 %v1350, %v1606
      %v1863 = vadd.f32 %v1351, %v1607
      %v1864 = vadd.f32 %v1352, %v1608
      %v1865 = vadd.f32 %v1353, %v1609
      %v1866 = vadd.f32 %v1354, %v1610
      %v1867 = vadd.f32 %v1355, %v1611
      %v1868 = vadd.f32 %v1356, %v1612
      %v1869 = vadd.f32 %v1357, %v1613
      %v1870 = vadd.f32 %v1358, %v1614
      %v1871 = vadd.f32 %v1359, %v1615
      %v1872 = vadd.f32 %v1360, %v1616
      %v1873 = vadd.f32 %v1361, %v1617
      %v1874 = vadd.f32 %v1362, %v1618
      %v1875 = vadd.f32 %v1363, %v1619
      %v1876 = vadd.f32 %v1364, %v1620
      %v1877 = vadd.f32 %v1365, %v1621
      %v1878 = vadd.f32 %v1366, %v1622
      %v1879 = vadd.f32 %v1367, %v1623
      %v1880 = vadd.f32 %v1368, %v1624
      %v1881 = vadd.f32 %v1369, %v1625
      %v1882 = vadd.f32 %v1370, %v1626
      %v1883 = vadd.f32 %v1371, %v1627
      %v1884 = vadd.f32 %v1372, %v1628
      %v1885 = vadd.f32 %v1373, %v1629
      %v1886 = vadd.f32 %v1374, %v1630
      %v1887 = vadd.f32 %v1375, %v1631
      %v1888 = vadd.f32 %v1376, %v1632
      %v1889 = vadd.f32 %v1377, %v1633
      %v1890 = vadd.f32 %v1378, %v1634
      %v1891 = vadd.f32 %v1379, %v1635
      %v1892 = vadd.f32 %v1380, %v1636
      %v1893 = vadd.f32 %v1381, %v1637
      %v1894 = vadd.f32 %v1382, %v1638
      %v1895 = vadd.f32 %v1383, %v1639
      %v1896 = vadd.f32 %v1384, %v1640
      %v1897 = vadd.f32 %v1385, %v1641
      %v1898 = vadd.f32 %v1386, %v1642
      %v1899 = vadd.f32 %v1387, %v1643
      %v1900 = vadd.f32 %v1388, %v1644
      %v1901 = vadd.f32 %v1389, %v1645
      %v1902 = vadd.f32 %v1390, %v1646
      %v1903 = vadd.f32 %v1391, %v1647
      %v1904 = vadd.f32 %v1392, %v1648
      %v1905 = vadd.f32 %v1393, %v1649
      %v1906 = vadd.f32 %v1394, %v1650
      %v1907 = vadd.f32 %v1395, %v1651
      %v1908 = vadd.f32 %v1396, %v1652
      %v1909 = vadd.f32 %v1397, %v1653
      %v1910 = vadd.f32 %v1398, %v1654
      %v1911 = vadd.f32 %v1399, %v1655
      %v1912 = vadd.f32 %v1400, %v1656
      %v1913 = vadd.f32 %v1401, %v1657
      %v1914 = vadd.f32 %v1402, %v1658
      %v1915 = vadd.f32 %v1403, %v1659
      %v1916 = vadd.f32 %v1404, %v1660
      %v1917 = vadd.f32 %v1405, %v1661
      %v1918 = vadd.f32 %v1406, %v1662
      %v1919 = vadd.f32 %v1407, %v1663
      %v1920 = vadd.f32 %v1408, %v1664
      %v1921 = vadd.f32 %v1409, %v1665
      %v1922 = vadd.f32 %v1410, %v1666
      %v1923 = vadd.f32 %v1411, %v1667
      %v1924 = vadd.f32 %v1412, %v1668
      %v1925 = vadd.f32 %v1413, %v1669
      %v1926 = vadd.f32 %v1414, %v1670
      %v1927 = vadd.f32 %v1415, %v1671
      %v1928 = vadd.f32 %v1416, %v1672
      %v1929 = vadd.f32 %v1417, %v1673
      %v1930 = vadd.f32 %v1418, %v1674
      %v1931 = vadd.f32 %v1419, %v1675
      %v1932 = vadd.f32 %v1420, %v1676
      %v1933 = vadd.f32 %v1421, %v1677
      %v1934 = vadd.f32 %v1422, %v1678
      %v1935 = vadd.f32 %v1423, %v1679
      %v1936 = vadd.f32 %v1424, %v1680
      %v1937 = vadd.f32 %v1425, %v1681
      %v1938 = vadd.f32 %v1426, %v1682
      %v1939 = vadd.f32 %v1427, %v1683
      %v1940 = vadd.f32 %v1428, %v1684
      %v1941 = vadd.f32 %v1429, %v1685
      %v1942 = vadd.f32 %v1430, %v1686
      %v1943 = vadd.f32 %v1431, %v1687
      %v1944 = vadd.f32 %v1432, %v1688
      %v1945 = vadd.f32 %v1433, %v1689
      %v1946 = vadd.f32 %v1434, %v1690
      %v1947 = vadd.f32 %v1435, %v1691
      %v1948 = vadd.f32 %v1436, %v1692
      %v1949 = vadd.f32 %v1437, %v1693
      %v1950 = vadd.f32 %v1438, %v1694
      %v1951 = vadd.f32 %v1439, %v1695
      %v1952 = vadd.f32 %v1440, %v1696
      %v1953 = vadd.f32 %v1441, %v1697
      %v1954 = vadd.f32 %v1442, %v1698
      %v1955 = vadd.f32 %v1443, %v1699
      %v1956 = vadd.f32 %v1444, %v1700
      %v1957 = vadd.f32 %v1445, %v1701
      %v1958 = vadd.f32 %v1446, %v1702
      %v1959 = vadd.f32 %v1447, %v1703
      %v1960 = vadd.f32 %v1448, %v1704
      %v1961 = vadd.f32 %v1449, %v1705
      %v1962 = vadd.f32 %v1450, %v1706
      %v1963 = vadd.f32 %v1451, %v1707
      %v1964 = vadd.f32 %v1452, %v1708
      %v1965 = vadd.f32 %v1453, %v1709
      %v1966 = vadd.f32 %v1454, %v1710
      %v1967 = vadd.f32 %v1455, %v1711
      %v1968 = vadd.f32 %v1456, %v1712
      %v1969 = vadd.f32 %v1457, %v1713
      %v1970 = vadd.f32 %v1458, %v1714
      %v1971 = vadd.f32 %v1459, %v1715
      %v1972 = vadd.f32 %v1460, %v1716
      %v1973 = vadd.f32 %v1461, %v1717
      %v1974 = vadd.f32 %v1462, %v1718
      %v1975 = vadd.f32 %v1463, %v1719
      %v1976 = vadd.f32 %v1464, %v1720
      %v1977 = vadd.f32 %v1465, %v1721
      %v1978 = vadd.f32 %v1466, %v1722
      %v1979 = vadd.f32 %v1467, %v1723
      %v1980 = vadd.f32 %v1468, %v1724
      %v1981 = vadd.f32 %v1469, %v1725
      %v1982 = vadd.f32 %v1470, %v1726
      %v1983 = vadd.f32 %v1471, %v1727
      %v1984 = vadd.f32 %v1472, %v1728
      %v1985 = vadd.f32 %v1473, %v1729
      %1986 = vst [vmem:[#allocation2] sm:$0xff] %v1730
      %1987 = vst [vmem:[#allocation2 + $0x8] sm:$0xff] %v1731
      %1988 = vst [vmem:[#allocation2 + $0x10] sm:$0xff] %v1732
      %1989 = vst [vmem:[#allocation2 + $0x18] sm:$0xff] %v1733
      %1990 = vst [vmem:[#allocation2 + $0x20] sm:$0xff] %v1734
      %1991 = vst [vmem:[#allocation2 + $0x28] sm:$0xff] %v1735
      %1992 = vst [vmem:[#allocation2 + $0x30] sm:$0xff] %v1736
      %1993 = vst [vmem:[#allocation2 + $0x38] sm:$0xff] %v1737
      %1994 = vst [vmem:[#allocation2 + $0x40] sm:$0xff] %v1738
      %1995 = vst [vmem:[#allocation2 + $0x48] sm:$0xff] %v1739
      %1996 = vst [vmem:[#allocation2 + $0x50] sm:$0xff] %v1740
      %1997 = vst [vmem:[#allocation2 + $0x58] sm:$0xff] %v1741
      %1998 = vst [vmem:[#allocation2 + $0x60] sm:$0xff] %v1742
      %1999 = vst [vmem:[#allocation2 + $0x68] sm:$0xff] %v1743
      %2000 = vst [vmem:[#allocation2 + $0x70] sm:$0xff] %v1744
      %2001 = vst [vmem:[#allocation2 + $0x78] sm:$0xff] %v1745
      %2002 = vst [vmem:[#allocation2 + $0x80] sm:$0xff] %v1746
      %2003 = vst [vmem:[#allocation2 + $0x88] sm:$0xff] %v1747
      %2004 = vst [vmem:[#allocation2 + $0x90] sm:$0xff] %v1748
      %2005 = vst [vmem:[#allocation2 + $0x98] sm:$0xff] %v1749
      %2006 = vst [vmem:[#allocation2 + $0xa0] sm:$0xff] %v1750
      %2007 = vst [vmem:[#allocation2 + $0xa8] sm:$0xff] %v1751
      %2008 = vst [vmem:[#allocation2 + $0xb0] sm:$0xff] %v1752
      %2009 = vst [vmem:[#allocation2 + $0xb8] sm:$0xff] %v1753
      %2010 = vst [vmem:[#allocation2 + $0xc0] sm:$0xff] %v1754
      %2011 = vst [vmem:[#allocation2 + $0xc8] sm:$0xff] %v1755
      %2012 = vst [vmem:[#allocation2 + $0xd0] sm:$0xff] %v1756
      %2013 = vst [vmem:[#allocation2 + $0xd8] sm:$0xff] %v1757
      %2014 = vst [vmem:[#allocation2 + $0xe0] sm:$0xff] %v1758
      %2015 = vst [vmem:[#allocation2 + $0xe8] sm:$0xff] %v1759
      %2016 = vst [vmem:[#allocation2 + $0xf0] sm:$0xff] %v1760
      %2017 = vst [vmem:[#allocation2 + $0xf8] sm:$0xff] %v1761
      %2018 = vst [vmem:[#allocation2 + $0x100] sm:$0xff] %v1762
      %2019 = vst [vmem:[#allocation2 + $0x108] sm:$0xff] %v1763
      %2020 = vst [vmem:[#allocation2 + $0x110] sm:$0xff] %v1764
      %2021 = vst [vmem:[#allocation2 + $0x118] sm:$0xff] %v1765
      %2022 = vst [vmem:[#allocation2 + $0x120] sm:$0xff] %v1766
      %2023 = vst [vmem:[#allocation2 + $0x128] sm:$0xff] %v1767
      %2024 = vst [vmem:[#allocation2 + $0x130] sm:$0xff] %v1768
      %2025 = vst [vmem:[#allocation2 + $0x138] sm:$0xff] %v1769
      %2026 = vst [vmem:[#allocation2 + $0x140] sm:$0xff] %v1770
      %2027 = vst [vmem:[#allocation2 + $0x148] sm:$0xff] %v1771
      %2028 = vst [vmem:[#allocation2 + $0x150] sm:$0xff] %v1772
      %2029 = vst [vmem:[#allocation2 + $0x158] sm:$0xff] %v1773
      %2030 = vst [vmem:[#allocation2 + $0x160] sm:$0xff] %v1774
      %2031 = vst [vmem:[#allocation2 + $0x168] sm:$0xff] %v1775
      %2032 = vst [vmem:[#allocation2 + $0x170] sm:$0xff] %v1776
      %2033 = vst [vmem:[#allocation2 + $0x178] sm:$0xff] %v1777
      %2034 = vst [vmem:[#allocation2 + $0x180] sm:$0xff] %v1778
      %2035 = vst [vmem:[#allocation2 + $0x188] sm:$0xff] %v1779
      %2036 = vst [vmem:[#allocation2 + $0x190] sm:$0xff] %v1780
      %2037 = vst [vmem:[#allocation2 + $0x198] sm:$0xff] %v1781
      %2038 = vst [vmem:[#allocation2 + $0x1a0] sm:$0xff] %v1782
      %2039 = vst [vmem:[#allocation2 + $0x1a8] sm:$0xff] %v1783
      %2040 = vst [vmem:[#allocation2 + $0x1b0] sm:$0xff] %v1784
      %2041 = vst [vmem:[#allocation2 + $0x1b8] sm:$0xff] %v1785
      %2042 = vst [vmem:[#allocation2 + $0x1c0] sm:$0xff] %v1786
      %2043 = vst [vmem:[#allocation2 + $0x1c8] sm:$0xff] %v1787
      %2044 = vst [vmem:[#allocation2 + $0x1d0] sm:$0xff] %v1788
      %2045 = vst [vmem:[#allocation2 + $0x1d8] sm:$0xff] %v1789
      %2046 = vst [vmem:[#allocation2 + $0x1e0] sm:$0xff] %v1790
      %2047 = vst [vmem:[#allocation2 + $0x1e8] sm:$0xff] %v1791
      %2048 = vst [vmem:[#allocation2 + $0x1f0] sm:$0xff] %v1792
      %2049 = vst [vmem:[#allocation2 + $0x1f8] sm:$0xff] %v1793
      %2050 = vst [vmem:[#allocation2 + $0x200] sm:$0xff] %v1794
      %2051 = vst [vmem:[#allocation2 + $0x208] sm:$0xff] %v1795
      %2052 = vst [vmem:[#allocation2 + $0x210] sm:$0xff] %v1796
      %2053 = vst [vmem:[#allocation2 + $0x218] sm:$0xff] %v1797
      %2054 = vst [vmem:[#allocation2 + $0x220] sm:$0xff] %v1798
      %2055 = vst [vmem:[#allocation2 + $0x228] sm:$0xff] %v1799
      %2056 = vst [vmem:[#allocation2 + $0x230] sm:$0xff] %v1800
      %2057 = vst [vmem:[#allocation2 + $0x238] sm:$0xff] %v1801
      %2058 = vst [vmem:[#allocation2 + $0x240] sm:$0xff] %v1802
      %2059 = vst [vmem:[#allocation2 + $0x248] sm:$0xff] %v1803
      %2060 = vst [vmem:[#allocation2 + $0x250] sm:$0xff] %v1804
      %2061 = vst [vmem:[#allocation2 + $0x258] sm:$0xff] %v1805
      %2062 = vst [vmem:[#allocation2 + $0x260] sm:$0xff] %v1806
      %2063 = vst [vmem:[#allocation2 + $0x268] sm:$0xff] %v1807
      %2064 = vst [vmem:[#allocation2 + $0x270] sm:$0xff] %v1808
      %2065 = vst [vmem:[#allocation2 + $0x278] sm:$0xff] %v1809
      %2066 = vst [vmem:[#allocation2 + $0x280] sm:$0xff] %v1810
      %2067 = vst [vmem:[#allocation2 + $0x288] sm:$0xff] %v1811
      %2068 = vst [vmem:[#allocation2 + $0x290] sm:$0xff] %v1812
      %2069 = vst [vmem:[#allocation2 + $0x298] sm:$0xff] %v1813
      %2070 = vst [vmem:[#allocation2 + $0x2a0] sm:$0xff] %v1814
      %2071 = vst [vmem:[#allocation2 + $0x2a8] sm:$0xff] %v1815
      %2072 = vst [vmem:[#allocation2 + $0x2b0] sm:$0xff] %v1816
      %2073 = vst [vmem:[#allocation2 + $0x2b8] sm:$0xff] %v1817
      %2074 = vst [vmem:[#allocation2 + $0x2c0] sm:$0xff] %v1818
      %2075 = vst [vmem:[#allocation2 + $0x2c8] sm:$0xff] %v1819
      %2076 = vst [vmem:[#allocation2 + $0x2d0] sm:$0xff] %v1820
      %2077 = vst [vmem:[#allocation2 + $0x2d8] sm:$0xff] %v1821
      %2078 = vst [vmem:[#allocation2 + $0x2e0] sm:$0xff] %v1822
      %2079 = vst [vmem:[#allocation2 + $0x2e8] sm:$0xff] %v1823
      %2080 = vst [vmem:[#allocation2 + $0x2f0] sm:$0xff] %v1824
      %2081 = vst [vmem:[#allocation2 + $0x2f8] sm:$0xff] %v1825
      %2082 = vst [vmem:[#allocation2 + $0x300] sm:$0xff] %v1826
      %2083 = vst [vmem:[#allocation2 + $0x308] sm:$0xff] %v1827
      %2084 = vst [vmem:[#allocation2 + $0x310] sm:$0xff] %v1828
      %2085 = vst [vmem:[#allocation2 + $0x318] sm:$0xff] %v1829
      %2086 = vst [vmem:[#allocation2 + $0x320] sm:$0xff] %v1830
      %2087 = vst [vmem:[#allocation2 + $0x328] sm:$0xff] %v1831
      %2088 = vst [vmem:[#allocation2 + $0x330] sm:$0xff] %v1832
      %2089 = vst [vmem:[#allocation2 + $0x338] sm:$0xff] %v1833
      %2090 = vst [vmem:[#allocation2 + $0x340] sm:$0xff] %v1834
      %2091 = vst [vmem:[#allocation2 + $0x348] sm:$0xff] %v1835
      %2092 = vst [vmem:[#allocation2 + $0x350] sm:$0xff] %v1836
      %2093 = vst [vmem:[#allocation2 + $0x358] sm:$0xff] %v1837
      %2094 = vst [vmem:[#allocation2 + $0x360] sm:$0xff] %v1838
      %2095 = vst [vmem:[#allocation2 + $0x368] sm:$0xff] %v1839
      %2096 = vst [vmem:[#allocation2 + $0x370] sm:$0xff] %v1840
      %2097 = vst [vmem:[#allocation2 + $0x378] sm:$0xff] %v1841
      %2098 = vst [vmem:[#allocation2 + $0x380] sm:$0xff] %v1842
      %2099 = vst [vmem:[#allocation2 + $0x388] sm:$0xff] %v1843
      %2100 = vst [vmem:[#allocation2 + $0x390] sm:$0xff] %v1844
      %2101 = vst [vmem:[#allocation2 + $0x398] sm:$0xff] %v1845
      %2102 = vst [vmem:[#allocation2 + $0x3a0] sm:$0xff] %v1846
      %2103 = vst [vmem:[#allocation2 + $0x3a8] sm:$0xff] %v1847
      %2104 = vst [vmem:[#allocation2 + $0x3b0] sm:$0xff] %v1848
      %2105 = vst [vmem:[#allocation2 + $0x3b8] sm:$0xff] %v1849
      %2106 = vst [vmem:[#allocation2 + $0x3c0] sm:$0xff] %v1850
      %2107 = vst [vmem:[#allocation2 + $0x3c8] sm:$0xff] %v1851
      %2108 = vst [vmem:[#allocation2 + $0x3d0] sm:$0xff] %v1852
      %2109 = vst [vmem:[#allocation2 + $0x3d8] sm:$0xff] %v1853
      %2110 = vst [vmem:[#allocation2 + $0x3e0] sm:$0xff] %v1854
      %2111 = vst [vmem:[#allocation2 + $0x3e8] sm:$0xff] %v1855
      %2112 = vst [vmem:[#allocation2 + $0x3f0] sm:$0xff] %v1856
      %2113 = vst [vmem:[#allocation2 + $0x3f8] sm:$0xff] %v1857
      %2114 = vst [vmem:[#allocation2 + $0x400] sm:$0xff] %v1858
      %2115 = vst [vmem:[#allocation2 + $0x408] sm:$0xff] %v1859
      %2116 = vst [vmem:[#allocation2 + $0x410] sm:$0xff] %v1860
      %2117 = vst [vmem:[#allocation2 + $0x418] sm:$0xff] %v1861
      %2118 = vst [vmem:[#allocation2 + $0x420] sm:$0xff] %v1862
      %2119 = vst [vmem:[#allocation2 + $0x428] sm:$0xff] %v1863
      %2120 = vst [vmem:[#allocation2 + $0x430] sm:$0xff] %v1864
      %2121 = vst [vmem:[#allocation2 + $0x438] sm:$0xff] %v1865
      %2122 = vst [vmem:[#allocation2 + $0x440] sm:$0xff] %v1866
      %2123 = vst [vmem:[#allocation2 + $0x448] sm:$0xff] %v1867
      %2124 = vst [vmem:[#allocation2 + $0x450] sm:$0xff] %v1868
      %2125 = vst [vmem:[#allocation2 + $0x458] sm:$0xff] %v1869
      %2126 = vst [vmem:[#allocation2 + $0x460] sm:$0xff] %v1870
      %2127 = vst [vmem:[#allocation2 + $0x468] sm:$0xff] %v1871
      %2128 = vst [vmem:[#allocation2 + $0x470] sm:$0xff] %v1872
      %2129 = vst [vmem:[#allocation2 + $0x478] sm:$0xff] %v1873
      %2130 = vst [vmem:[#allocation2 + $0x480] sm:$0xff] %v1874
      %2131 = vst [vmem:[#allocation2 + $0x488] sm:$0xff] %v1875
      %2132 = vst [vmem:[#allocation2 + $0x490] sm:$0xff] %v1876
      %2133 = vst [vmem:[#allocation2 + $0x498] sm:$0xff] %v1877
      %2134 = vst [vmem:[#allocation2 + $0x4a0] sm:$0xff] %v1878
      %2135 = vst [vmem:[#allocation2 + $0x4a8] sm:$0xff] %v1879
      %2136 = vst [vmem:[#allocation2 + $0x4b0] sm:$0xff] %v1880
      %2137 = vst [vmem:[#allocation2 + $0x4b8] sm:$0xff] %v1881
      %2138 = vst [vmem:[#allocation2 + $0x4c0] sm:$0xff] %v1882
      %2139 = vst [vmem:[#allocation2 + $0x4c8] sm:$0xff] %v1883
      %2140 = vst [vmem:[#allocation2 + $0x4d0] sm:$0xff] %v1884
      %2141 = vst [vmem:[#allocation2 + $0x4d8] sm:$0xff] %v1885
      %2142 = vst [vmem:[#allocation2 + $0x4e0] sm:$0xff] %v1886
      %2143 = vst [vmem:[#allocation2 + $0x4e8] sm:$0xff] %v1887
      %2144 = vst [vmem:[#allocation2 + $0x4f0] sm:$0xff] %v1888
      %2145 = vst [vmem:[#allocation2 + $0x4f8] sm:$0xff] %v1889
      %2146 = vst [vmem:[#allocation2 + $0x500] sm:$0xff] %v1890
      %2147 = vst [vmem:[#allocation2 + $0x508] sm:$0xff] %v1891
      %2148 = vst [vmem:[#allocation2 + $0x510] sm:$0xff] %v1892
      %2149 = vst [vmem:[#allocation2 + $0x518] sm:$0xff] %v1893
      %2150 = vst [vmem:[#allocation2 + $0x520] sm:$0xff] %v1894
      %2151 = vst [vmem:[#allocation2 + $0x528] sm:$0xff] %v1895
      %2152 = vst [vmem:[#allocation2 + $0x530] sm:$0xff] %v1896
      %2153 = vst [vmem:[#allocation2 + $0x538] sm:$0xff] %v1897
      %2154 = vst [vmem:[#allocation2 + $0x540] sm:$0xff] %v1898
      %2155 = vst [vmem:[#allocation2 + $0x548] sm:$0xff] %v1899
      %2156 = vst [vmem:[#allocation2 + $0x550] sm:$0xff] %v1900
      %2157 = vst [vmem:[#allocation2 + $0x558] sm:$0xff] %v1901
      %2158 = vst [vmem:[#allocation2 + $0x560] sm:$0xff] %v1902
      %2159 = vst [vmem:[#allocation2 + $0x568] sm:$0xff] %v1903
      %2160 = vst [vmem:[#allocation2 + $0x570] sm:$0xff] %v1904
      %2161 = vst [vmem:[#allocation2 + $0x578] sm:$0xff] %v1905
      %2162 = vst [vmem:[#allocation2 + $0x580] sm:$0xff] %v1906
      %2163 = vst [vmem:[#allocation2 + $0x588] sm:$0xff] %v1907
      %2164 = vst [vmem:[#allocation2 + $0x590] sm:$0xff] %v1908
      %2165 = vst [vmem:[#allocation2 + $0x598] sm:$0xff] %v1909
      %2166 = vst [vmem:[#allocation2 + $0x5a0] sm:$0xff] %v1910
      %2167 = vst [vmem:[#allocation2 + $0x5a8] sm:$0xff] %v1911
      %2168 = vst [vmem:[#allocation2 + $0x5b0] sm:$0xff] %v1912
      %2169 = vst [vmem:[#allocation2 + $0x5b8] sm:$0xff] %v1913
      %2170 = vst [vmem:[#allocation2 + $0x5c0] sm:$0xff] %v1914
      %2171 = vst [vmem:[#allocation2 + $0x5c8] sm:$0xff] %v1915
      %2172 = vst [vmem:[#allocation2 + $0x5d0] sm:$0xff] %v1916
      %2173 = vst [vmem:[#allocation2 + $0x5d8] sm:$0xff] %v1917
      %2174 = vst [vmem:[#allocation2 + $0x5e0] sm:$0xff] %v1918
      %2175 = vst [vmem:[#allocation2 + $0x5e8] sm:$0xff] %v1919
      %2176 = vst [vmem:[#allocation2 + $0x5f0] sm:$0xff] %v1920
      %2177 = vst [vmem:[#allocation2 + $0x5f8] sm:$0xff] %v1921
      %2178 = vst [vmem:[#allocation2 + $0x600] sm:$0xff] %v1922
      %2179 = vst [vmem:[#allocation2 + $0x608] sm:$0xff] %v1923
      %2180 = vst [vmem:[#allocation2 + $0x610] sm:$0xff] %v1924
      %2181 = vst [vmem:[#allocation2 + $0x618] sm:$0xff] %v1925
      %2182 = vst [vmem:[#allocation2 + $0x620] sm:$0xff] %v1926
      %2183 = vst [vmem:[#allocation2 + $0x628] sm:$0xff] %v1927
      %2184 = vst [vmem:[#allocation2 + $0x630] sm:$0xff] %v1928
      %2185 = vst [vmem:[#allocation2 + $0x638] sm:$0xff] %v1929
      %2186 = vst [vmem:[#allocation2 + $0x640] sm:$0xff] %v1930
      %2187 = vst [vmem:[#allocation2 + $0x648] sm:$0xff] %v1931
      %2188 = vst [vmem:[#allocation2 + $0x650] sm:$0xff] %v1932
      %2189 = vst [vmem:[#allocation2 + $0x658] sm:$0xff] %v1933
      %2190 = vst [vmem:[#allocation2 + $0x660] sm:$0xff] %v1934
      %2191 = vst [vmem:[#allocation2 + $0x668] sm:$0xff] %v1935
      %2192 = vst [vmem:[#allocation2 + $0x670] sm:$0xff] %v1936
      %2193 = vst [vmem:[#allocation2 + $0x678] sm:$0xff] %v1937
      %2194 = vst [vmem:[#allocation2 + $0x680] sm:$0xff] %v1938
      %2195 = vst [vmem:[#allocation2 + $0x688] sm:$0xff] %v1939
      %2196 = vst [vmem:[#allocation2 + $0x690] sm:$0xff] %v1940
      %2197 = vst [vmem:[#allocation2 + $0x698] sm:$0xff] %v1941
      %2198 = vst [vmem:[#allocation2 + $0x6a0] sm:$0xff] %v1942
      %2199 = vst [vmem:[#allocation2 + $0x6a8] sm:$0xff] %v1943
      %2200 = vst [vmem:[#allocation2 + $0x6b0] sm:$0xff] %v1944
      %2201 = vst [vmem:[#allocation2 + $0x6b8] sm:$0xff] %v1945
      %2202 = vst [vmem:[#allocation2 + $0x6c0] sm:$0xff] %v1946
      %2203 = vst [vmem:[#allocation2 + $0x6c8] sm:$0xff] %v1947
      %2204 = vst [vmem:[#allocation2 + $0x6d0] sm:$0xff] %v1948
      %2205 = vst [vmem:[#allocation2 + $0x6d8] sm:$0xff] %v1949
      %2206 = vst [vmem:[#allocation2 + $0x6e0] sm:$0xff] %v1950
      %2207 = vst [vmem:[#allocation2 + $0x6e8] sm:$0xff] %v1951
      %2208 = vst [vmem:[#allocation2 + $0x6f0] sm:$0xff] %v1952
      %2209 = vst [vmem:[#allocation2 + $0x6f8] sm:$0xff] %v1953
      %2210 = vst [vmem:[#allocation2 + $0x700] sm:$0xff] %v1954
      %2211 = vst [vmem:[#allocation2 + $0x708] sm:$0xff] %v1955
      %2212 = vst [vmem:[#allocation2 + $0x710] sm:$0xff] %v1956
      %2213 = vst [vmem:[#allocation2 + $0x718] sm:$0xff] %v1957
      %2214 = vst [vmem:[#allocation2 + $0x720] sm:$0xff] %v1958
      %2215 = vst [vmem:[#allocation2 + $0x728] sm:$0xff] %v1959
      %2216 = vst [vmem:[#allocation2 + $0x730] sm:$0xff] %v1960
      %2217 = vst [vmem:[#allocation2 + $0x738] sm:$0xff] %v1961
      %2218 = vst [vmem:[#allocation2 + $0x740] sm:$0xff] %v1962
      %2219 = vst [vmem:[#allocation2 + $0x748] sm:$0xff] %v1963
      %2220 = vst [vmem:[#allocation2 + $0x750] sm:$0xff] %v1964
      %2221 = vst [vmem:[#allocation2 + $0x758] sm:$0xff] %v1965
      %2222 = vst [vmem:[#allocation2 + $0x760] sm:$0xff] %v1966
      %2223 = vst [vmem:[#allocation2 + $0x768] sm:$0xff] %v1967
      %2224 = vst [vmem:[#allocation2 + $0x770] sm:$0xff] %v1968
      %2225 = vst [vmem:[#allocation2 + $0x778] sm:$0xff] %v1969
      %2226 = vst [vmem:[#allocation2 + $0x780] sm:$0xff] %v1970
      %2227 = vst [vmem:[#allocation2 + $0x788] sm:$0xff] %v1971
      %2228 = vst [vmem:[#allocation2 + $0x790] sm:$0xff] %v1972
      %2229 = vst [vmem:[#allocation2 + $0x798] sm:$0xff] %v1973
      %2230 = vst [vmem:[#allocation2 + $0x7a0] sm:$0xff] %v1974
      %2231 = vst [vmem:[#allocation2 + $0x7a8] sm:$0xff] %v1975
      %2232 = vst [vmem:[#allocation2 + $0x7b0] sm:$0xff] %v1976
      %2233 = vst [vmem:[#allocation2 + $0x7b8] sm:$0xff] %v1977
      %2234 = vst [vmem:[#allocation2 + $0x7c0] sm:$0xff] %v1978
      %2235 = vst [vmem:[#allocation2 + $0x7c8] sm:$0xff] %v1979
      %2236 = vst [vmem:[#allocation2 + $0x7d0] sm:$0xff] %v1980
      %2237 = vst [vmem:[#allocation2 + $0x7d8] sm:$0xff] %v1981
      %2238 = vst [vmem:[#allocation2 + $0x7e0] sm:$0xff] %v1982
      %2239 = vst [vmem:[#allocation2 + $0x7e8] sm:$0xff] %v1983
      %2240 = vst [vmem:[#allocation2 + $0x7f0] sm:$0xff] %v1984
      %2241 = vst [vmem:[#allocation2 + $0x7f8] sm:$0xff] %v1985
      // Predicated region
      $region33: #{train_loss_forward.3} parent=27 // pred_check
        %p2242 = pneg %p190
      $region34: #{train_loss_forward.3} parent=27 // pred_check_branch
        %2244 = sbr.rel (%p2242) target = $region36
      $region35: #{train_loss_forward.3} parent=27 // pred_region
        %v2245 = vld [vmem:[#allocation2] sm:$0xff]
        %v2246 = vld [vmem:[#allocation2 + $0x8] sm:$0xff]
        %v2247 = vld [vmem:[#allocation2 + $0x10] sm:$0xff]
        %v2248 = vld [vmem:[#allocation2 + $0x18] sm:$0xff]
        %v2249 = vld [vmem:[#allocation2 + $0x20] sm:$0xff]
        %v2250 = vld [vmem:[#allocation2 + $0x28] sm:$0xff]
        %v2251 = vld [vmem:[#allocation2 + $0x30] sm:$0xff]
        %v2252 = vld [vmem:[#allocation2 + $0x38] sm:$0xff]
        %v2253 = vld [vmem:[#allocation2 + $0x40] sm:$0xff]
        %v2254 = vld [vmem:[#allocation2 + $0x48] sm:$0xff]
        %v2255 = vld [vmem:[#allocation2 + $0x50] sm:$0xff]
        %v2256 = vld [vmem:[#allocation2 + $0x58] sm:$0xff]
        %v2257 = vld [vmem:[#allocation2 + $0x60] sm:$0xff]
        %v2258 = vld [vmem:[#allocation2 + $0x68] sm:$0xff]
        %v2259 = vld [vmem:[#allocation2 + $0x70] sm:$0xff]
        %v2260 = vld [vmem:[#allocation2 + $0x78] sm:$0xff]
        %v2261 = vld [vmem:[#allocation2 + $0x80] sm:$0xff]
        %v2262 = vld [vmem:[#allocation2 + $0x88] sm:$0xff]
        %v2263 = vld [vmem:[#allocation2 + $0x90] sm:$0xff]
        %v2264 = vld [vmem:[#allocation2 + $0x98] sm:$0xff]
        %v2265 = vld [vmem:[#allocation2 + $0xa0] sm:$0xff]
        %v2266 = vld [vmem:[#allocation2 + $0xa8] sm:$0xff]
        %v2267 = vld [vmem:[#allocation2 + $0xb0] sm:$0xff]
        %v2268 = vld [vmem:[#allocation2 + $0xb8] sm:$0xff]
        %v2269 = vld [vmem:[#allocation2 + $0xc0] sm:$0xff]
        %v2270 = vld [vmem:[#allocation2 + $0xc8] sm:$0xff]
        %v2271 = vld [vmem:[#allocation2 + $0xd0] sm:$0xff]
        %v2272 = vld [vmem:[#allocation2 + $0xd8] sm:$0xff]
        %v2273 = vld [vmem:[#allocation2 + $0xe0] sm:$0xff]
        %v2274 = vld [vmem:[#allocation2 + $0xe8] sm:$0xff]
        %v2275 = vld [vmem:[#allocation2 + $0xf0] sm:$0xff]
        %v2276 = vld [vmem:[#allocation2 + $0xf8] sm:$0xff]
        %v2277 = vld [vmem:[#allocation2 + $0x100] sm:$0xff]
        %v2278 = vld [vmem:[#allocation2 + $0x108] sm:$0xff]
        %v2279 = vld [vmem:[#allocation2 + $0x110] sm:$0xff]
        %v2280 = vld [vmem:[#allocation2 + $0x118] sm:$0xff]
        %v2281 = vld [vmem:[#allocation2 + $0x120] sm:$0xff]
        %v2282 = vld [vmem:[#allocation2 + $0x128] sm:$0xff]
        %v2283 = vld [vmem:[#allocation2 + $0x130] sm:$0xff]
        %v2284 = vld [vmem:[#allocation2 + $0x138] sm:$0xff]
        %v2285 = vld [vmem:[#allocation2 + $0x140] sm:$0xff]
        %v2286 = vld [vmem:[#allocation2 + $0x148] sm:$0xff]
        %v2287 = vld [vmem:[#allocation2 + $0x150] sm:$0xff]
        %v2288 = vld [vmem:[#allocation2 + $0x158] sm:$0xff]
        %v2289 = vld [vmem:[#allocation2 + $0x160] sm:$0xff]
        %v2290 = vld [vmem:[#allocation2 + $0x168] sm:$0xff]
        %v2291 = vld [vmem:[#allocation2 + $0x170] sm:$0xff]
        %v2292 = vld [vmem:[#allocation2 + $0x178] sm:$0xff]
        %v2293 = vld [vmem:[#allocation2 + $0x180] sm:$0xff]
        %v2294 = vld [vmem:[#allocation2 + $0x188] sm:$0xff]
        %v2295 = vld [vmem:[#allocation2 + $0x190] sm:$0xff]
        %v2296 = vld [vmem:[#allocation2 + $0x198] sm:$0xff]
        %v2297 = vld [vmem:[#allocation2 + $0x1a0] sm:$0xff]
        %v2298 = vld [vmem:[#allocation2 + $0x1a8] sm:$0xff]
        %v2299 = vld [vmem:[#allocation2 + $0x1b0] sm:$0xff]
        %v2300 = vld [vmem:[#allocation2 + $0x1b8] sm:$0xff]
        %v2301 = vld [vmem:[#allocation2 + $0x1c0] sm:$0xff]
        %v2302 = vld [vmem:[#allocation2 + $0x1c8] sm:$0xff]
        %v2303 = vld [vmem:[#allocation2 + $0x1d0] sm:$0xff]
        %v2304 = vld [vmem:[#allocation2 + $0x1d8] sm:$0xff]
        %v2305 = vld [vmem:[#allocation2 + $0x1e0] sm:$0xff]
        %v2306 = vld [vmem:[#allocation2 + $0x1e8] sm:$0xff]
        %v2307 = vld [vmem:[#allocation2 + $0x1f0] sm:$0xff]
        %v2308 = vld [vmem:[#allocation2 + $0x1f8] sm:$0xff]
        %v2309 = vld [vmem:[#allocation2 + $0x200] sm:$0xff]
        %v2310 = vld [vmem:[#allocation2 + $0x208] sm:$0xff]
        %v2311 = vld [vmem:[#allocation2 + $0x210] sm:$0xff]
        %v2312 = vld [vmem:[#allocation2 + $0x218] sm:$0xff]
        %v2313 = vld [vmem:[#allocation2 + $0x220] sm:$0xff]
        %v2314 = vld [vmem:[#allocation2 + $0x228] sm:$0xff]
        %v2315 = vld [vmem:[#allocation2 + $0x230] sm:$0xff]
        %v2316 = vld [vmem:[#allocation2 + $0x238] sm:$0xff]
        %v2317 = vld [vmem:[#allocation2 + $0x240] sm:$0xff]
        %v2318 = vld [vmem:[#allocation2 + $0x248] sm:$0xff]
        %v2319 = vld [vmem:[#allocation2 + $0x250] sm:$0xff]
        %v2320 = vld [vmem:[#allocation2 + $0x258] sm:$0xff]
        %v2321 = vld [vmem:[#allocation2 + $0x260] sm:$0xff]
        %v2322 = vld [vmem:[#allocation2 + $0x268] sm:$0xff]
        %v2323 = vld [vmem:[#allocation2 + $0x270] sm:$0xff]
        %v2324 = vld [vmem:[#allocation2 + $0x278] sm:$0xff]
        %v2325 = vld [vmem:[#allocation2 + $0x280] sm:$0xff]
        %v2326 = vld [vmem:[#allocation2 + $0x288] sm:$0xff]
        %v2327 = vld [vmem:[#allocation2 + $0x290] sm:$0xff]
        %v2328 = vld [vmem:[#allocation2 + $0x298] sm:$0xff]
        %v2329 = vld [vmem:[#allocation2 + $0x2a0] sm:$0xff]
        %v2330 = vld [vmem:[#allocation2 + $0x2a8] sm:$0xff]
        %v2331 = vld [vmem:[#allocation2 + $0x2b0] sm:$0xff]
        %v2332 = vld [vmem:[#allocation2 + $0x2b8] sm:$0xff]
        %v2333 = vld [vmem:[#allocation2 + $0x2c0] sm:$0xff]
        %v2334 = vld [vmem:[#allocation2 + $0x2c8] sm:$0xff]
        %v2335 = vld [vmem:[#allocation2 + $0x2d0] sm:$0xff]
        %v2336 = vld [vmem:[#allocation2 + $0x2d8] sm:$0xff]
        %v2337 = vld [vmem:[#allocation2 + $0x2e0] sm:$0xff]
        %v2338 = vld [vmem:[#allocation2 + $0x2e8] sm:$0xff]
        %v2339 = vld [vmem:[#allocation2 + $0x2f0] sm:$0xff]
        %v2340 = vld [vmem:[#allocation2 + $0x2f8] sm:$0xff]
        %v2341 = vld [vmem:[#allocation2 + $0x300] sm:$0xff]
        %v2342 = vld [vmem:[#allocation2 + $0x308] sm:$0xff]
        %v2343 = vld [vmem:[#allocation2 + $0x310] sm:$0xff]
        %v2344 = vld [vmem:[#allocation2 + $0x318] sm:$0xff]
        %v2345 = vld [vmem:[#allocation2 + $0x320] sm:$0xff]
        %v2346 = vld [vmem:[#allocation2 + $0x328] sm:$0xff]
        %v2347 = vld [vmem:[#allocation2 + $0x330] sm:$0xff]
        %v2348 = vld [vmem:[#allocation2 + $0x338] sm:$0xff]
        %v2349 = vld [vmem:[#allocation2 + $0x340] sm:$0xff]
        %v2350 = vld [vmem:[#allocation2 + $0x348] sm:$0xff]
        %v2351 = vld [vmem:[#allocation2 + $0x350] sm:$0xff]
        %v2352 = vld [vmem:[#allocation2 + $0x358] sm:$0xff]
        %v2353 = vld [vmem:[#allocation2 + $0x360] sm:$0xff]
        %v2354 = vld [vmem:[#allocation2 + $0x368] sm:$0xff]
        %v2355 = vld [vmem:[#allocation2 + $0x370] sm:$0xff]
        %v2356 = vld [vmem:[#allocation2 + $0x378] sm:$0xff]
        %v2357 = vld [vmem:[#allocation2 + $0x380] sm:$0xff]
        %v2358 = vld [vmem:[#allocation2 + $0x388] sm:$0xff]
        %v2359 = vld [vmem:[#allocation2 + $0x390] sm:$0xff]
        %v2360 = vld [vmem:[#allocation2 + $0x398] sm:$0xff]
        %v2361 = vld [vmem:[#allocation2 + $0x3a0] sm:$0xff]
        %v2362 = vld [vmem:[#allocation2 + $0x3a8] sm:$0xff]
        %v2363 = vld [vmem:[#allocation2 + $0x3b0] sm:$0xff]
        %v2364 = vld [vmem:[#allocation2 + $0x3b8] sm:$0xff]
        %v2365 = vld [vmem:[#allocation2 + $0x3c0] sm:$0xff]
        %v2366 = vld [vmem:[#allocation2 + $0x3c8] sm:$0xff]
        %v2367 = vld [vmem:[#allocation2 + $0x3d0] sm:$0xff]
        %v2368 = vld [vmem:[#allocation2 + $0x3d8] sm:$0xff]
        %v2369 = vld [vmem:[#allocation2 + $0x3e0] sm:$0xff]
        %v2370 = vld [vmem:[#allocation2 + $0x3e8] sm:$0xff]
        %v2371 = vld [vmem:[#allocation2 + $0x3f0] sm:$0xff]
        %v2372 = vld [vmem:[#allocation2 + $0x3f8] sm:$0xff]
        %v2373 = vld [vmem:[#allocation2 + $0x400] sm:$0xff]
        %v2374 = vld [vmem:[#allocation2 + $0x408] sm:$0xff]
        %v2375 = vld [vmem:[#allocation2 + $0x410] sm:$0xff]
        %v2376 = vld [vmem:[#allocation2 + $0x418] sm:$0xff]
        %v2377 = vld [vmem:[#allocation2 + $0x420] sm:$0xff]
        %v2378 = vld [vmem:[#allocation2 + $0x428] sm:$0xff]
        %v2379 = vld [vmem:[#allocation2 + $0x430] sm:$0xff]
        %v2380 = vld [vmem:[#allocation2 + $0x438] sm:$0xff]
        %v2381 = vld [vmem:[#allocation2 + $0x440] sm:$0xff]
        %v2382 = vld [vmem:[#allocation2 + $0x448] sm:$0xff]
        %v2383 = vld [vmem:[#allocation2 + $0x450] sm:$0xff]
        %v2384 = vld [vmem:[#allocation2 + $0x458] sm:$0xff]
        %v2385 = vld [vmem:[#allocation2 + $0x460] sm:$0xff]
        %v2386 = vld [vmem:[#allocation2 + $0x468] sm:$0xff]
        %v2387 = vld [vmem:[#allocation2 + $0x470] sm:$0xff]
        %v2388 = vld [vmem:[#allocation2 + $0x478] sm:$0xff]
        %v2389 = vld [vmem:[#allocation2 + $0x480] sm:$0xff]
        %v2390 = vld [vmem:[#allocation2 + $0x488] sm:$0xff]
        %v2391 = vld [vmem:[#allocation2 + $0x490] sm:$0xff]
        %v2392 = vld [vmem:[#allocation2 + $0x498] sm:$0xff]
        %v2393 = vld [vmem:[#allocation2 + $0x4a0] sm:$0xff]
        %v2394 = vld [vmem:[#allocation2 + $0x4a8] sm:$0xff]
        %v2395 = vld [vmem:[#allocation2 + $0x4b0] sm:$0xff]
        %v2396 = vld [vmem:[#allocation2 + $0x4b8] sm:$0xff]
        %v2397 = vld [vmem:[#allocation2 + $0x4c0] sm:$0xff]
        %v2398 = vld [vmem:[#allocation2 + $0x4c8] sm:$0xff]
        %v2399 = vld [vmem:[#allocation2 + $0x4d0] sm:$0xff]
        %v2400 = vld [vmem:[#allocation2 + $0x4d8] sm:$0xff]
        %v2401 = vld [vmem:[#allocation2 + $0x4e0] sm:$0xff]
        %v2402 = vld [vmem:[#allocation2 + $0x4e8] sm:$0xff]
        %v2403 = vld [vmem:[#allocation2 + $0x4f0] sm:$0xff]
        %v2404 = vld [vmem:[#allocation2 + $0x4f8] sm:$0xff]
        %v2405 = vld [vmem:[#allocation2 + $0x500] sm:$0xff]
        %v2406 = vld [vmem:[#allocation2 + $0x508] sm:$0xff]
        %v2407 = vld [vmem:[#allocation2 + $0x510] sm:$0xff]
        %v2408 = vld [vmem:[#allocation2 + $0x518] sm:$0xff]
        %v2409 = vld [vmem:[#allocation2 + $0x520] sm:$0xff]
        %v2410 = vld [vmem:[#allocation2 + $0x528] sm:$0xff]
        %v2411 = vld [vmem:[#allocation2 + $0x530] sm:$0xff]
        %v2412 = vld [vmem:[#allocation2 + $0x538] sm:$0xff]
        %v2413 = vld [vmem:[#allocation2 + $0x540] sm:$0xff]
        %v2414 = vld [vmem:[#allocation2 + $0x548] sm:$0xff]
        %v2415 = vld [vmem:[#allocation2 + $0x550] sm:$0xff]
        %v2416 = vld [vmem:[#allocation2 + $0x558] sm:$0xff]
        %v2417 = vld [vmem:[#allocation2 + $0x560] sm:$0xff]
        %v2418 = vld [vmem:[#allocation2 + $0x568] sm:$0xff]
        %v2419 = vld [vmem:[#allocation2 + $0x570] sm:$0xff]
        %v2420 = vld [vmem:[#allocation2 + $0x578] sm:$0xff]
        %v2421 = vld [vmem:[#allocation2 + $0x580] sm:$0xff]
        %v2422 = vld [vmem:[#allocation2 + $0x588] sm:$0xff]
        %v2423 = vld [vmem:[#allocation2 + $0x590] sm:$0xff]
        %v2424 = vld [vmem:[#allocation2 + $0x598] sm:$0xff]
        %v2425 = vld [vmem:[#allocation2 + $0x5a0] sm:$0xff]
        %v2426 = vld [vmem:[#allocation2 + $0x5a8] sm:$0xff]
        %v2427 = vld [vmem:[#allocation2 + $0x5b0] sm:$0xff]
        %v2428 = vld [vmem:[#allocation2 + $0x5b8] sm:$0xff]
        %v2429 = vld [vmem:[#allocation2 + $0x5c0] sm:$0xff]
        %v2430 = vld [vmem:[#allocation2 + $0x5c8] sm:$0xff]
        %v2431 = vld [vmem:[#allocation2 + $0x5d0] sm:$0xff]
        %v2432 = vld [vmem:[#allocation2 + $0x5d8] sm:$0xff]
        %v2433 = vld [vmem:[#allocation2 + $0x5e0] sm:$0xff]
        %v2434 = vld [vmem:[#allocation2 + $0x5e8] sm:$0xff]
        %v2435 = vld [vmem:[#allocation2 + $0x5f0] sm:$0xff]
        %v2436 = vld [vmem:[#allocation2 + $0x5f8] sm:$0xff]
        %v2437 = vld [vmem:[#allocation2 + $0x600] sm:$0xff]
        %v2438 = vld [vmem:[#allocation2 + $0x608] sm:$0xff]
        %v2439 = vld [vmem:[#allocation2 + $0x610] sm:$0xff]
        %v2440 = vld [vmem:[#allocation2 + $0x618] sm:$0xff]
        %v2441 = vld [vmem:[#allocation2 + $0x620] sm:$0xff]
        %v2442 = vld [vmem:[#allocation2 + $0x628] sm:$0xff]
        %v2443 = vld [vmem:[#allocation2 + $0x630] sm:$0xff]
        %v2444 = vld [vmem:[#allocation2 + $0x638] sm:$0xff]
        %v2445 = vld [vmem:[#allocation2 + $0x640] sm:$0xff]
        %v2446 = vld [vmem:[#allocation2 + $0x648] sm:$0xff]
        %v2447 = vld [vmem:[#allocation2 + $0x650] sm:$0xff]
        %v2448 = vld [vmem:[#allocation2 + $0x658] sm:$0xff]
        %v2449 = vld [vmem:[#allocation2 + $0x660] sm:$0xff]
        %v2450 = vld [vmem:[#allocation2 + $0x668] sm:$0xff]
        %v2451 = vld [vmem:[#allocation2 + $0x670] sm:$0xff]
        %v2452 = vld [vmem:[#allocation2 + $0x678] sm:$0xff]
        %v2453 = vld [vmem:[#allocation2 + $0x680] sm:$0xff]
        %v2454 = vld [vmem:[#allocation2 + $0x688] sm:$0xff]
        %v2455 = vld [vmem:[#allocation2 + $0x690] sm:$0xff]
        %v2456 = vld [vmem:[#allocation2 + $0x698] sm:$0xff]
        %v2457 = vld [vmem:[#allocation2 + $0x6a0] sm:$0xff]
        %v2458 = vld [vmem:[#allocation2 + $0x6a8] sm:$0xff]
        %v2459 = vld [vmem:[#allocation2 + $0x6b0] sm:$0xff]
        %v2460 = vld [vmem:[#allocation2 + $0x6b8] sm:$0xff]
        %v2461 = vld [vmem:[#allocation2 + $0x6c0] sm:$0xff]
        %v2462 = vld [vmem:[#allocation2 + $0x6c8] sm:$0xff]
        %v2463 = vld [vmem:[#allocation2 + $0x6d0] sm:$0xff]
        %v2464 = vld [vmem:[#allocation2 + $0x6d8] sm:$0xff]
        %v2465 = vld [vmem:[#allocation2 + $0x6e0] sm:$0xff]
        %v2466 = vld [vmem:[#allocation2 + $0x6e8] sm:$0xff]
        %v2467 = vld [vmem:[#allocation2 + $0x6f0] sm:$0xff]
        %v2468 = vld [vmem:[#allocation2 + $0x6f8] sm:$0xff]
        %v2469 = vld [vmem:[#allocation2 + $0x700] sm:$0xff]
        %v2470 = vld [vmem:[#allocation2 + $0x708] sm:$0xff]
        %v2471 = vld [vmem:[#allocation2 + $0x710] sm:$0xff]
        %v2472 = vld [vmem:[#allocation2 + $0x718] sm:$0xff]
        %v2473 = vld [vmem:[#allocation2 + $0x720] sm:$0xff]
        %v2474 = vld [vmem:[#allocation2 + $0x728] sm:$0xff]
        %v2475 = vld [vmem:[#allocation2 + $0x730] sm:$0xff]
        %v2476 = vld [vmem:[#allocation2 + $0x738] sm:$0xff]
        %v2477 = vld [vmem:[#allocation2 + $0x740] sm:$0xff]
        %v2478 = vld [vmem:[#allocation2 + $0x748] sm:$0xff]
        %v2479 = vld [vmem:[#allocation2 + $0x750] sm:$0xff]
        %v2480 = vld [vmem:[#allocation2 + $0x758] sm:$0xff]
        %v2481 = vld [vmem:[#allocation2 + $0x760] sm:$0xff]
        %v2482 = vld [vmem:[#allocation2 + $0x768] sm:$0xff]
        %v2483 = vld [vmem:[#allocation2 + $0x770] sm:$0xff]
        %v2484 = vld [vmem:[#allocation2 + $0x778] sm:$0xff]
        %v2485 = vld [vmem:[#allocation2 + $0x780] sm:$0xff]
        %v2486 = vld [vmem:[#allocation2 + $0x788] sm:$0xff]
        %v2487 = vld [vmem:[#allocation2 + $0x790] sm:$0xff]
        %v2488 = vld [vmem:[#allocation2 + $0x798] sm:$0xff]
        %v2489 = vld [vmem:[#allocation2 + $0x7a0] sm:$0xff]
        %v2490 = vld [vmem:[#allocation2 + $0x7a8] sm:$0xff]
        %v2491 = vld [vmem:[#allocation2 + $0x7b0] sm:$0xff]
        %v2492 = vld [vmem:[#allocation2 + $0x7b8] sm:$0xff]
        %v2493 = vld [vmem:[#allocation2 + $0x7c0] sm:$0xff]
        %v2494 = vld [vmem:[#allocation2 + $0x7c8] sm:$0xff]
        %v2495 = vld [vmem:[#allocation2 + $0x7d0] sm:$0xff]
        %v2496 = vld [vmem:[#allocation2 + $0x7d8] sm:$0xff]
        %v2497 = vld [vmem:[#allocation2 + $0x7e0] sm:$0xff]
        %v2498 = vld [vmem:[#allocation2 + $0x7e8] sm:$0xff]
        %v2499 = vld [vmem:[#allocation2 + $0x7f0] sm:$0xff]
        %v2500 = vld [vmem:[#allocation2 + $0x7f8] sm:$0xff]
        %v2501 = vadd.f32 %v2245, %v2246
        %v2502 = vadd.f32 %v2501, %v2247
        %v2503 = vadd.f32 %v2502, %v2248
        %v2504 = vadd.f32 %v2503, %v2249
        %v2505 = vadd.f32 %v2504, %v2250
        %v2506 = vadd.f32 %v2505, %v2251
        %v2507 = vadd.f32 %v2506, %v2252
        %v2508 = vadd.f32 %v2507, %v2253
        %v2509 = vadd.f32 %v2508, %v2254
        %v2510 = vadd.f32 %v2509, %v2255
        %v2511 = vadd.f32 %v2510, %v2256
        %v2512 = vadd.f32 %v2511, %v2257
        %v2513 = vadd.f32 %v2512, %v2258
        %v2514 = vadd.f32 %v2513, %v2259
        %v2515 = vadd.f32 %v2514, %v2260
        %v2516 = vadd.f32 %v2515, %v2261
        %v2517 = vadd.f32 %v2516, %v2262
        %v2518 = vadd.f32 %v2517, %v2263
        %v2519 = vadd.f32 %v2518, %v2264
        %v2520 = vadd.f32 %v2519, %v2265
        %v2521 = vadd.f32 %v2520, %v2266
        %v2522 = vadd.f32 %v2521, %v2267
        %v2523 = vadd.f32 %v2522, %v2268
        %v2524 = vadd.f32 %v2523, %v2269
        %v2525 = vadd.f32 %v2524, %v2270
        %v2526 = vadd.f32 %v2525, %v2271
        %v2527 = vadd.f32 %v2526, %v2272
        %v2528 = vadd.f32 %v2527, %v2273
        %v2529 = vadd.f32 %v2528, %v2274
        %v2530 = vadd.f32 %v2529, %v2275
        %v2531 = vadd.f32 %v2530, %v2276
        %v2532 = vadd.f32 %v2531, %v2277
        %v2533 = vadd.f32 %v2532, %v2278
        %v2534 = vadd.f32 %v2533, %v2279
        %v2535 = vadd.f32 %v2534, %v2280
        %v2536 = vadd.f32 %v2535, %v2281
        %v2537 = vadd.f32 %v2536, %v2282
        %v2538 = vadd.f32 %v2537, %v2283
        %v2539 = vadd.f32 %v2538, %v2284
        %v2540 = vadd.f32 %v2539, %v2285
        %v2541 = vadd.f32 %v2540, %v2286
        %v2542 = vadd.f32 %v2541, %v2287
        %v2543 = vadd.f32 %v2542, %v2288
        %v2544 = vadd.f32 %v2543, %v2289
        %v2545 = vadd.f32 %v2544, %v2290
        %v2546 = vadd.f32 %v2545, %v2291
        %v2547 = vadd.f32 %v2546, %v2292
        %v2548 = vadd.f32 %v2547, %v2293
        %v2549 = vadd.f32 %v2548, %v2294
        %v2550 = vadd.f32 %v2549, %v2295
        %v2551 = vadd.f32 %v2550, %v2296
        %v2552 = vadd.f32 %v2551, %v2297
        %v2553 = vadd.f32 %v2552, %v2298
        %v2554 = vadd.f32 %v2553, %v2299
        %v2555 = vadd.f32 %v2554, %v2300
        %v2556 = vadd.f32 %v2555, %v2301
        %v2557 = vadd.f32 %v2556, %v2302
        %v2558 = vadd.f32 %v2557, %v2303
        %v2559 = vadd.f32 %v2558, %v2304
        %v2560 = vadd.f32 %v2559, %v2305
        %v2561 = vadd.f32 %v2560, %v2306
        %v2562 = vadd.f32 %v2561, %v2307
        %v2563 = vadd.f32 %v2562, %v2308
        %v2564 = vadd.f32 %v2563, %v2309
        %v2565 = vadd.f32 %v2564, %v2310
        %v2566 = vadd.f32 %v2565, %v2311
        %v2567 = vadd.f32 %v2566, %v2312
        %v2568 = vadd.f32 %v2567, %v2313
        %v2569 = vadd.f32 %v2568, %v2314
        %v2570 = vadd.f32 %v2569, %v2315
        %v2571 = vadd.f32 %v2570, %v2316
        %v2572 = vadd.f32 %v2571, %v2317
        %v2573 = vadd.f32 %v2572, %v2318
        %v2574 = vadd.f32 %v2573, %v2319
        %v2575 = vadd.f32 %v2574, %v2320
        %v2576 = vadd.f32 %v2575, %v2321
        %v2577 = vadd.f32 %v2576, %v2322
        %v2578 = vadd.f32 %v2577, %v2323
        %v2579 = vadd.f32 %v2578, %v2324
        %v2580 = vadd.f32 %v2579, %v2325
        %v2581 = vadd.f32 %v2580, %v2326
        %v2582 = vadd.f32 %v2581, %v2327
        %v2583 = vadd.f32 %v2582, %v2328
        %v2584 = vadd.f32 %v2583, %v2329
        %v2585 = vadd.f32 %v2584, %v2330
        %v2586 = vadd.f32 %v2585, %v2331
        %v2587 = vadd.f32 %v2586, %v2332
        %v2588 = vadd.f32 %v2587, %v2333
        %v2589 = vadd.f32 %v2588, %v2334
        %v2590 = vadd.f32 %v2589, %v2335
        %v2591 = vadd.f32 %v2590, %v2336
        %v2592 = vadd.f32 %v2591, %v2337
        %v2593 = vadd.f32 %v2592, %v2338
        %v2594 = vadd.f32 %v2593, %v2339
        %v2595 = vadd.f32 %v2594, %v2340
        %v2596 = vadd.f32 %v2595, %v2341
        %v2597 = vadd.f32 %v2596, %v2342
        %v2598 = vadd.f32 %v2597, %v2343
        %v2599 = vadd.f32 %v2598, %v2344
        %v2600 = vadd.f32 %v2599, %v2345
        %v2601 = vadd.f32 %v2600, %v2346
        %v2602 = vadd.f32 %v2601, %v2347
        %v2603 = vadd.f32 %v2602, %v2348
        %v2604 = vadd.f32 %v2603, %v2349
        %v2605 = vadd.f32 %v2604, %v2350
        %v2606 = vadd.f32 %v2605, %v2351
        %v2607 = vadd.f32 %v2606, %v2352
        %v2608 = vadd.f32 %v2607, %v2353
        %v2609 = vadd.f32 %v2608, %v2354
        %v2610 = vadd.f32 %v2609, %v2355
        %v2611 = vadd.f32 %v2610, %v2356
        %v2612 = vadd.f32 %v2611, %v2357
        %v2613 = vadd.f32 %v2612, %v2358
        %v2614 = vadd.f32 %v2613, %v2359
        %v2615 = vadd.f32 %v2614, %v2360
        %v2616 = vadd.f32 %v2615, %v2361
        %v2617 = vadd.f32 %v2616, %v2362
        %v2618 = vadd.f32 %v2617, %v2363
        %v2619 = vadd.f32 %v2618, %v2364
        %v2620 = vadd.f32 %v2619, %v2365
        %v2621 = vadd.f32 %v2620, %v2366
        %v2622 = vadd.f32 %v2621, %v2367
        %v2623 = vadd.f32 %v2622, %v2368
        %v2624 = vadd.f32 %v2623, %v2369
        %v2625 = vadd.f32 %v2624, %v2370
        %v2626 = vadd.f32 %v2625, %v2371
        %v2627 = vadd.f32 %v2626, %v2372
        %v2628 = vadd.f32 %v2627, %v2373
        %v2629 = vadd.f32 %v2628, %v2374
        %v2630 = vadd.f32 %v2629, %v2375
        %v2631 = vadd.f32 %v2630, %v2376
        %v2632 = vadd.f32 %v2631, %v2377
        %v2633 = vadd.f32 %v2632, %v2378
        %v2634 = vadd.f32 %v2633, %v2379
        %v2635 = vadd.f32 %v2634, %v2380
        %v2636 = vadd.f32 %v2635, %v2381
        %v2637 = vadd.f32 %v2636, %v2382
        %v2638 = vadd.f32 %v2637, %v2383
        %v2639 = vadd.f32 %v2638, %v2384
        %v2640 = vadd.f32 %v2639, %v2385
        %v2641 = vadd.f32 %v2640, %v2386
        %v2642 = vadd.f32 %v2641, %v2387
        %v2643 = vadd.f32 %v2642, %v2388
        %v2644 = vadd.f32 %v2643, %v2389
        %v2645 = vadd.f32 %v2644, %v2390
        %v2646 = vadd.f32 %v2645, %v2391
        %v2647 = vadd.f32 %v2646, %v2392
        %v2648 = vadd.f32 %v2647, %v2393
        %v2649 = vadd.f32 %v2648, %v2394
        %v2650 = vadd.f32 %v2649, %v2395
        %v2651 = vadd.f32 %v2650, %v2396
        %v2652 = vadd.f32 %v2651, %v2397
        %v2653 = vadd.f32 %v2652, %v2398
        %v2654 = vadd.f32 %v2653, %v2399
        %v2655 = vadd.f32 %v2654, %v2400
        %v2656 = vadd.f32 %v2655, %v2401
        %v2657 = vadd.f32 %v2656, %v2402
        %v2658 = vadd.f32 %v2657, %v2403
        %v2659 = vadd.f32 %v2658, %v2404
        %v2660 = vadd.f32 %v2659, %v2405
        %v2661 = vadd.f32 %v2660, %v2406
        %v2662 = vadd.f32 %v2661, %v2407
        %v2663 = vadd.f32 %v2662, %v2408
        %v2664 = vadd.f32 %v2663, %v2409
        %v2665 = vadd.f32 %v2664, %v2410
        %v2666 = vadd.f32 %v2665, %v2411
        %v2667 = vadd.f32 %v2666, %v2412
        %v2668 = vadd.f32 %v2667, %v2413
        %v2669 = vadd.f32 %v2668, %v2414
        %v2670 = vadd.f32 %v2669, %v2415
        %v2671 = vadd.f32 %v2670, %v2416
        %v2672 = vadd.f32 %v2671, %v2417
        %v2673 = vadd.f32 %v2672, %v2418
        %v2674 = vadd.f32 %v2673, %v2419
        %v2675 = vadd.f32 %v2674, %v2420
        %v2676 = vadd.f32 %v2675, %v2421
        %v2677 = vadd.f32 %v2676, %v2422
        %v2678 = vadd.f32 %v2677, %v2423
        %v2679 = vadd.f32 %v2678, %v2424
        %v2680 = vadd.f32 %v2679, %v2425
        %v2681 = vadd.f32 %v2680, %v2426
        %v2682 = vadd.f32 %v2681, %v2427
        %v2683 = vadd.f32 %v2682, %v2428
        %v2684 = vadd.f32 %v2683, %v2429
        %v2685 = vadd.f32 %v2684, %v2430
        %v2686 = vadd.f32 %v2685, %v2431
        %v2687 = vadd.f32 %v2686, %v2432
        %v2688 = vadd.f32 %v2687, %v2433
        %v2689 = vadd.f32 %v2688, %v2434
        %v2690 = vadd.f32 %v2689, %v2435
        %v2691 = vadd.f32 %v2690, %v2436
        %v2692 = vadd.f32 %v2691, %v2437
        %v2693 = vadd.f32 %v2692, %v2438
        %v2694 = vadd.f32 %v2693, %v2439
        %v2695 = vadd.f32 %v2694, %v2440
        %v2696 = vadd.f32 %v2695, %v2441
        %v2697 = vadd.f32 %v2696, %v2442
        %v2698 = vadd.f32 %v2697, %v2443
        %v2699 = vadd.f32 %v2698, %v2444
        %v2700 = vadd.f32 %v2699, %v2445
        %v2701 = vadd.f32 %v2700, %v2446
        %v2702 = vadd.f32 %v2701, %v2447
        %v2703 = vadd.f32 %v2702, %v2448
        %v2704 = vadd.f32 %v2703, %v2449
        %v2705 = vadd.f32 %v2704, %v2450
        %v2706 = vadd.f32 %v2705, %v2451
        %v2707 = vadd.f32 %v2706, %v2452
        %v2708 = vadd.f32 %v2707, %v2453
        %v2709 = vadd.f32 %v2708, %v2454
        %v2710 = vadd.f32 %v2709, %v2455
        %v2711 = vadd.f32 %v2710, %v2456
        %v2712 = vadd.f32 %v2711, %v2457
        %v2713 = vadd.f32 %v2712, %v2458
        %v2714 = vadd.f32 %v2713, %v2459
        %v2715 = vadd.f32 %v2714, %v2460
        %v2716 = vadd.f32 %v2715, %v2461
        %v2717 = vadd.f32 %v2716, %v2462
        %v2718 = vadd.f32 %v2717, %v2463
        %v2719 = vadd.f32 %v2718, %v2464
        %v2720 = vadd.f32 %v2719, %v2465
        %v2721 = vadd.f32 %v2720, %v2466
        %v2722 = vadd.f32 %v2721, %v2467
        %v2723 = vadd.f32 %v2722, %v2468
        %v2724 = vadd.f32 %v2723, %v2469
        %v2725 = vadd.f32 %v2724, %v2470
        %v2726 = vadd.f32 %v2725, %v2471
        %v2727 = vadd.f32 %v2726, %v2472
        %v2728 = vadd.f32 %v2727, %v2473
        %v2729 = vadd.f32 %v2728, %v2474
        %v2730 = vadd.f32 %v2729, %v2475
        %v2731 = vadd.f32 %v2730, %v2476
        %v2732 = vadd.f32 %v2731, %v2477
        %v2733 = vadd.f32 %v2732, %v2478
        %v2734 = vadd.f32 %v2733, %v2479
        %v2735 = vadd.f32 %v2734, %v2480
        %v2736 = vadd.f32 %v2735, %v2481
        %v2737 = vadd.f32 %v2736, %v2482
        %v2738 = vadd.f32 %v2737, %v2483
        %v2739 = vadd.f32 %v2738, %v2484
        %v2740 = vadd.f32 %v2739, %v2485
        %v2741 = vadd.f32 %v2740, %v2486
        %v2742 = vadd.f32 %v2741, %v2487
        %v2743 = vadd.f32 %v2742, %v2488
        %v2744 = vadd.f32 %v2743, %v2489
        %v2745 = vadd.f32 %v2744, %v2490
        %v2746 = vadd.f32 %v2745, %v2491
        %v2747 = vadd.f32 %v2746, %v2492
        %v2748 = vadd.f32 %v2747, %v2493
        %v2749 = vadd.f32 %v2748, %v2494
        %v2750 = vadd.f32 %v2749, %v2495
        %v2751 = vadd.f32 %v2750, %v2496
        %v2752 = vadd.f32 %v2751, %v2497
        %v2753 = vadd.f32 %v2752, %v2498
        %v2754 = vadd.f32 %v2753, %v2499
        %v2755 = vadd.f32 %v2754, %v2500
        %v2756 = vrot.slane %v2755, 4
        %v2757 = vadd.f32 %v2755, %v2756
        %v2758 = vrot.slane %v2757, 2
        %v2759 = vadd.f32 %v2757, %v2758
        %v2760 = vrot.slane %v2759, 1
        %v2761 = vadd.f32 %v2759, %v2760
        %2762 = vst [vmem:[%s189] sm:$0x1] %v2761
      $region36: #{train_loss_forward.3} parent=27 // pred_fallthru
        _
      %p2763 = scmp.lt.s32.totalorder %s17, 1
      %s2764 = scalar_select %p2763, %s17, 1
      %s2765 = scalar_lea.vmem %s2, %s2764
      // Predicated region
      $region37: #{train_loss_forward.3} parent=27 // pred_check
        %p2766 = pneg %p99
      $region38: #{train_loss_forward.3} parent=27 // pred_check_branch
        %2768 = sbr.rel (%p2766) target = $region40
      $region39: #{train_loss_forward.3} parent=27 // pred_region
        _
      $region40: #{train_loss_forward.3} parent=27 // pred_fallthru
        _
    $region28: #{train_loss_forward.3} parent=5 // pred_fallthru
      _
    %p2769 = scmp.le.s32.totalorder 2, %s8
    // Predicated region
    $region41: #{train_loss_forward.3} parent=5 // pred_check
      %p2770 = pneg %p2769
    $region42: #{train_loss_forward.3} parent=5 // pred_check_branch
      %2772 = sbr.rel (%p2770) target = $region44
    $region43: #{train_loss_forward.3} parent=5 // pred_region
      %s2773 = ssub.s32 %s8, 2
      // Predicated region
      $region45: #{train_loss_forward.3} parent=43 // pred_check
        %p2774 = pneg %p105
      $region46: #{train_loss_forward.3} parent=43 // pred_check_branch
        %2776 = sbr.rel (%p2774) target = $region48
      $region47: #{train_loss_forward.3} parent=43 // pred_region
        %p2777 = scmp.lt.s32.totalorder %s19, 1
        %s2778 = scalar_select %p2777, %s19, 1
        %s2779 = scalar_lea.vmem %s2, %s2778
      $region48: #{train_loss_forward.3} parent=43 // pred_fallthru
        _
    $region44: #{train_loss_forward.3} parent=5 // pred_fallthru
      _
  $region6: #{train_loss_forward.3} parent=0 // loop_footer
    %s12 = sadd.s32 1, %s8
  $region7: #{train_loss_forward.3} parent=0 // loop_footer_branch
    %7 = sbr.rel target = $region3
  $region8: #{train_loss_forward.3} parent=0 // loop_exit
    _

</llo_original>
